<compile_context>
chip_gen: v6e
topology: v6e:2x2x1
jax: 0.10.0
libtpu: 0.0.40
codegen_flags: <defaults>
</compile_context>

<pallas_src>
import functools
import math

import jax
import jax.numpy as jnp
from jax.experimental import pallas as pl
from jax.experimental.pallas import tpu as pltpu

# Set to jnp.bfloat16 on v6e/v7x for full-rate MXU and halved weight DMA bytes
# (accumulation stays f32 via preferred_element_type).  Default f32 keeps the
# numerics faithful to the f32 PyTorch reference.
MATMUL_DTYPE = jnp.float32
LN_EPS = 1e-5


def _row_tile(m):
    return 8 if m % 8 == 0 else m


# ----------------------------- Pallas kernels ------------------------------ #

def _qkv_proj_kernel(xqk_ref, xv_ref, wqk_ref, bqk_ref, wv_ref, bv_ref,
                     q_ref, k_ref, v_ref):
    """Fused Q/K/V projection: one [D, 2*H*D] matmul for Q,K plus one for V."""
    xqk = xqk_ref[...].astype(MATMUL_DTYPE)
    xv = xv_ref[...].astype(MATMUL_DTYPE)
    qk = jnp.dot(xqk, wqk_ref[...].astype(MATMUL_DTYPE),
                 preferred_element_type=jnp.float32) + bqk_ref[...]
    v = jnp.dot(xv, wv_ref[...].astype(MATMUL_DTYPE),
                preferred_element_type=jnp.float32) + bv_ref[...]
    hd = q_ref.shape[-1]
    q_ref[...] = qk[:, :hd].astype(q_ref.dtype)
    k_ref[...] = qk[:, hd:].astype(k_ref.dtype)
    v_ref[...] = v.astype(v_ref.dtype)


def _mha_core_kernel(q_ref, k_ref, v_ref, res_ref, wo_ref, bo_ref, g_ref, b_ref,
                     o_ref, *, scale, causal, eps):
    """Per-batch fused: attention (all heads) + head-merge + W_o + residual + LN."""
    H, S, D = q_ref.shape[1], q_ref.shape[2], q_ref.shape[3]
    if causal:
        row = jax.lax.broadcasted_iota(jnp.int32, (S, S), 0)
        col = jax.lax.broadcasted_iota(jnp.int32, (S, S), 1)
        causal_mask = col > row  # triu(diagonal=1)

    acc = jnp.zeros((S, res_ref.shape[-1]), jnp.float32)
    for h in range(H):  # H is tiny and static -> unrolled
        q = q_ref[0, h].astype(jnp.float32)   # (S, D)
        k = k_ref[0, h].astype(jnp.float32)   # (S, D)
        v = v_ref[0, h].astype(jnp.float32)   # (S, D)
        # Q K^T without an explicit transpose (contract the last dims).
        s = jax.lax.dot_general(q.astype(MATMUL_DTYPE), k.astype(MATMUL_DTYPE),
                                (((1,), (1,)), ((), ())),
                                preferred_element_type=jnp.float32)  # (S, S)
        if scale != 1.0:          # d_k = 1 in this module -> skipped
            s = s * scale
        if causal:
            s = jnp.where(causal_mask, -jnp.inf, s)
        m = jnp.max(s, axis=-1, keepdims=True)
        p = jnp.exp(s - m)
        p = p * pl.reciprocal(jnp.sum(p, axis=-1, keepdims=True), approx=True)
        o_h = jnp.dot(p.astype(MATMUL_DTYPE), v.astype(MATMUL_DTYPE),
                      preferred_element_type=jnp.float32)            # (S, D)
        # Fold torch's transpose(1,2).view(-1,S,H*D) @ W_o into a sum over heads:
        # merged @ W_o == sum_h o_h @ W_o[h*D:(h+1)*D, :]
        w_h = wo_ref[h * D:(h + 1) * D, :].astype(MATMUL_DTYPE)
        acc = acc + jnp.dot(o_h.astype(MATMUL_DTYPE), w_h,
                            preferred_element_type=jnp.float32)

    x = acc + bo_ref[...] + res_ref[0].astype(jnp.float32)
    mean = jnp.mean(x, axis=-1, keepdims=True)
    var = jnp.mean((x - mean) ** 2, axis=-1, keepdims=True)
    y = (x - mean) * jax.lax.rsqrt(var + eps)
    o_ref[0] = (y * g_ref[...] + b_ref[...]).astype(o_ref.dtype)


def _ffn_ln_kernel(x_ref, w1_ref, b1_ref, w2_ref, b2_ref, g_ref, b_ref, o_ref,
                   *, eps):
    """Fused FFN (W1 + ReLU + W2) + residual + LayerNorm."""
    x = x_ref[...].astype(jnp.float32)
    h = jnp.dot(x.astype(MATMUL_DTYPE), w1_ref[...].astype(MATMUL_DTYPE),
                preferred_element_type=jnp.float32) + b1_ref[...]
    h = jnp.maximum(h, 0.0)
    y = jnp.dot(h.astype(MATMUL_DTYPE), w2_ref[...].astype(MATMUL_DTYPE),
                preferred_element_type=jnp.float32) + b2_ref[...]
    z = x + y
    mean = jnp.mean(z, axis=-1, keepdims=True)
    var = jnp.mean((z - mean) ** 2, axis=-1, keepdims=True)
    zn = (z - mean) * jax.lax.rsqrt(var + eps)
    o_ref[...] = (zn * g_ref[...] + b_ref[...]).astype(o_ref.dtype)


def _linear_kernel(x_ref, w_ref, b_ref, o_ref):
    y = jnp.dot(x_ref[...].astype(MATMUL_DTYPE), w_ref[...].astype(MATMUL_DTYPE),
                preferred_element_type=jnp.float32) + b_ref[...]
    o_ref[...] = y.astype(o_ref.dtype)


# ----------------------------- kernel wrappers ------------------------------ #

def qkv_project(x_qk, x_v, wqk, bqk, wv, bv):
    """Returns q, k, v each of shape (M, H*D)."""
    M, D = x_qk.shape
    HD = wv.shape[1]
    tm = _row_tile(M)
    return pl.pallas_call(
        _qkv_proj_kernel,
        out_shape=(jax.ShapeDtypeStruct((M, HD), jnp.float32),
                   jax.ShapeDtypeStruct((M, HD), jnp.float32),
                   jax.ShapeDtypeStruct((M, HD), jnp.float32)),
        grid=(M // tm,),
        in_specs=[
            pl.BlockSpec((tm, D), lambda i: (i, 0)),
            pl.BlockSpec((tm, D), lambda i: (i, 0)),
            pl.BlockSpec((D, 2 * HD), lambda i: (0, 0)),
            pl.BlockSpec((1, 2 * HD), lambda i: (0, 0)),
            pl.BlockSpec((D, HD), lambda i: (0, 0)),
            pl.BlockSpec((1, HD), lambda i: (0, 0)),
        ],
        out_specs=[
            pl.BlockSpec((tm, HD), lambda i: (i, 0)),
            pl.BlockSpec((tm, HD), lambda i: (i, 0)),
            pl.BlockSpec((tm, HD), lambda i: (i, 0)),
        ],
        compiler_params=pltpu.CompilerParams(dimension_semantics=("parallel",)),
    )(x_qk, x_v, wqk, bqk.reshape(1, -1), wv, bv.reshape(1, -1))


def attn_out_ln(q, k, v, residual, wo, bo, gamma, beta, *, causal, scale):
    """softmax(QK^T [mask]) V  ->  merge heads  ->  W_o  -> +residual -> LN."""
    B, H, S, D = q.shape
    HD = H * D
    return pl.pallas_call(
        functools.partial(_mha_core_kernel, scale=scale, causal=causal, eps=LN_EPS),
        out_shape=jax.ShapeDtypeStruct((B, S, D), jnp.float32),
        grid=(B,),
        in_specs=[
            pl.BlockSpec((1, H, S, D), lambda b: (b, 0, 0, 0)),
            pl.BlockSpec((1, H, S, D), lambda b: (b, 0, 0, 0)),
            pl.BlockSpec((1, H, S, D), lambda b: (b, 0, 0, 0)),
            pl.BlockSpec((1, S, D), lambda b: (b, 0, 0)),
            pl.BlockSpec((HD, D), lambda b: (0, 0)),
            pl.BlockSpec((1, D), lambda b: (0, 0)),
            pl.BlockSpec((1, D), lambda b: (0, 0)),
            pl.BlockSpec((1, D), lambda b: (0, 0)),
        ],
        out_specs=pl.BlockSpec((1, S, D), lambda b: (b, 0, 0)),
        compiler_params=pltpu.CompilerParams(dimension_semantics=("parallel",)),
    )(q, k, v, residual, wo, bo.reshape(1, -1), gamma.reshape(1, -1),
      beta.reshape(1, -1))


def ffn_ln(x, ffn_p, gamma, beta):
    B, S, D = x.shape
    M = B * S
    Fh = ffn_p["w1"].shape[1]
    tm = _row_tile(M)
    out = pl.pallas_call(
        functools.partial(_ffn_ln_kernel, eps=LN_EPS),
        out_shape=jax.ShapeDtypeStruct((M, D), jnp.float32),
        grid=(M // tm,),
        in_specs=[
            pl.BlockSpec((tm, D), lambda i: (i, 0)),
            pl.BlockSpec((D, Fh), lambda i: (0, 0)),
            pl.BlockSpec((1, Fh), lambda i: (0, 0)),
            pl.BlockSpec((Fh, D), lambda i: (0, 0)),
            pl.BlockSpec((1, D), lambda i: (0, 0)),
            pl.BlockSpec((1, D), lambda i: (0, 0)),
            pl.BlockSpec((1, D), lambda i: (0, 0)),
        ],
        out_specs=pl.BlockSpec((tm, D), lambda i: (i, 0)),
        compiler_params=pltpu.CompilerParams(dimension_semantics=("parallel",)),
    )(x.reshape(M, D), ffn_p["w1"], ffn_p["b1"].reshape(1, -1),
      ffn_p["w2"], ffn_p["b2"].reshape(1, -1),
      gamma.reshape(1, -1), beta.reshape(1, -1))
    return out.reshape(B, S, D)


def linear(x2d, w, b):
    """y = x2d @ w + b  (used for the final vocab projection)."""
    # TODO(synk): at realistic D/vocab sizes, tile (M,N,K) with a VMEM f32
    # accumulator and set vmem_limit_bytes (v7x only has 64 MiB VMEM).
    M, K = x2d.shape
    N = w.shape[1]
    tm = _row_tile(M)
    return pl.pallas_call(
        _linear_kernel,
        out_shape=jax.ShapeDtypeStruct((M, N), jnp.float32),
        grid=(M // tm,),
        in_specs=[
            pl.BlockSpec((tm, K), lambda i: (i, 0)),
            pl.BlockSpec((K, N), lambda i: (0, 0)),
            pl.BlockSpec((1, N), lambda i: (0, 0)),
        ],
        out_specs=pl.BlockSpec((tm, N), lambda i: (i, 0)),
        compiler_params=pltpu.CompilerParams(dimension_semantics=("parallel",)),
    )(x2d, w, b.reshape(1, N))


# ----------------------------- model wrappers ------------------------------ #

def multihead_attention(p, qk_src, v_src, residual, ln_g, ln_b, *, causal,
                        num_heads, seq_len, num_hidden, d_k):
    B, S, D = residual.shape
    H = num_heads
    q2, k2, v2 = qkv_project(qk_src.reshape(-1, D), v_src.reshape(-1, D),
                             p["wqk"], p["bqk"], p["wv"], p["bv"])
    # torch `.view(-1, H, S, D)`: reinterpret the (B*S, H*D) buffer as
    # (B, H, S, D).  Pure bitcast reshape, no head transpose.
    q = q2.reshape(B, H, S, D)
    k = k2.reshape(B, H, S, D)
    v = v2.reshape(B, H, S, D)
    return attn_out_ln(q, k, v, residual, p["wo"], p["bo"], ln_g, ln_b,
                       causal=causal, scale=1.0 / math.sqrt(d_k))


def encoder_layer(p, x, *, H, S, D):
    x = multihead_attention(p["attn"], x, x, x, p["ln1_g"], p["ln1_b"],
                            causal=False, num_heads=H, seq_len=S,
                            num_hidden=D, d_k=1)
    x = ffn_ln(x, p["ffn"], p["ln2_g"], p["ln2_b"])
    return x


def decoder_layer(p, y, enc, *, H, S, D):
    # masked self-attention (+ residual y + LN1)
    x = multihead_attention(p["attn_masked"], y, y, y, p["ln1_g"], p["ln1_b"],
                            causal=True, num_heads=H, seq_len=S,
                            num_hidden=D, d_k=1)
    # reference forward: multihead_attention(encoder_output, encoder_output, x)
    # residual is the current decoder state x (+ LN2)
    x = multihead_attention(p["attn"], enc, x, x, p["ln2_g"], p["ln2_b"],
                            causal=False, num_heads=H, seq_len=S,
                            num_hidden=D, d_k=1)
    x = ffn_ln(x, p["ffn"], p["ln3_g"], p["ln3_b"])
    return x


def positional_encoding(d_model, max_len):
    position = jnp.arange(max_len, dtype=jnp.float32)[:, None]
    div_term = jnp.exp(jnp.arange(0, d_model, 2, dtype=jnp.float32)
                       * (-math.log(10000.0) / d_model))
    pe = jnp.zeros((max_len, d_model), jnp.float32)
    pe = pe.at[:, 0::2].set(jnp.sin(position * div_term))
    pe = pe.at[:, 1::2].set(jnp.cos(position * div_term))
    return pe[None, :, :]  # (1, max_len, d_model)


def transformer_forward(params, x_ids, y_ids, *, H, S, D):
    # embedding lookup + positional encoding are glue (gather / broadcast add)
    x = jnp.take(params["embedding"], x_ids, axis=0) + params["pe"]
    y = jnp.take(params["embedding"], y_ids, axis=0) + params["pe"]
    for lp in params["encoder"]:
        x = encoder_layer(lp, x, H=H, S=S, D=D)
    dec = y
    for lp in params["decoder"]:
        dec = decoder_layer(lp, dec, x, H=H, S=S, D=D)
    B = dec.shape[0]
    logits = linear(dec.reshape(-1, D), params["out_w"], params["out_b"])
    return logits.reshape(B, S, -1)


# ----------------------------- param init ---------------------------------- #

def _init_linear(key, din, dout):
    kw, kb = jax.random.split(key)
    w = jax.random.normal(kw, (din, dout), jnp.float32) * 0.02
    b = jax.random.normal(kb, (dout,), jnp.float32) * 0.02
    return w, b


def _init_mha(key, D, H):
    ks = jax.random.split(key, 4)
    wq, bq = _init_linear(ks[0], D, H * D)
    wk, bk = _init_linear(ks[1], D, H * D)
    wv, bv = _init_linear(ks[2], D, H * D)
    wo, bo = _init_linear(ks[3], H * D, D)
    # Q and K weights stored pre-concatenated for the fused projection matmul.
    return dict(wqk=jnp.concatenate([wq, wk], axis=1),
                bqk=jnp.concatenate([bq, bk], axis=0),
                wv=wv, bv=bv, wo=wo, bo=bo)


def _init_ffn(key, D):
    k1, k2 = jax.random.split(key)
    w1, b1 = _init_linear(k1, D, 2 * D)
    w2, b2 = _init_linear(k2, 2 * D, D)
    return dict(w1=w1, b1=b1, w2=w2, b2=b2)


def init_params(key, *, enc_layers, dec_layers, D, H, S, vocab, emb_dim):
    assert emb_dim == D, "reference module requires embedding_dim == num_hidden"
    keys = jax.random.split(key, 3 + enc_layers + dec_layers)
    params = {
        "embedding": jax.random.normal(keys[0], (vocab, emb_dim), jnp.float32) * 0.02,
        "pe": positional_encoding(emb_dim, S),
    }
    ow, ob = _init_linear(keys[1], emb_dim, vocab)
    params["out_w"], params["out_b"] = ow, ob

    enc = []
    for i in range(enc_layers):
        k = jax.random.split(keys[3 + i], 2)
        enc.append(dict(
            attn=_init_mha(k[0], D, H),
            ffn=_init_ffn(k[1], D),
            ln1_g=jnp.ones((D,), jnp.float32), ln1_b=jnp.zeros((D,), jnp.float32),
            ln2_g=jnp.ones((D,), jnp.float32), ln2_b=jnp.zeros((D,), jnp.float32),
        ))
    params["encoder"] = enc

    dec = []
    for i in range(dec_layers):
        k = jax.random.split(keys[3 + enc_layers + i], 3)
        dec.append(dict(
            attn_masked=_init_mha(k[0], D, H),
            attn=_init_mha(k[1], D, H),
            ffn=_init_ffn(k[2], D),
            ln1_g=jnp.ones((D,), jnp.float32), ln1_b=jnp.zeros((D,), jnp.float32),
            ln2_g=jnp.ones((D,), jnp.float32), ln2_b=jnp.zeros((D,), jnp.float32),
            ln3_g=jnp.ones((D,), jnp.float32), ln3_b=jnp.zeros((D,), jnp.float32),
        ))
    params["decoder"] = dec
    return params


# --------------------------------- main ------------------------------------ #

if __name__ == "__main__":
    # small config: encoder_layers=1, decoder_layers=1, num_hidden=32, heads=4,
    # seq_len=8, vocab=64, embedding_dim=32, batch=2
    ENC_L, DEC_L = 1, 1
    D, H, S = 32, 4, 8
    VOCAB, EMB = 64, 32
    B = 2

    key = jax.random.PRNGKey(0)
    kp, kx, ky = jax.random.split(key, 3)
    params = init_params(kp, enc_layers=ENC_L, dec_layers=DEC_L,
                         D=D, H=H, S=S, vocab=VOCAB, emb_dim=EMB)

    x_ids = jax.random.randint(kx, (B, S), 0, VOCAB, dtype=jnp.int32)
    y_ids = jax.random.randint(ky, (B, S), 0, VOCAB, dtype=jnp.int32)

    fwd = jax.jit(functools.partial(transformer_forward, H=H, S=S, D=D))
    logits = fwd(params, x_ids, y_ids)
    jax.block_until_ready(logits)

    assert logits.shape == (B, S, VOCAB), logits.shape
    assert bool(jnp.all(jnp.isfinite(logits)))
    print("KERNEL_OK")
</pallas_src>

<mosaic_0001>
module attributes {stable_mosaic.version = 11 : i64} {
  func.func @_qkv_proj_kernel(%arg0: i32, %arg1: memref<8x32xf32, #tpu.memory_space<vmem>>, %arg2: memref<8x32xf32, #tpu.memory_space<vmem>>, %arg3: memref<32x256xf32, #tpu.memory_space<vmem>>, %arg4: memref<1x256xf32, #tpu.memory_space<vmem>>, %arg5: memref<32x128xf32, #tpu.memory_space<vmem>>, %arg6: memref<1x128xf32, #tpu.memory_space<vmem>>, %arg7: memref<8x128xf32, #tpu.memory_space<vmem>>, %arg8: memref<8x128xf32, #tpu.memory_space<vmem>>, %arg9: memref<8x128xf32, #tpu.memory_space<vmem>>) attributes {dimension_semantics = [#tpu.dimension_semantics<parallel>], iteration_bounds = array<i64: 2>, scalar_prefetch = 0 : i64, scratch_operands = 0 : i64, tpu.core_type = #tpu.core_type<tc>, window_params = [{transform_indices = @transform_0, window_bounds = array<i64: 8, 32>}, {transform_indices = @transform_1, window_bounds = array<i64: 8, 32>}, {pipeline_mode = #tpu.pipeline_mode<synchronous>, transform_indices = @transform_2, window_bounds = array<i64: 32, 256>}, {pipeline_mode = #tpu.pipeline_mode<synchronous>, transform_indices = @transform_3, window_bounds = array<i64: 1, 256>}, {pipeline_mode = #tpu.pipeline_mode<synchronous>, transform_indices = @transform_4, window_bounds = array<i64: 32, 128>}, {pipeline_mode = #tpu.pipeline_mode<synchronous>, transform_indices = @transform_5, window_bounds = array<i64: 1, 128>}, {transform_indices = @transform_6, window_bounds = array<i64: 8, 128>}, {transform_indices = @transform_7, window_bounds = array<i64: 8, 128>}, {transform_indices = @transform_8, window_bounds = array<i64: 8, 128>}]} {
    %c0 = arith.constant 0 : index
    %c0_0 = arith.constant 0 : index
    %0 = vector.load %arg1[%c0, %c0_0] : memref<8x32xf32, #tpu.memory_space<vmem>>, vector<8x32xf32>
    %c0_1 = arith.constant 0 : index
    %c0_2 = arith.constant 0 : index
    %1 = vector.load %arg2[%c0_1, %c0_2] : memref<8x32xf32, #tpu.memory_space<vmem>>, vector<8x32xf32>
    %c0_3 = arith.constant 0 : index
    %c0_4 = arith.constant 0 : index
    %2 = vector.load %arg3[%c0_3, %c0_4] : memref<32x256xf32, #tpu.memory_space<vmem>>, vector<32x256xf32>
    %cst = arith.constant dense<0.000000e+00> : vector<8x256xf32>
    %3 = tpu.matmul %0, %2, %cst {dimension_numbers = #tpu.dot_dimension_numbers<[1], [0], [0], [1], [0, 0, 1, 1], [], []>} : vector<8x32xf32>, vector<32x256xf32>, vector<8x256xf32> -> vector<8x256xf32>
    %c0_5 = arith.constant 0 : index
    %c0_6 = arith.constant 0 : index
    %4 = vector.load %arg4[%c0_5, %c0_6] : memref<1x256xf32, #tpu.memory_space<vmem>>, vector<1x256xf32>
    %5 = vector.broadcast %4 : vector<1x256xf32> to vector<8x256xf32>
    %6 = arith.addf %3, %5 : vector<8x256xf32>
    %c0_7 = arith.constant 0 : index
    %c0_8 = arith.constant 0 : index
    %7 = vector.load %arg5[%c0_7, %c0_8] : memref<32x128xf32, #tpu.memory_space<vmem>>, vector<32x128xf32>
    %cst_9 = arith.constant dense<0.000000e+00> : vector<8x128xf32>
    %8 = tpu.matmul %1, %7, %cst_9 {dimension_numbers = #tpu.dot_dimension_numbers<[1], [0], [0], [1], [0, 0, 1, 1], [], []>} : vector<8x32xf32>, vector<32x128xf32>, vector<8x128xf32> -> vector<8x128xf32>
    %c0_10 = arith.constant 0 : index
    %c0_11 = arith.constant 0 : index
    %9 = vector.load %arg6[%c0_10, %c0_11] : memref<1x128xf32, #tpu.memory_space<vmem>>, vector<1x128xf32>
    %10 = vector.broadcast %9 : vector<1x128xf32> to vector<8x128xf32>
    %11 = arith.addf %8, %10 : vector<8x128xf32>
    %12 = vector.extract_strided_slice %6 {offsets = [0, 0], sizes = [8, 128], strides = [1, 1]} : vector<8x256xf32> to vector<8x128xf32>
    %c0_12 = arith.constant 0 : index
    %c0_13 = arith.constant 0 : index
    %13 = vector.load %arg7[%c0_12, %c0_13] : memref<8x128xf32, #tpu.memory_space<vmem>>, vector<8x128xf32>
    tpu.vector_store %arg7[%c0_12, %c0_13], %12 {strides = array<i32>} : memref<8x128xf32, #tpu.memory_space<vmem>>, vector<8x128xf32>,
    %14 = vector.extract_strided_slice %6 {offsets = [0, 128], sizes = [8, 128], strides = [1, 1]} : vector<8x256xf32> to vector<8x128xf32>
    %c0_14 = arith.constant 0 : index
    %c0_15 = arith.constant 0 : index
    %15 = vector.load %arg8[%c0_14, %c0_15] : memref<8x128xf32, #tpu.memory_space<vmem>>, vector<8x128xf32>
    tpu.vector_store %arg8[%c0_14, %c0_15], %14 {strides = array<i32>} : memref<8x128xf32, #tpu.memory_space<vmem>>, vector<8x128xf32>,
    %c0_16 = arith.constant 0 : index
    %c0_17 = arith.constant 0 : index
    %16 = vector.load %arg9[%c0_16, %c0_17] : memref<8x128xf32, #tpu.memory_space<vmem>>, vector<8x128xf32>
    tpu.vector_store %arg9[%c0_16, %c0_17], %11 {strides = array<i32>} : memref<8x128xf32, #tpu.memory_space<vmem>>, vector<8x128xf32>,
    return
  }
  func.func @transform_0(%arg0: i32) -> (i32, i32) {
    %c0_i32 = arith.constant 0 : i32
    %c0_i32_0 = arith.constant 0 : i32
    return %arg0, %c0_i32 : i32, i32
  }
  func.func @transform_1(%arg0: i32) -> (i32, i32) {
    %c0_i32 = arith.constant 0 : i32
    %c0_i32_0 = arith.constant 0 : i32
    return %arg0, %c0_i32 : i32, i32
  }
  func.func @transform_2(%arg0: i32) -> (i32, i32) {
    %c0_i32 = arith.constant 0 : i32
    %c0_i32_0 = arith.constant 0 : i32
    %c0_i32_1 = arith.constant 0 : i32
    return %c0_i32, %c0_i32_0 : i32, i32
  }
  func.func @transform_3(%arg0: i32) -> (i32, i32) {
    %c0_i32 = arith.constant 0 : i32
    %c0_i32_0 = arith.constant 0 : i32
    %c0_i32_1 = arith.constant 0 : i32
    return %c0_i32, %c0_i32_0 : i32, i32
  }
  func.func @transform_4(%arg0: i32) -> (i32, i32) {
    %c0_i32 = arith.constant 0 : i32
    %c0_i32_0 = arith.constant 0 : i32
    %c0_i32_1 = arith.constant 0 : i32
    return %c0_i32, %c0_i32_0 : i32, i32
  }
  func.func @transform_5(%arg0: i32) -> (i32, i32) {
    %c0_i32 = arith.constant 0 : i32
    %c0_i32_0 = arith.constant 0 : i32
    %c0_i32_1 = arith.constant 0 : i32
    return %c0_i32, %c0_i32_0 : i32, i32
  }
  func.func @transform_6(%arg0: i32) -> (i32, i32) {
    %c0_i32 = arith.constant 0 : i32
    %c0_i32_0 = arith.constant 0 : i32
    return %arg0, %c0_i32 : i32, i32
  }
  func.func @transform_7(%arg0: i32) -> (i32, i32) {
    %c0_i32 = arith.constant 0 : i32
    %c0_i32_0 = arith.constant 0 : i32
    return %arg0, %c0_i32 : i32, i32
  }
  func.func @transform_8(%arg0: i32) -> (i32, i32) {
    %c0_i32 = arith.constant 0 : i32
    %c0_i32_0 = arith.constant 0 : i32
    return %arg0, %c0_i32 : i32, i32
  }
}

module attributes {stable_mosaic.version = 11 : i64} {
  func.func @_mha_core_kernel(%arg0: i32, %arg1: memref<1x4x8x32xf32, #tpu.memory_space<vmem>>, %arg2: memref<1x4x8x32xf32, #tpu.memory_space<vmem>>, %arg3: memref<1x4x8x32xf32, #tpu.memory_space<vmem>>, %arg4: memref<1x8x32xf32, #tpu.memory_space<vmem>>, %arg5: memref<128x32xf32, #tpu.memory_space<vmem>>, %arg6: memref<1x32xf32, #tpu.memory_space<vmem>>, %arg7: memref<1x32xf32, #tpu.memory_space<vmem>>, %arg8: memref<1x32xf32, #tpu.memory_space<vmem>>, %arg9: memref<1x8x32xf32, #tpu.memory_space<vmem>>) attributes {dimension_semantics = [#tpu.dimension_semantics<parallel>], iteration_bounds = array<i64: 2>, scalar_prefetch = 0 : i64, scratch_operands = 0 : i64, tpu.core_type = #tpu.core_type<tc>, window_params = [{transform_indices = @transform_0, window_bounds = array<i64: 1, 4, 8, 32>}, {transform_indices = @transform_1, window_bounds = array<i64: 1, 4, 8, 32>}, {transform_indices = @transform_2, window_bounds = array<i64: 1, 4, 8, 32>}, {transform_indices = @transform_3, window_bounds = array<i64: 1, 8, 32>}, {pipeline_mode = #tpu.pipeline_mode<synchronous>, transform_indices = @transform_4, window_bounds = array<i64: 128, 32>}, {pipeline_mode = #tpu.pipeline_mode<synchronous>, transform_indices = @transform_5, window_bounds = array<i64: 1, 32>}, {pipeline_mode = #tpu.pipeline_mode<synchronous>, transform_indices = @transform_6, window_bounds = array<i64: 1, 32>}, {pipeline_mode = #tpu.pipeline_mode<synchronous>, transform_indices = @transform_7, window_bounds = array<i64: 1, 32>}, {transform_indices = @transform_8, window_bounds = array<i64: 1, 8, 32>}]} {
    %cst = arith.constant 0.000000e+00 : f32
    %0 = vector.broadcast %cst : f32 to vector<8x32xf32>
    %c0 = arith.constant 0 : index
    %c0_0 = arith.constant 0 : index
    %c0_1 = arith.constant 0 : index
    %c0_2 = arith.constant 0 : index
    %1 = vector.load %arg1[%c0, %c0_0, %c0_1, %c0_2] : memref<1x4x8x32xf32, #tpu.memory_space<vmem>>, vector<1x1x8x32xf32>
    %2 = vector.shape_cast %1 : vector<1x1x8x32xf32> to vector<8x32xf32>
    %c0_3 = arith.constant 0 : index
    %c0_4 = arith.constant 0 : index
    %c0_5 = arith.constant 0 : index
    %c0_6 = arith.constant 0 : index
    %3 = vector.load %arg2[%c0_3, %c0_4, %c0_5, %c0_6] : memref<1x4x8x32xf32, #tpu.memory_space<vmem>>, vector<1x1x8x32xf32>
    %4 = vector.shape_cast %3 : vector<1x1x8x32xf32> to vector<8x32xf32>
    %c0_7 = arith.constant 0 : index
    %c0_8 = arith.constant 0 : index
    %c0_9 = arith.constant 0 : index
    %c0_10 = arith.constant 0 : index
    %5 = vector.load %arg3[%c0_7, %c0_8, %c0_9, %c0_10] : memref<1x4x8x32xf32, #tpu.memory_space<vmem>>, vector<1x1x8x32xf32>
    %6 = vector.shape_cast %5 : vector<1x1x8x32xf32> to vector<8x32xf32>
    %cst_11 = arith.constant dense<0.000000e+00> : vector<8x8xf32>
    %7 = tpu.matmul %2, %4, %cst_11 {dimension_numbers = #tpu.dot_dimension_numbers<[1], [1], [0], [0], [0, 0, 1, 0], [], []>} : vector<8x32xf32>, vector<8x32xf32>, vector<8x8xf32> -> vector<8x8xf32>
    %cst_12 = arith.constant dense<0xFF800000> : vector<8xf32>
    %8 = vector.multi_reduction <maximumf>, %7, %cst_12 [1] : vector<8x8xf32> to vector<8xf32>
    %9 = vector.shape_cast %8 : vector<8xf32> to vector<8x1xf32>
    %10 = vector.broadcast %9 : vector<8x1xf32> to vector<8x8xf32>
    %11 = arith.subf %7, %10 : vector<8x8xf32>
    %12 = math.exp %11 : vector<8x8xf32>
    %cst_13 = arith.constant dense<0.000000e+00> : vector<8xf32>
    %13 = vector.multi_reduction <add>, %12, %cst_13 [1] : vector<8x8xf32> to vector<8xf32>
    %14 = vector.shape_cast %13 : vector<8xf32> to vector<8x1xf32>
    %15 = tpu.reciprocal %14 {approx = true} : vector<8x1xf32> -> vector<8x1xf32>
    %16 = vector.broadcast %15 : vector<8x1xf32> to vector<8x8xf32>
    %17 = arith.mulf %12, %16 : vector<8x8xf32>
    %cst_14 = arith.constant dense<0.000000e+00> : vector<8x32xf32>
    %18 = tpu.matmul %17, %6, %cst_14 {dimension_numbers = #tpu.dot_dimension_numbers<[1], [0], [0], [1], [0, 0, 1, 1], [], []>} : vector<8x8xf32>, vector<8x32xf32>, vector<8x32xf32> -> vector<8x32xf32>
    %c0_15 = arith.constant 0 : index
    %c0_16 = arith.constant 0 : index
    %19 = vector.load %arg5[%c0_15, %c0_16] : memref<128x32xf32, #tpu.memory_space<vmem>>, vector<32x32xf32>
    %cst_17 = arith.constant dense<0.000000e+00> : vector<8x32xf32>
    %20 = tpu.matmul %18, %19, %cst_17 {dimension_numbers = #tpu.dot_dimension_numbers<[1], [0], [0], [1], [0, 0, 1, 1], [], []>} : vector<8x32xf32>, vector<32x32xf32>, vector<8x32xf32> -> vector<8x32xf32>
    %21 = arith.addf %0, %20 : vector<8x32xf32>
    %c0_18 = arith.constant 0 : index
    %c1 = arith.constant 1 : index
    %c0_19 = arith.constant 0 : index
    %c0_20 = arith.constant 0 : index
    %22 = vector.load %arg1[%c0_18, %c1, %c0_19, %c0_20] : memref<1x4x8x32xf32, #tpu.memory_space<vmem>>, vector<1x1x8x32xf32>
    %23 = vector.shape_cast %22 : vector<1x1x8x32xf32> to vector<8x32xf32>
    %c0_21 = arith.constant 0 : index
    %c1_22 = arith.constant 1 : index
    %c0_23 = arith.constant 0 : index
    %c0_24 = arith.constant 0 : index
    %24 = vector.load %arg2[%c0_21, %c1_22, %c0_23, %c0_24] : memref<1x4x8x32xf32, #tpu.memory_space<vmem>>, vector<1x1x8x32xf32>
    %25 = vector.shape_cast %24 : vector<1x1x8x32xf32> to vector<8x32xf32>
    %c0_25 = arith.constant 0 : index
    %c1_26 = arith.constant 1 : index
    %c0_27 = arith.constant 0 : index
    %c0_28 = arith.constant 0 : index
    %26 = vector.load %arg3[%c0_25, %c1_26, %c0_27, %c0_28] : memref<1x4x8x32xf32, #tpu.memory_space<vmem>>, vector<1x1x8x32xf32>
    %27 = vector.shape_cast %26 : vector<1x1x8x32xf32> to vector<8x32xf32>
    %cst_29 = arith.constant dense<0.000000e+00> : vector<8x8xf32>
    %28 = tpu.matmul %23, %25, %cst_29 {dimension_numbers = #tpu.dot_dimension_numbers<[1], [1], [0], [0], [0, 0, 1, 0], [], []>} : vector<8x32xf32>, vector<8x32xf32>, vector<8x8xf32> -> vector<8x8xf32>
    %cst_30 = arith.constant dense<0xFF800000> : vector<8xf32>
    %29 = vector.multi_reduction <maximumf>, %28, %cst_30 [1] : vector<8x8xf32> to vector<8xf32>
    %30 = vector.shape_cast %29 : vector<8xf32> to vector<8x1xf32>
    %31 = vector.broadcast %30 : vector<8x1xf32> to vector<8x8xf32>
    %32 = arith.subf %28, %31 : vector<8x8xf32>
    %33 = math.exp %32 : vector<8x8xf32>
    %cst_31 = arith.constant dense<0.000000e+00> : vector<8xf32>
    %34 = vector.multi_reduction <add>, %33, %cst_31 [1] : vector<8x8xf32> to vector<8xf32>
    %35 = vector.shape_cast %34 : vector<8xf32> to vector<8x1xf32>
    %36 = tpu.reciprocal %35 {approx = true} : vector<8x1xf32> -> vector<8x1xf32>
    %37 = vector.broadcast %36 : vector<8x1xf32> to vector<8x8xf32>
    %38 = arith.mulf %33, %37 : vector<8x8xf32>
    %cst_32 = arith.constant dense<0.000000e+00> : vector<8x32xf32>
    %39 = tpu.matmul %38, %27, %cst_32 {dimension_numbers = #tpu.dot_dimension_numbers<[1], [0], [0], [1], [0, 0, 1, 1], [], []>} : vector<8x8xf32>, vector<8x32xf32>, vector<8x32xf32> -> vector<8x32xf32>
    %c32 = arith.constant 32 : index
    %c0_33 = arith.constant 0 : index
    %40 = vector.load %arg5[%c32, %c0_33] : memref<128x32xf32, #tpu.memory_space<vmem>>, vector<32x32xf32>
    %cst_34 = arith.constant dense<0.000000e+00> : vector<8x32xf32>
    %41 = tpu.matmul %39, %40, %cst_34 {dimension_numbers = #tpu.dot_dimension_numbers<[1], [0], [0], [1], [0, 0, 1, 1], [], []>} : vector<8x32xf32>, vector<32x32xf32>, vector<8x32xf32> -> vector<8x32xf32>
    %42 = arith.addf %21, %41 : vector<8x32xf32>
    %c0_35 = arith.constant 0 : index
    %c2 = arith.constant 2 : index
    %c0_36 = arith.constant 0 : index
    %c0_37 = arith.constant 0 : index
    %43 = vector.load %arg1[%c0_35, %c2, %c0_36, %c0_37] : memref<1x4x8x32xf32, #tpu.memory_space<vmem>>, vector<1x1x8x32xf32>
    %44 = vector.shape_cast %43 : vector<1x1x8x32xf32> to vector<8x32xf32>
    %c0_38 = arith.constant 0 : index
    %c2_39 = arith.constant 2 : index
    %c0_40 = arith.constant 0 : index
    %c0_41 = arith.constant 0 : index
    %45 = vector.load %arg2[%c0_38, %c2_39, %c0_40, %c0_41] : memref<1x4x8x32xf32, #tpu.memory_space<vmem>>, vector<1x1x8x32xf32>
    %46 = vector.shape_cast %45 : vector<1x1x8x32xf32> to vector<8x32xf32>
    %c0_42 = arith.constant 0 : index
    %c2_43 = arith.constant 2 : index
    %c0_44 = arith.constant 0 : index
    %c0_45 = arith.constant 0 : index
    %47 = vector.load %arg3[%c0_42, %c2_43, %c0_44, %c0_45] : memref<1x4x8x32xf32, #tpu.memory_space<vmem>>, vector<1x1x8x32xf32>
    %48 = vector.shape_cast %47 : vector<1x1x8x32xf32> to vector<8x32xf32>
    %cst_46 = arith.constant dense<0.000000e+00> : vector<8x8xf32>
    %49 = tpu.matmul %44, %46, %cst_46 {dimension_numbers = #tpu.dot_dimension_numbers<[1], [1], [0], [0], [0, 0, 1, 0], [], []>} : vector<8x32xf32>, vector<8x32xf32>, vector<8x8xf32> -> vector<8x8xf32>
    %cst_47 = arith.constant dense<0xFF800000> : vector<8xf32>
    %50 = vector.multi_reduction <maximumf>, %49, %cst_47 [1] : vector<8x8xf32> to vector<8xf32>
    %51 = vector.shape_cast %50 : vector<8xf32> to vector<8x1xf32>
    %52 = vector.broadcast %51 : vector<8x1xf32> to vector<8x8xf32>
    %53 = arith.subf %49, %52 : vector<8x8xf32>
    %54 = math.exp %53 : vector<8x8xf32>
    %cst_48 = arith.constant dense<0.000000e+00> : vector<8xf32>
    %55 = vector.multi_reduction <add>, %54, %cst_48 [1] : vector<8x8xf32> to vector<8xf32>
    %56 = vector.shape_cast %55 : vector<8xf32> to vector<8x1xf32>
    %57 = tpu.reciprocal %56 {approx = true} : vector<8x1xf32> -> vector<8x1xf32>
    %58 = vector.broadcast %57 : vector<8x1xf32> to vector<8x8xf32>
    %59 = arith.mulf %54, %58 : vector<8x8xf32>
    %cst_49 = arith.constant dense<0.000000e+00> : vector<8x32xf32>
    %60 = tpu.matmul %59, %48, %cst_49 {dimension_numbers = #tpu.dot_dimension_numbers<[1], [0], [0], [1], [0, 0, 1, 1], [], []>} : vector<8x8xf32>, vector<8x32xf32>, vector<8x32xf32> -> vector<8x32xf32>
    %c64 = arith.constant 64 : index
    %c0_50 = arith.constant 0 : index
    %61 = vector.load %arg5[%c64, %c0_50] : memref<128x32xf32, #tpu.memory_space<vmem>>, vector<32x32xf32>
    %cst_51 = arith.constant dense<0.000000e+00> : vector<8x32xf32>
    %62 = tpu.matmul %60, %61, %cst_51 {dimension_numbers = #tpu.dot_dimension_numbers<[1], [0], [0], [1], [0, 0, 1, 1], [], []>} : vector<8x32xf32>, vector<32x32xf32>, vector<8x32xf32> -> vector<8x32xf32>
    %63 = arith.addf %42, %62 : vector<8x32xf32>
    %c0_52 = arith.constant 0 : index
    %c3 = arith.constant 3 : index
    %c0_53 = arith.constant 0 : index
    %c0_54 = arith.constant 0 : index
    %64 = vector.load %arg1[%c0_52, %c3, %c0_53, %c0_54] : memref<1x4x8x32xf32, #tpu.memory_space<vmem>>, vector<1x1x8x32xf32>
    %65 = vector.shape_cast %64 : vector<1x1x8x32xf32> to vector<8x32xf32>
    %c0_55 = arith.constant 0 : index
    %c3_56 = arith.constant 3 : index
    %c0_57 = arith.constant 0 : index
    %c0_58 = arith.constant 0 : index
    %66 = vector.load %arg2[%c0_55, %c3_56, %c0_57, %c0_58] : memref<1x4x8x32xf32, #tpu.memory_space<vmem>>, vector<1x1x8x32xf32>
    %67 = vector.shape_cast %66 : vector<1x1x8x32xf32> to vector<8x32xf32>
    %c0_59 = arith.constant 0 : index
    %c3_60 = arith.constant 3 : index
    %c0_61 = arith.constant 0 : index
    %c0_62 = arith.constant 0 : index
    %68 = vector.load %arg3[%c0_59, %c3_60, %c0_61, %c0_62] : memref<1x4x8x32xf32, #tpu.memory_space<vmem>>, vector<1x1x8x32xf32>
    %69 = vector.shape_cast %68 : vector<1x1x8x32xf32> to vector<8x32xf32>
    %cst_63 = arith.constant dense<0.000000e+00> : vector<8x8xf32>
    %70 = tpu.matmul %65, %67, %cst_63 {dimension_numbers = #tpu.dot_dimension_numbers<[1], [1], [0], [0], [0, 0, 1, 0], [], []>} : vector<8x32xf32>, vector<8x32xf32>, vector<8x8xf32> -> vector<8x8xf32>
    %cst_64 = arith.constant dense<0xFF800000> : vector<8xf32>
    %71 = vector.multi_reduction <maximumf>, %70, %cst_64 [1] : vector<8x8xf32> to vector<8xf32>
    %72 = vector.shape_cast %71 : vector<8xf32> to vector<8x1xf32>
    %73 = vector.broadcast %72 : vector<8x1xf32> to vector<8x8xf32>
    %74 = arith.subf %70, %73 : vector<8x8xf32>
    %75 = math.exp %74 : vector<8x8xf32>
    %cst_65 = arith.constant dense<0.000000e+00> : vector<8xf32>
    %76 = vector.multi_reduction <add>, %75, %cst_65 [1] : vector<8x8xf32> to vector<8xf32>
    %77 = vector.shape_cast %76 : vector<8xf32> to vector<8x1xf32>
    %78 = tpu.reciprocal %77 {approx = true} : vector<8x1xf32> -> vector<8x1xf32>
    %79 = vector.broadcast %78 : vector<8x1xf32> to vector<8x8xf32>
    %80 = arith.mulf %75, %79 : vector<8x8xf32>
    %cst_66 = arith.constant dense<0.000000e+00> : vector<8x32xf32>
    %81 = tpu.matmul %80, %69, %cst_66 {dimension_numbers = #tpu.dot_dimension_numbers<[1], [0], [0], [1], [0, 0, 1, 1], [], []>} : vector<8x8xf32>, vector<8x32xf32>, vector<8x32xf32> -> vector<8x32xf32>
    %c96 = arith.constant 96 : index
    %c0_67 = arith.constant 0 : index
    %82 = vector.load %arg5[%c96, %c0_67] : memref<128x32xf32, #tpu.memory_space<vmem>>, vector<32x32xf32>
    %cst_68 = arith.constant dense<0.000000e+00> : vector<8x32xf32>
    %83 = tpu.matmul %81, %82, %cst_68 {dimension_numbers = #tpu.dot_dimension_numbers<[1], [0], [0], [1], [0, 0, 1, 1], [], []>} : vector<8x32xf32>, vector<32x32xf32>, vector<8x32xf32> -> vector<8x32xf32>
    %84 = arith.addf %63, %83 : vector<8x32xf32>
    %c0_69 = arith.constant 0 : index
    %c0_70 = arith.constant 0 : index
    %85 = vector.load %arg6[%c0_69, %c0_70] : memref<1x32xf32, #tpu.memory_space<vmem>>, vector<1x32xf32>
    %86 = vector.broadcast %85 : vector<1x32xf32> to vector<8x32xf32>
    %87 = arith.addf %84, %86 : vector<8x32xf32>
    %c0_71 = arith.constant 0 : index
    %c0_72 = arith.constant 0 : index
    %c0_73 = arith.constant 0 : index
    %88 = vector.load %arg4[%c0_71, %c0_72, %c0_73] : memref<1x8x32xf32, #tpu.memory_space<vmem>>, vector<1x8x32xf32>
    %89 = vector.shape_cast %88 : vector<1x8x32xf32> to vector<8x32xf32>
    %90 = arith.addf %87, %89 : vector<8x32xf32>
    %cst_74 = arith.constant dense<0.000000e+00> : vector<8xf32>
    %91 = vector.multi_reduction <add>, %90, %cst_74 [1] : vector<8x32xf32> to vector<8xf32>
    %92 = vector.shape_cast %91 : vector<8xf32> to vector<8x1xf32>
    %cst_75 = arith.constant 3.200000e+01 : f32
    %93 = vector.broadcast %cst_75 : f32 to vector<8x1xf32>
    %94 = arith.divf %92, %93 : vector<8x1xf32>
    %95 = vector.broadcast %94 : vector<8x1xf32> to vector<8x32xf32>
    %96 = arith.subf %90, %95 : vector<8x32xf32>
    %97 = arith.mulf %96, %96 : vector<8x32xf32>
    %cst_76 = arith.constant dense<0.000000e+00> : vector<8xf32>
    %98 = vector.multi_reduction <add>, %97, %cst_76 [1] : vector<8x32xf32> to vector<8xf32>
    %99 = vector.shape_cast %98 : vector<8xf32> to vector<8x1xf32>
    %cst_77 = arith.constant 3.200000e+01 : f32
    %100 = vector.broadcast %cst_77 : f32 to vector<8x1xf32>
    %101 = arith.divf %99, %100 : vector<8x1xf32>
    %102 = vector.broadcast %94 : vector<8x1xf32> to vector<8x32xf32>
    %103 = arith.subf %90, %102 : vector<8x32xf32>
    %cst_78 = arith.constant 9.99999974E-6 : f32
    %104 = vector.broadcast %cst_78 : f32 to vector<8x1xf32>
    %105 = arith.addf %101, %104 : vector<8x1xf32>
    %106 = math.rsqrt %105 : vector<8x1xf32>
    %107 = vector.broadcast %106 : vector<8x1xf32> to vector<8x32xf32>
    %108 = arith.mulf %103, %107 : vector<8x32xf32>
    %c0_79 = arith.constant 0 : index
    %c0_80 = arith.constant 0 : index
    %109 = vector.load %arg7[%c0_79, %c0_80] : memref<1x32xf32, #tpu.memory_space<vmem>>, vector<1x32xf32>
    %110 = vector.broadcast %109 : vector<1x32xf32> to vector<8x32xf32>
    %111 = arith.mulf %108, %110 : vector<8x32xf32>
    %c0_81 = arith.constant 0 : index
    %c0_82 = arith.constant 0 : index
    %112 = vector.load %arg8[%c0_81, %c0_82] : memref<1x32xf32, #tpu.memory_space<vmem>>, vector<1x32xf32>
    %113 = vector.broadcast %112 : vector<1x32xf32> to vector<8x32xf32>
    %114 = arith.addf %111, %113 : vector<8x32xf32>
    %c0_83 = arith.constant 0 : index
    %c0_84 = arith.constant 0 : index
    %c0_85 = arith.constant 0 : index
    %115 = vector.load %arg9[%c0_83, %c0_84, %c0_85] : memref<1x8x32xf32, #tpu.memory_space<vmem>>, vector<1x8x32xf32>
    %116 = vector.shape_cast %115 : vector<1x8x32xf32> to vector<8x32xf32>
    %117 = vector.shape_cast %114 : vector<8x32xf32> to vector<1x8x32xf32>
    tpu.vector_store %arg9[%c0_83, %c0_84, %c0_85], %117 {strides = array<i32>} : memref<1x8x32xf32, #tpu.memory_space<vmem>>, vector<1x8x32xf32>,
    return
  }
  func.func @transform_0(%arg0: i32) -> (i32, i32, i32, i32) {
    %c0_i32 = arith.constant 0 : i32
    %c0_i32_0 = arith.constant 0 : i32
    %c0_i32_1 = arith.constant 0 : i32
    %c0_i32_2 = arith.constant 0 : i32
    return %arg0, %c0_i32, %c0_i32_0, %c0_i32_1 : i32, i32, i32, i32
  }
  func.func @transform_1(%arg0: i32) -> (i32, i32, i32, i32) {
    %c0_i32 = arith.constant 0 : i32
    %c0_i32_0 = arith.constant 0 : i32
    %c0_i32_1 = arith.constant 0 : i32
    %c0_i32_2 = arith.constant 0 : i32
    return %arg0, %c0_i32, %c0_i32_0, %c0_i32_1 : i32, i32, i32, i32
  }
  func.func @transform_2(%arg0: i32) -> (i32, i32, i32, i32) {
    %c0_i32 = arith.constant 0 : i32
    %c0_i32_0 = arith.constant 0 : i32
    %c0_i32_1 = arith.constant 0 : i32
    %c0_i32_2 = arith.constant 0 : i32
    return %arg0, %c0_i32, %c0_i32_0, %c0_i32_1 : i32, i32, i32, i32
  }
  func.func @transform_3(%arg0: i32) -> (i32, i32, i32) {
    %c0_i32 = arith.constant 0 : i32
    %c0_i32_0 = arith.constant 0 : i32
    %c0_i32_1 = arith.constant 0 : i32
    return %arg0, %c0_i32, %c0_i32_0 : i32, i32, i32
  }
  func.func @transform_4(%arg0: i32) -> (i32, i32) {
    %c0_i32 = arith.constant 0 : i32
    %c0_i32_0 = arith.constant 0 : i32
    %c0_i32_1 = arith.constant 0 : i32
    return %c0_i32, %c0_i32_0 : i32, i32
  }
  func.func @transform_5(%arg0: i32) -> (i32, i32) {
    %c0_i32 = arith.constant 0 : i32
    %c0_i32_0 = arith.constant 0 : i32
    %c0_i32_1 = arith.constant 0 : i32
    return %c0_i32, %c0_i32_0 : i32, i32
  }
  func.func @transform_6(%arg0: i32) -> (i32, i32) {
    %c0_i32 = arith.constant 0 : i32
    %c0_i32_0 = arith.constant 0 : i32
    %c0_i32_1 = arith.constant 0 : i32
    return %c0_i32, %c0_i32_0 : i32, i32
  }
  func.func @transform_7(%arg0: i32) -> (i32, i32) {
    %c0_i32 = arith.constant 0 : i32
    %c0_i32_0 = arith.constant 0 : i32
    %c0_i32_1 = arith.constant 0 : i32
    return %c0_i32, %c0_i32_0 : i32, i32
  }
  func.func @transform_8(%arg0: i32) -> (i32, i32, i32) {
    %c0_i32 = arith.constant 0 : i32
    %c0_i32_0 = arith.constant 0 : i32
    %c0_i32_1 = arith.constant 0 : i32
    return %arg0, %c0_i32, %c0_i32_0 : i32, i32, i32
  }
}

module attributes {stable_mosaic.version = 11 : i64} {
  func.func @_mha_core_kernel(%arg0: i32, %arg1: memref<1x4x8x32xf32, #tpu.memory_space<vmem>>, %arg2: memref<1x4x8x32xf32, #tpu.memory_space<vmem>>, %arg3: memref<1x4x8x32xf32, #tpu.memory_space<vmem>>, %arg4: memref<1x8x32xf32, #tpu.memory_space<vmem>>, %arg5: memref<128x32xf32, #tpu.memory_space<vmem>>, %arg6: memref<1x32xf32, #tpu.memory_space<vmem>>, %arg7: memref<1x32xf32, #tpu.memory_space<vmem>>, %arg8: memref<1x32xf32, #tpu.memory_space<vmem>>, %arg9: memref<1x8x32xf32, #tpu.memory_space<vmem>>) attributes {dimension_semantics = [#tpu.dimension_semantics<parallel>], iteration_bounds = array<i64: 2>, scalar_prefetch = 0 : i64, scratch_operands = 0 : i64, tpu.core_type = #tpu.core_type<tc>, window_params = [{transform_indices = @transform_0, window_bounds = array<i64: 1, 4, 8, 32>}, {transform_indices = @transform_1, window_bounds = array<i64: 1, 4, 8, 32>}, {transform_indices = @transform_2, window_bounds = array<i64: 1, 4, 8, 32>}, {transform_indices = @transform_3, window_bounds = array<i64: 1, 8, 32>}, {pipeline_mode = #tpu.pipeline_mode<synchronous>, transform_indices = @transform_4, window_bounds = array<i64: 128, 32>}, {pipeline_mode = #tpu.pipeline_mode<synchronous>, transform_indices = @transform_5, window_bounds = array<i64: 1, 32>}, {pipeline_mode = #tpu.pipeline_mode<synchronous>, transform_indices = @transform_6, window_bounds = array<i64: 1, 32>}, {pipeline_mode = #tpu.pipeline_mode<synchronous>, transform_indices = @transform_7, window_bounds = array<i64: 1, 32>}, {transform_indices = @transform_8, window_bounds = array<i64: 1, 8, 32>}]} {
    %0 = tpu.iota {dimensions = array<i32: 0>} : vector<8x8xi32>
    %1 = tpu.iota {dimensions = array<i32: 1>} : vector<8x8xi32>
    %2 = arith.cmpi sgt, %1, %0 : vector<8x8xi32>
    %cst = arith.constant 0.000000e+00 : f32
    %3 = vector.broadcast %cst : f32 to vector<8x32xf32>
    %c0 = arith.constant 0 : index
    %c0_0 = arith.constant 0 : index
    %c0_1 = arith.constant 0 : index
    %c0_2 = arith.constant 0 : index
    %4 = vector.load %arg1[%c0, %c0_0, %c0_1, %c0_2] : memref<1x4x8x32xf32, #tpu.memory_space<vmem>>, vector<1x1x8x32xf32>
    %5 = vector.shape_cast %4 : vector<1x1x8x32xf32> to vector<8x32xf32>
    %c0_3 = arith.constant 0 : index
    %c0_4 = arith.constant 0 : index
    %c0_5 = arith.constant 0 : index
    %c0_6 = arith.constant 0 : index
    %6 = vector.load %arg2[%c0_3, %c0_4, %c0_5, %c0_6] : memref<1x4x8x32xf32, #tpu.memory_space<vmem>>, vector<1x1x8x32xf32>
    %7 = vector.shape_cast %6 : vector<1x1x8x32xf32> to vector<8x32xf32>
    %c0_7 = arith.constant 0 : index
    %c0_8 = arith.constant 0 : index
    %c0_9 = arith.constant 0 : index
    %c0_10 = arith.constant 0 : index
    %8 = vector.load %arg3[%c0_7, %c0_8, %c0_9, %c0_10] : memref<1x4x8x32xf32, #tpu.memory_space<vmem>>, vector<1x1x8x32xf32>
    %9 = vector.shape_cast %8 : vector<1x1x8x32xf32> to vector<8x32xf32>
    %cst_11 = arith.constant dense<0.000000e+00> : vector<8x8xf32>
    %10 = tpu.matmul %5, %7, %cst_11 {dimension_numbers = #tpu.dot_dimension_numbers<[1], [1], [0], [0], [0, 0, 1, 0], [], []>} : vector<8x32xf32>, vector<8x32xf32>, vector<8x8xf32> -> vector<8x8xf32>
    %cst_12 = arith.constant 0xFF800000 : f32
    %11 = vector.broadcast %cst_12 : f32 to vector<8x8xf32>
    %12 = arith.select %2, %11, %10 : vector<8x8xi1>, vector<8x8xf32>
    %cst_13 = arith.constant dense<0xFF800000> : vector<8xf32>
    %13 = vector.multi_reduction <maximumf>, %12, %cst_13 [1] : vector<8x8xf32> to vector<8xf32>
    %14 = vector.shape_cast %13 : vector<8xf32> to vector<8x1xf32>
    %15 = vector.broadcast %14 : vector<8x1xf32> to vector<8x8xf32>
    %16 = arith.subf %12, %15 : vector<8x8xf32>
    %17 = math.exp %16 : vector<8x8xf32>
    %cst_14 = arith.constant dense<0.000000e+00> : vector<8xf32>
    %18 = vector.multi_reduction <add>, %17, %cst_14 [1] : vector<8x8xf32> to vector<8xf32>
    %19 = vector.shape_cast %18 : vector<8xf32> to vector<8x1xf32>
    %20 = tpu.reciprocal %19 {approx = true} : vector<8x1xf32> -> vector<8x1xf32>
    %21 = vector.broadcast %20 : vector<8x1xf32> to vector<8x8xf32>
    %22 = arith.mulf %17, %21 : vector<8x8xf32>
    %cst_15 = arith.constant dense<0.000000e+00> : vector<8x32xf32>
    %23 = tpu.matmul %22, %9, %cst_15 {dimension_numbers = #tpu.dot_dimension_numbers<[1], [0], [0], [1], [0, 0, 1, 1], [], []>} : vector<8x8xf32>, vector<8x32xf32>, vector<8x32xf32> -> vector<8x32xf32>
    %c0_16 = arith.constant 0 : index
    %c0_17 = arith.constant 0 : index
    %24 = vector.load %arg5[%c0_16, %c0_17] : memref<128x32xf32, #tpu.memory_space<vmem>>, vector<32x32xf32>
    %cst_18 = arith.constant dense<0.000000e+00> : vector<8x32xf32>
    %25 = tpu.matmul %23, %24, %cst_18 {dimension_numbers = #tpu.dot_dimension_numbers<[1], [0], [0], [1], [0, 0, 1, 1], [], []>} : vector<8x32xf32>, vector<32x32xf32>, vector<8x32xf32> -> vector<8x32xf32>
    %26 = arith.addf %3, %25 : vector<8x32xf32>
    %c0_19 = arith.constant 0 : index
    %c1 = arith.constant 1 : index
    %c0_20 = arith.constant 0 : index
    %c0_21 = arith.constant 0 : index
    %27 = vector.load %arg1[%c0_19, %c1, %c0_20, %c0_21] : memref<1x4x8x32xf32, #tpu.memory_space<vmem>>, vector<1x1x8x32xf32>
    %28 = vector.shape_cast %27 : vector<1x1x8x32xf32> to vector<8x32xf32>
    %c0_22 = arith.constant 0 : index
    %c1_23 = arith.constant 1 : index
    %c0_24 = arith.constant 0 : index
    %c0_25 = arith.constant 0 : index
    %29 = vector.load %arg2[%c0_22, %c1_23, %c0_24, %c0_25] : memref<1x4x8x32xf32, #tpu.memory_space<vmem>>, vector<1x1x8x32xf32>
    %30 = vector.shape_cast %29 : vector<1x1x8x32xf32> to vector<8x32xf32>
    %c0_26 = arith.constant 0 : index
    %c1_27 = arith.constant 1 : index
    %c0_28 = arith.constant 0 : index
    %c0_29 = arith.constant 0 : index
    %31 = vector.load %arg3[%c0_26, %c1_27, %c0_28, %c0_29] : memref<1x4x8x32xf32, #tpu.memory_space<vmem>>, vector<1x1x8x32xf32>
    %32 = vector.shape_cast %31 : vector<1x1x8x32xf32> to vector<8x32xf32>
    %cst_30 = arith.constant dense<0.000000e+00> : vector<8x8xf32>
    %33 = tpu.matmul %28, %30, %cst_30 {dimension_numbers = #tpu.dot_dimension_numbers<[1], [1], [0], [0], [0, 0, 1, 0], [], []>} : vector<8x32xf32>, vector<8x32xf32>, vector<8x8xf32> -> vector<8x8xf32>
    %cst_31 = arith.constant 0xFF800000 : f32
    %34 = vector.broadcast %cst_31 : f32 to vector<8x8xf32>
    %35 = arith.select %2, %34, %33 : vector<8x8xi1>, vector<8x8xf32>
    %cst_32 = arith.constant dense<0xFF800000> : vector<8xf32>
    %36 = vector.multi_reduction <maximumf>, %35, %cst_32 [1] : vector<8x8xf32> to vector<8xf32>
    %37 = vector.shape_cast %36 : vector<8xf32> to vector<8x1xf32>
    %38 = vector.broadcast %37 : vector<8x1xf32> to vector<8x8xf32>
    %39 = arith.subf %35, %38 : vector<8x8xf32>
    %40 = math.exp %39 : vector<8x8xf32>
    %cst_33 = arith.constant dense<0.000000e+00> : vector<8xf32>
    %41 = vector.multi_reduction <add>, %40, %cst_33 [1] : vector<8x8xf32> to vector<8xf32>
    %42 = vector.shape_cast %41 : vector<8xf32> to vector<8x1xf32>
    %43 = tpu.reciprocal %42 {approx = true} : vector<8x1xf32> -> vector<8x1xf32>
    %44 = vector.broadcast %43 : vector<8x1xf32> to vector<8x8xf32>
    %45 = arith.mulf %40, %44 : vector<8x8xf32>
    %cst_34 = arith.constant dense<0.000000e+00> : vector<8x32xf32>
    %46 = tpu.matmul %45, %32, %cst_34 {dimension_numbers = #tpu.dot_dimension_numbers<[1], [0], [0], [1], [0, 0, 1, 1], [], []>} : vector<8x8xf32>, vector<8x32xf32>, vector<8x32xf32> -> vector<8x32xf32>
    %c32 = arith.constant 32 : index
    %c0_35 = arith.constant 0 : index
    %47 = vector.load %arg5[%c32, %c0_35] : memref<128x32xf32, #tpu.memory_space<vmem>>, vector<32x32xf32>
    %cst_36 = arith.constant dense<0.000000e+00> : vector<8x32xf32>
    %48 = tpu.matmul %46, %47, %cst_36 {dimension_numbers = #tpu.dot_dimension_numbers<[1], [0], [0], [1], [0, 0, 1, 1], [], []>} : vector<8x32xf32>, vector<32x32xf32>, vector<8x32xf32> -> vector<8x32xf32>
    %49 = arith.addf %26, %48 : vector<8x32xf32>
    %c0_37 = arith.constant 0 : index
    %c2 = arith.constant 2 : index
    %c0_38 = arith.constant 0 : index
    %c0_39 = arith.constant 0 : index
    %50 = vector.load %arg1[%c0_37, %c2, %c0_38, %c0_39] : memref<1x4x8x32xf32, #tpu.memory_space<vmem>>, vector<1x1x8x32xf32>
    %51 = vector.shape_cast %50 : vector<1x1x8x32xf32> to vector<8x32xf32>
    %c0_40 = arith.constant 0 : index
    %c2_41 = arith.constant 2 : index
    %c0_42 = arith.constant 0 : index
    %c0_43 = arith.constant 0 : index
    %52 = vector.load %arg2[%c0_40, %c2_41, %c0_42, %c0_43] : memref<1x4x8x32xf32, #tpu.memory_space<vmem>>, vector<1x1x8x32xf32>
    %53 = vector.shape_cast %52 : vector<1x1x8x32xf32> to vector<8x32xf32>
    %c0_44 = arith.constant 0 : index
    %c2_45 = arith.constant 2 : index
    %c0_46 = arith.constant 0 : index
    %c0_47 = arith.constant 0 : index
    %54 = vector.load %arg3[%c0_44, %c2_45, %c0_46, %c0_47] : memref<1x4x8x32xf32, #tpu.memory_space<vmem>>, vector<1x1x8x32xf32>
    %55 = vector.shape_cast %54 : vector<1x1x8x32xf32> to vector<8x32xf32>
    %cst_48 = arith.constant dense<0.000000e+00> : vector<8x8xf32>
    %56 = tpu.matmul %51, %53, %cst_48 {dimension_numbers = #tpu.dot_dimension_numbers<[1], [1], [0], [0], [0, 0, 1, 0], [], []>} : vector<8x32xf32>, vector<8x32xf32>, vector<8x8xf32> -> vector<8x8xf32>
    %cst_49 = arith.constant 0xFF800000 : f32
    %57 = vector.broadcast %cst_49 : f32 to vector<8x8xf32>
    %58 = arith.select %2, %57, %56 : vector<8x8xi1>, vector<8x8xf32>
    %cst_50 = arith.constant dense<0xFF800000> : vector<8xf32>
    %59 = vector.multi_reduction <maximumf>, %58, %cst_50 [1] : vector<8x8xf32> to vector<8xf32>
    %60 = vector.shape_cast %59 : vector<8xf32> to vector<8x1xf32>
    %61 = vector.broadcast %60 : vector<8x1xf32> to vector<8x8xf32>
    %62 = arith.subf %58, %61 : vector<8x8xf32>
    %63 = math.exp %62 : vector<8x8xf32>
    %cst_51 = arith.constant dense<0.000000e+00> : vector<8xf32>
    %64 = vector.multi_reduction <add>, %63, %cst_51 [1] : vector<8x8xf32> to vector<8xf32>
    %65 = vector.shape_cast %64 : vector<8xf32> to vector<8x1xf32>
    %66 = tpu.reciprocal %65 {approx = true} : vector<8x1xf32> -> vector<8x1xf32>
    %67 = vector.broadcast %66 : vector<8x1xf32> to vector<8x8xf32>
    %68 = arith.mulf %63, %67 : vector<8x8xf32>
    %cst_52 = arith.constant dense<0.000000e+00> : vector<8x32xf32>
    %69 = tpu.matmul %68, %55, %cst_52 {dimension_numbers = #tpu.dot_dimension_numbers<[1], [0], [0], [1], [0, 0, 1, 1], [], []>} : vector<8x8xf32>, vector<8x32xf32>, vector<8x32xf32> -> vector<8x32xf32>
    %c64 = arith.constant 64 : index
    %c0_53 = arith.constant 0 : index
    %70 = vector.load %arg5[%c64, %c0_53] : memref<128x32xf32, #tpu.memory_space<vmem>>, vector<32x32xf32>
    %cst_54 = arith.constant dense<0.000000e+00> : vector<8x32xf32>
    %71 = tpu.matmul %69, %70, %cst_54 {dimension_numbers = #tpu.dot_dimension_numbers<[1], [0], [0], [1], [0, 0, 1, 1], [], []>} : vector<8x32xf32>, vector<32x32xf32>, vector<8x32xf32> -> vector<8x32xf32>
    %72 = arith.addf %49, %71 : vector<8x32xf32>
    %c0_55 = arith.constant 0 : index
    %c3 = arith.constant 3 : index
    %c0_56 = arith.constant 0 : index
    %c0_57 = arith.constant 0 : index
    %73 = vector.load %arg1[%c0_55, %c3, %c0_56, %c0_57] : memref<1x4x8x32xf32, #tpu.memory_space<vmem>>, vector<1x1x8x32xf32>
    %74 = vector.shape_cast %73 : vector<1x1x8x32xf32> to vector<8x32xf32>
    %c0_58 = arith.constant 0 : index
    %c3_59 = arith.constant 3 : index
    %c0_60 = arith.constant 0 : index
    %c0_61 = arith.constant 0 : index
    %75 = vector.load %arg2[%c0_58, %c3_59, %c0_60, %c0_61] : memref<1x4x8x32xf32, #tpu.memory_space<vmem>>, vector<1x1x8x32xf32>
    %76 = vector.shape_cast %75 : vector<1x1x8x32xf32> to vector<8x32xf32>
    %c0_62 = arith.constant 0 : index
    %c3_63 = arith.constant 3 : index
    %c0_64 = arith.constant 0 : index
    %c0_65 = arith.constant 0 : index
    %77 = vector.load %arg3[%c0_62, %c3_63, %c0_64, %c0_65] : memref<1x4x8x32xf32, #tpu.memory_space<vmem>>, vector<1x1x8x32xf32>
    %78 = vector.shape_cast %77 : vector<1x1x8x32xf32> to vector<8x32xf32>
    %cst_66 = arith.constant dense<0.000000e+00> : vector<8x8xf32>
    %79 = tpu.matmul %74, %76, %cst_66 {dimension_numbers = #tpu.dot_dimension_numbers<[1], [1], [0], [0], [0, 0, 1, 0], [], []>} : vector<8x32xf32>, vector<8x32xf32>, vector<8x8xf32> -> vector<8x8xf32>
    %cst_67 = arith.constant 0xFF800000 : f32
    %80 = vector.broadcast %cst_67 : f32 to vector<8x8xf32>
    %81 = arith.select %2, %80, %79 : vector<8x8xi1>, vector<8x8xf32>
    %cst_68 = arith.constant dense<0xFF800000> : vector<8xf32>
    %82 = vector.multi_reduction <maximumf>, %81, %cst_68 [1] : vector<8x8xf32> to vector<8xf32>
    %83 = vector.shape_cast %82 : vector<8xf32> to vector<8x1xf32>
    %84 = vector.broadcast %83 : vector<8x1xf32> to vector<8x8xf32>
    %85 = arith.subf %81, %84 : vector<8x8xf32>
    %86 = math.exp %85 : vector<8x8xf32>
    %cst_69 = arith.constant dense<0.000000e+00> : vector<8xf32>
    %87 = vector.multi_reduction <add>, %86, %cst_69 [1] : vector<8x8xf32> to vector<8xf32>
    %88 = vector.shape_cast %87 : vector<8xf32> to vector<8x1xf32>
    %89 = tpu.reciprocal %88 {approx = true} : vector<8x1xf32> -> vector<8x1xf32>
    %90 = vector.broadcast %89 : vector<8x1xf32> to vector<8x8xf32>
    %91 = arith.mulf %86, %90 : vector<8x8xf32>
    %cst_70 = arith.constant dense<0.000000e+00> : vector<8x32xf32>
    %92 = tpu.matmul %91, %78, %cst_70 {dimension_numbers = #tpu.dot_dimension_numbers<[1], [0], [0], [1], [0, 0, 1, 1], [], []>} : vector<8x8xf32>, vector<8x32xf32>, vector<8x32xf32> -> vector<8x32xf32>
    %c96 = arith.constant 96 : index
    %c0_71 = arith.constant 0 : index
    %93 = vector.load %arg5[%c96, %c0_71] : memref<128x32xf32, #tpu.memory_space<vmem>>, vector<32x32xf32>
    %cst_72 = arith.constant dense<0.000000e+00> : vector<8x32xf32>
    %94 = tpu.matmul %92, %93, %cst_72 {dimension_numbers = #tpu.dot_dimension_numbers<[1], [0], [0], [1], [0, 0, 1, 1], [], []>} : vector<8x32xf32>, vector<32x32xf32>, vector<8x32xf32> -> vector<8x32xf32>
    %95 = arith.addf %72, %94 : vector<8x32xf32>
    %c0_73 = arith.constant 0 : index
    %c0_74 = arith.constant 0 : index
    %96 = vector.load %arg6[%c0_73, %c0_74] : memref<1x32xf32, #tpu.memory_space<vmem>>, vector<1x32xf32>
    %97 = vector.broadcast %96 : vector<1x32xf32> to vector<8x32xf32>
    %98 = arith.addf %95, %97 : vector<8x32xf32>
    %c0_75 = arith.constant 0 : index
    %c0_76 = arith.constant 0 : index
    %c0_77 = arith.constant 0 : index
    %99 = vector.load %arg4[%c0_75, %c0_76, %c0_77] : memref<1x8x32xf32, #tpu.memory_space<vmem>>, vector<1x8x32xf32>
    %100 = vector.shape_cast %99 : vector<1x8x32xf32> to vector<8x32xf32>
    %101 = arith.addf %98, %100 : vector<8x32xf32>
    %cst_78 = arith.constant dense<0.000000e+00> : vector<8xf32>
    %102 = vector.multi_reduction <add>, %101, %cst_78 [1] : vector<8x32xf32> to vector<8xf32>
    %103 = vector.shape_cast %102 : vector<8xf32> to vector<8x1xf32>
    %cst_79 = arith.constant 3.200000e+01 : f32
    %104 = vector.broadcast %cst_79 : f32 to vector<8x1xf32>
    %105 = arith.divf %103, %104 : vector<8x1xf32>
    %106 = vector.broadcast %105 : vector<8x1xf32> to vector<8x32xf32>
    %107 = arith.subf %101, %106 : vector<8x32xf32>
    %108 = arith.mulf %107, %107 : vector<8x32xf32>
    %cst_80 = arith.constant dense<0.000000e+00> : vector<8xf32>
    %109 = vector.multi_reduction <add>, %108, %cst_80 [1] : vector<8x32xf32> to vector<8xf32>
    %110 = vector.shape_cast %109 : vector<8xf32> to vector<8x1xf32>
    %cst_81 = arith.constant 3.200000e+01 : f32
    %111 = vector.broadcast %cst_81 : f32 to vector<8x1xf32>
    %112 = arith.divf %110, %111 : vector<8x1xf32>
    %113 = vector.broadcast %105 : vector<8x1xf32> to vector<8x32xf32>
    %114 = arith.subf %101, %113 : vector<8x32xf32>
    %cst_82 = arith.constant 9.99999974E-6 : f32
    %115 = vector.broadcast %cst_82 : f32 to vector<8x1xf32>
    %116 = arith.addf %112, %115 : vector<8x1xf32>
    %117 = math.rsqrt %116 : vector<8x1xf32>
    %118 = vector.broadcast %117 : vector<8x1xf32> to vector<8x32xf32>
    %119 = arith.mulf %114, %118 : vector<8x32xf32>
    %c0_83 = arith.constant 0 : index
    %c0_84 = arith.constant 0 : index
    %120 = vector.load %arg7[%c0_83, %c0_84] : memref<1x32xf32, #tpu.memory_space<vmem>>, vector<1x32xf32>
    %121 = vector.broadcast %120 : vector<1x32xf32> to vector<8x32xf32>
    %122 = arith.mulf %119, %121 : vector<8x32xf32>
    %c0_85 = arith.constant 0 : index
    %c0_86 = arith.constant 0 : index
    %123 = vector.load %arg8[%c0_85, %c0_86] : memref<1x32xf32, #tpu.memory_space<vmem>>, vector<1x32xf32>
    %124 = vector.broadcast %123 : vector<1x32xf32> to vector<8x32xf32>
    %125 = arith.addf %122, %124 : vector<8x32xf32>
    %c0_87 = arith.constant 0 : index
    %c0_88 = arith.constant 0 : index
    %c0_89 = arith.constant 0 : index
    %126 = vector.load %arg9[%c0_87, %c0_88, %c0_89] : memref<1x8x32xf32, #tpu.memory_space<vmem>>, vector<1x8x32xf32>
    %127 = vector.shape_cast %126 : vector<1x8x32xf32> to vector<8x32xf32>
    %128 = vector.shape_cast %125 : vector<8x32xf32> to vector<1x8x32xf32>
    tpu.vector_store %arg9[%c0_87, %c0_88, %c0_89], %128 {strides = array<i32>} : memref<1x8x32xf32, #tpu.memory_space<vmem>>, vector<1x8x32xf32>,
    return
  }
  func.func @transform_0(%arg0: i32) -> (i32, i32, i32, i32) {
    %c0_i32 = arith.constant 0 : i32
    %c0_i32_0 = arith.constant 0 : i32
    %c0_i32_1 = arith.constant 0 : i32
    %c0_i32_2 = arith.constant 0 : i32
    return %arg0, %c0_i32, %c0_i32_0, %c0_i32_1 : i32, i32, i32, i32
  }
  func.func @transform_1(%arg0: i32) -> (i32, i32, i32, i32) {
    %c0_i32 = arith.constant 0 : i32
    %c0_i32_0 = arith.constant 0 : i32
    %c0_i32_1 = arith.constant 0 : i32
    %c0_i32_2 = arith.constant 0 : i32
    return %arg0, %c0_i32, %c0_i32_0, %c0_i32_1 : i32, i32, i32, i32
  }
  func.func @transform_2(%arg0: i32) -> (i32, i32, i32, i32) {
    %c0_i32 = arith.constant 0 : i32
    %c0_i32_0 = arith.constant 0 : i32
    %c0_i32_1 = arith.constant 0 : i32
    %c0_i32_2 = arith.constant 0 : i32
    return %arg0, %c0_i32, %c0_i32_0, %c0_i32_1 : i32, i32, i32, i32
  }
  func.func @transform_3(%arg0: i32) -> (i32, i32, i32) {
    %c0_i32 = arith.constant 0 : i32
    %c0_i32_0 = arith.constant 0 : i32
    %c0_i32_1 = arith.constant 0 : i32
    return %arg0, %c0_i32, %c0_i32_0 : i32, i32, i32
  }
  func.func @transform_4(%arg0: i32) -> (i32, i32) {
    %c0_i32 = arith.constant 0 : i32
    %c0_i32_0 = arith.constant 0 : i32
    %c0_i32_1 = arith.constant 0 : i32
    return %c0_i32, %c0_i32_0 : i32, i32
  }
  func.func @transform_5(%arg0: i32) -> (i32, i32) {
    %c0_i32 = arith.constant 0 : i32
    %c0_i32_0 = arith.constant 0 : i32
    %c0_i32_1 = arith.constant 0 : i32
    return %c0_i32, %c0_i32_0 : i32, i32
  }
  func.func @transform_6(%arg0: i32) -> (i32, i32) {
    %c0_i32 = arith.constant 0 : i32
    %c0_i32_0 = arith.constant 0 : i32
    %c0_i32_1 = arith.constant 0 : i32
    return %c0_i32, %c0_i32_0 : i32, i32
  }
  func.func @transform_7(%arg0: i32) -> (i32, i32) {
    %c0_i32 = arith.constant 0 : i32
    %c0_i32_0 = arith.constant 0 : i32
    %c0_i32_1 = arith.constant 0 : i32
    return %c0_i32, %c0_i32_0 : i32, i32
  }
  func.func @transform_8(%arg0: i32) -> (i32, i32, i32) {
    %c0_i32 = arith.constant 0 : i32
    %c0_i32_0 = arith.constant 0 : i32
    %c0_i32_1 = arith.constant 0 : i32
    return %arg0, %c0_i32, %c0_i32_0 : i32, i32, i32
  }
}

module attributes {stable_mosaic.version = 11 : i64} {
  func.func @_ffn_ln_kernel(%arg0: i32, %arg1: memref<8x32xf32, #tpu.memory_space<vmem>>, %arg2: memref<32x64xf32, #tpu.memory_space<vmem>>, %arg3: memref<1x64xf32, #tpu.memory_space<vmem>>, %arg4: memref<64x32xf32, #tpu.memory_space<vmem>>, %arg5: memref<1x32xf32, #tpu.memory_space<vmem>>, %arg6: memref<1x32xf32, #tpu.memory_space<vmem>>, %arg7: memref<1x32xf32, #tpu.memory_space<vmem>>, %arg8: memref<8x32xf32, #tpu.memory_space<vmem>>) attributes {dimension_semantics = [#tpu.dimension_semantics<parallel>], iteration_bounds = array<i64: 2>, scalar_prefetch = 0 : i64, scratch_operands = 0 : i64, tpu.core_type = #tpu.core_type<tc>, window_params = [{transform_indices = @transform_0, window_bounds = array<i64: 8, 32>}, {pipeline_mode = #tpu.pipeline_mode<synchronous>, transform_indices = @transform_1, window_bounds = array<i64: 32, 64>}, {pipeline_mode = #tpu.pipeline_mode<synchronous>, transform_indices = @transform_2, window_bounds = array<i64: 1, 64>}, {pipeline_mode = #tpu.pipeline_mode<synchronous>, transform_indices = @transform_3, window_bounds = array<i64: 64, 32>}, {pipeline_mode = #tpu.pipeline_mode<synchronous>, transform_indices = @transform_4, window_bounds = array<i64: 1, 32>}, {pipeline_mode = #tpu.pipeline_mode<synchronous>, transform_indices = @transform_5, window_bounds = array<i64: 1, 32>}, {pipeline_mode = #tpu.pipeline_mode<synchronous>, transform_indices = @transform_6, window_bounds = array<i64: 1, 32>}, {transform_indices = @transform_7, window_bounds = array<i64: 8, 32>}]} {
    %c0 = arith.constant 0 : index
    %c0_0 = arith.constant 0 : index
    %0 = vector.load %arg1[%c0, %c0_0] : memref<8x32xf32, #tpu.memory_space<vmem>>, vector<8x32xf32>
    %c0_1 = arith.constant 0 : index
    %c0_2 = arith.constant 0 : index
    %1 = vector.load %arg2[%c0_1, %c0_2] : memref<32x64xf32, #tpu.memory_space<vmem>>, vector<32x64xf32>
    %cst = arith.constant dense<0.000000e+00> : vector<8x64xf32>
    %2 = tpu.matmul %0, %1, %cst {dimension_numbers = #tpu.dot_dimension_numbers<[1], [0], [0], [1], [0, 0, 1, 1], [], []>} : vector<8x32xf32>, vector<32x64xf32>, vector<8x64xf32> -> vector<8x64xf32>
    %c0_3 = arith.constant 0 : index
    %c0_4 = arith.constant 0 : index
    %3 = vector.load %arg3[%c0_3, %c0_4] : memref<1x64xf32, #tpu.memory_space<vmem>>, vector<1x64xf32>
    %4 = vector.broadcast %3 : vector<1x64xf32> to vector<8x64xf32>
    %5 = arith.addf %2, %4 : vector<8x64xf32>
    %cst_5 = arith.constant 0.000000e+00 : f32
    %6 = vector.broadcast %cst_5 : f32 to vector<8x64xf32>
    %7 = arith.maximumf %5, %6 : vector<8x64xf32>
    %c0_6 = arith.constant 0 : index
    %c0_7 = arith.constant 0 : index
    %8 = vector.load %arg4[%c0_6, %c0_7] : memref<64x32xf32, #tpu.memory_space<vmem>>, vector<64x32xf32>
    %cst_8 = arith.constant dense<0.000000e+00> : vector<8x32xf32>
    %9 = tpu.matmul %7, %8, %cst_8 {dimension_numbers = #tpu.dot_dimension_numbers<[1], [0], [0], [1], [0, 0, 1, 1], [], []>} : vector<8x64xf32>, vector<64x32xf32>, vector<8x32xf32> -> vector<8x32xf32>
    %c0_9 = arith.constant 0 : index
    %c0_10 = arith.constant 0 : index
    %10 = vector.load %arg5[%c0_9, %c0_10] : memref<1x32xf32, #tpu.memory_space<vmem>>, vector<1x32xf32>
    %11 = vector.broadcast %10 : vector<1x32xf32> to vector<8x32xf32>
    %12 = arith.addf %9, %11 : vector<8x32xf32>
    %13 = arith.addf %0, %12 : vector<8x32xf32>
    %cst_11 = arith.constant dense<0.000000e+00> : vector<8xf32>
    %14 = vector.multi_reduction <add>, %13, %cst_11 [1] : vector<8x32xf32> to vector<8xf32>
    %15 = vector.shape_cast %14 : vector<8xf32> to vector<8x1xf32>
    %cst_12 = arith.constant 3.200000e+01 : f32
    %16 = vector.broadcast %cst_12 : f32 to vector<8x1xf32>
    %17 = arith.divf %15, %16 : vector<8x1xf32>
    %18 = vector.broadcast %17 : vector<8x1xf32> to vector<8x32xf32>
    %19 = arith.subf %13, %18 : vector<8x32xf32>
    %20 = arith.mulf %19, %19 : vector<8x32xf32>
    %cst_13 = arith.constant dense<0.000000e+00> : vector<8xf32>
    %21 = vector.multi_reduction <add>, %20, %cst_13 [1] : vector<8x32xf32> to vector<8xf32>
    %22 = vector.shape_cast %21 : vector<8xf32> to vector<8x1xf32>
    %cst_14 = arith.constant 3.200000e+01 : f32
    %23 = vector.broadcast %cst_14 : f32 to vector<8x1xf32>
    %24 = arith.divf %22, %23 : vector<8x1xf32>
    %25 = vector.broadcast %17 : vector<8x1xf32> to vector<8x32xf32>
    %26 = arith.subf %13, %25 : vector<8x32xf32>
    %cst_15 = arith.constant 9.99999974E-6 : f32
    %27 = vector.broadcast %cst_15 : f32 to vector<8x1xf32>
    %28 = arith.addf %24, %27 : vector<8x1xf32>
    %29 = math.rsqrt %28 : vector<8x1xf32>
    %30 = vector.broadcast %29 : vector<8x1xf32> to vector<8x32xf32>
    %31 = arith.mulf %26, %30 : vector<8x32xf32>
    %c0_16 = arith.constant 0 : index
    %c0_17 = arith.constant 0 : index
    %32 = vector.load %arg6[%c0_16, %c0_17] : memref<1x32xf32, #tpu.memory_space<vmem>>, vector<1x32xf32>
    %33 = vector.broadcast %32 : vector<1x32xf32> to vector<8x32xf32>
    %34 = arith.mulf %31, %33 : vector<8x32xf32>
    %c0_18 = arith.constant 0 : index
    %c0_19 = arith.constant 0 : index
    %35 = vector.load %arg7[%c0_18, %c0_19] : memref<1x32xf32, #tpu.memory_space<vmem>>, vector<1x32xf32>
    %36 = vector.broadcast %35 : vector<1x32xf32> to vector<8x32xf32>
    %37 = arith.addf %34, %36 : vector<8x32xf32>
    %c0_20 = arith.constant 0 : index
    %c0_21 = arith.constant 0 : index
    %38 = vector.load %arg8[%c0_20, %c0_21] : memref<8x32xf32, #tpu.memory_space<vmem>>, vector<8x32xf32>
    tpu.vector_store %arg8[%c0_20, %c0_21], %37 {strides = array<i32>} : memref<8x32xf32, #tpu.memory_space<vmem>>, vector<8x32xf32>,
    return
  }
  func.func @transform_0(%arg0: i32) -> (i32, i32) {
    %c0_i32 = arith.constant 0 : i32
    %c0_i32_0 = arith.constant 0 : i32
    return %arg0, %c0_i32 : i32, i32
  }
  func.func @transform_1(%arg0: i32) -> (i32, i32) {
    %c0_i32 = arith.constant 0 : i32
    %c0_i32_0 = arith.constant 0 : i32
    %c0_i32_1 = arith.constant 0 : i32
    return %c0_i32, %c0_i32_0 : i32, i32
  }
  func.func @transform_2(%arg0: i32) -> (i32, i32) {
    %c0_i32 = arith.constant 0 : i32
    %c0_i32_0 = arith.constant 0 : i32
    %c0_i32_1 = arith.constant 0 : i32
    return %c0_i32, %c0_i32_0 : i32, i32
  }
  func.func @transform_3(%arg0: i32) -> (i32, i32) {
    %c0_i32 = arith.constant 0 : i32
    %c0_i32_0 = arith.constant 0 : i32
    %c0_i32_1 = arith.constant 0 : i32
    return %c0_i32, %c0_i32_0 : i32, i32
  }
  func.func @transform_4(%arg0: i32) -> (i32, i32) {
    %c0_i32 = arith.constant 0 : i32
    %c0_i32_0 = arith.constant 0 : i32
    %c0_i32_1 = arith.constant 0 : i32
    return %c0_i32, %c0_i32_0 : i32, i32
  }
  func.func @transform_5(%arg0: i32) -> (i32, i32) {
    %c0_i32 = arith.constant 0 : i32
    %c0_i32_0 = arith.constant 0 : i32
    %c0_i32_1 = arith.constant 0 : i32
    return %c0_i32, %c0_i32_0 : i32, i32
  }
  func.func @transform_6(%arg0: i32) -> (i32, i32) {
    %c0_i32 = arith.constant 0 : i32
    %c0_i32_0 = arith.constant 0 : i32
    %c0_i32_1 = arith.constant 0 : i32
    return %c0_i32, %c0_i32_0 : i32, i32
  }
  func.func @transform_7(%arg0: i32) -> (i32, i32) {
    %c0_i32 = arith.constant 0 : i32
    %c0_i32_0 = arith.constant 0 : i32
    return %arg0, %c0_i32 : i32, i32
  }
}

module attributes {stable_mosaic.version = 11 : i64} {
  func.func @_linear_kernel(%arg0: i32, %arg1: memref<8x32xf32, #tpu.memory_space<vmem>>, %arg2: memref<32x64xf32, #tpu.memory_space<vmem>>, %arg3: memref<1x64xf32, #tpu.memory_space<vmem>>, %arg4: memref<8x64xf32, #tpu.memory_space<vmem>>) attributes {dimension_semantics = [#tpu.dimension_semantics<parallel>], iteration_bounds = array<i64: 2>, scalar_prefetch = 0 : i64, scratch_operands = 0 : i64, tpu.core_type = #tpu.core_type<tc>, window_params = [{transform_indices = @transform_0, window_bounds = array<i64: 8, 32>}, {pipeline_mode = #tpu.pipeline_mode<synchronous>, transform_indices = @transform_1, window_bounds = array<i64: 32, 64>}, {pipeline_mode = #tpu.pipeline_mode<synchronous>, transform_indices = @transform_2, window_bounds = array<i64: 1, 64>}, {transform_indices = @transform_3, window_bounds = array<i64: 8, 64>}]} {
    %c0 = arith.constant 0 : index
    %c0_0 = arith.constant 0 : index
    %0 = vector.load %arg1[%c0, %c0_0] : memref<8x32xf32, #tpu.memory_space<vmem>>, vector<8x32xf32>
    %c0_1 = arith.constant 0 : index
    %c0_2 = arith.constant 0 : index
    %1 = vector.load %arg2[%c0_1, %c0_2] : memref<32x64xf32, #tpu.memory_space<vmem>>, vector<32x64xf32>
    %cst = arith.constant dense<0.000000e+00> : vector<8x64xf32>
    %2 = tpu.matmul %0, %1, %cst {dimension_numbers = #tpu.dot_dimension_numbers<[1], [0], [0], [1], [0, 0, 1, 1], [], []>} : vector<8x32xf32>, vector<32x64xf32>, vector<8x64xf32> -> vector<8x64xf32>
    %c0_3 = arith.constant 0 : index
    %c0_4 = arith.constant 0 : index
    %3 = vector.load %arg3[%c0_3, %c0_4] : memref<1x64xf32, #tpu.memory_space<vmem>>, vector<1x64xf32>
    %4 = vector.broadcast %3 : vector<1x64xf32> to vector<8x64xf32>
    %5 = arith.addf %2, %4 : vector<8x64xf32>
    %c0_5 = arith.constant 0 : index
    %c0_6 = arith.constant 0 : index
    %6 = vector.load %arg4[%c0_5, %c0_6] : memref<8x64xf32, #tpu.memory_space<vmem>>, vector<8x64xf32>
    tpu.vector_store %arg4[%c0_5, %c0_6], %5 {strides = array<i32>} : memref<8x64xf32, #tpu.memory_space<vmem>>, vector<8x64xf32>,
    return
  }
  func.func @transform_0(%arg0: i32) -> (i32, i32) {
    %c0_i32 = arith.constant 0 : i32
    %c0_i32_0 = arith.constant 0 : i32
    return %arg0, %c0_i32 : i32, i32
  }
  func.func @transform_1(%arg0: i32) -> (i32, i32) {
    %c0_i32 = arith.constant 0 : i32
    %c0_i32_0 = arith.constant 0 : i32
    %c0_i32_1 = arith.constant 0 : i32
    return %c0_i32, %c0_i32_0 : i32, i32
  }
  func.func @transform_2(%arg0: i32) -> (i32, i32) {
    %c0_i32 = arith.constant 0 : i32
    %c0_i32_0 = arith.constant 0 : i32
    %c0_i32_1 = arith.constant 0 : i32
    return %c0_i32, %c0_i32_0 : i32, i32
  }
  func.func @transform_3(%arg0: i32) -> (i32, i32) {
    %c0_i32 = arith.constant 0 : i32
    %c0_i32_0 = arith.constant 0 : i32
    return %arg0, %c0_i32 : i32, i32
  }
}

</mosaic_0001>

<llo_original>
// kernel: transformer_forward.12
$region0: #{transformer_forward.12}
  #allocation0 [shape = 'u32[]', space=smem, size = 0x4, offset = 0x4, fixed_abs, tag = 'smem constant byte address 0x4 - core index']
  #allocation1 [shape = 'u32[144,128]{1,0:T(1,128)}', space=vmem, size = 0x12000, scoped, tag = 'internal scratch']
  %s0 = inlined_call_operand.vmem [shape: f32[16,32], index: 0, kind: input, shape index: {}, may-alias: {0,1}]
  %s1 = inlined_call_operand.vmem [shape: f32[16,32], index: 1, kind: input, shape index: {}, may-alias: {0,1}]
  %s2 = inlined_call_operand.vmem [shape: f32[32,256], index: 2, kind: input, shape index: {}]
  %s3 = inlined_call_operand.vmem [shape: f32[1,256], index: 3, kind: input, shape index: {}]
  %s4 = inlined_call_operand.vmem [shape: f32[32,128], index: 4, kind: input, shape index: {}]
  %s5 = inlined_call_operand.vmem [shape: f32[1,128], index: 5, kind: input, shape index: {}]
  %s6 = inlined_call_operand.vmem [shape: f32[16,128], index: 6, kind: output, shape index: {0}]
  %s7 = inlined_call_operand.vmem [shape: f32[16,128], index: 7, kind: output, shape index: {1}]
  %s8 = inlined_call_operand.vmem [shape: f32[16,128], index: 8, kind: output, shape index: {2}]
  %9 = xla_tuple %s6, %s7, %s8
  %s10 = sld [smem:[#allocation0]]
  $region73: #{transformer_forward.12} parent=0
    _
  %s12 = ssub.s32 1, %s10
  %s13 = scalar_select 0, %s12, %s10
  loop: start=0, step=1, limit=4
  $region2: #{transformer_forward.12} parent=0 // loop_pre_header
    _
  $region3: #{transformer_forward.12} parent=0 // loop_header
    %s15 = sphi 0, %s19
    %p16 = scmp.ge.s32.totalorder %s15, 4
    %s25 = sphi 0, %s27
    %s28 = sphi 0, %s25
    %s29 = sphi 0, %s28
    %s45 = sphi 0, %s29
    %s51 = sphi 0, %s53
    %s54 = sphi 0, %s51
    %s55 = sphi 0, %s54
    %s71 = sphi 0, %s55
    %s75 = sphi 0, %s75
    %s77 = sphi 0, %s75
    %s78 = sphi 0, %s77
    %s92 = sphi 0, %s78
    %s96 = sphi 0, %s96
    %s98 = sphi 0, %s96
    %s99 = sphi 0, %s98
    %s113 = sphi 0, %s99
    %s117 = sphi 0, %s117
    %s119 = sphi 0, %s117
    %s120 = sphi 0, %s119
    %s134 = sphi 0, %s120
    %s138 = sphi 0, %s138
    %s140 = sphi 0, %s138
    %s141 = sphi 0, %s140
    %s155 = sphi 0, %s141
    %s161 = sphi 0, %s163
    %s164 = sphi 0, %s161
    %s165 = sphi 0, %s164
    %s181 = sphi 0, %s165
    %s187 = sphi 0, %s189
    %s190 = sphi 0, %s187
    %s191 = sphi 0, %s190
    %s207 = sphi 0, %s191
    %s213 = sphi 0, %s215
    %s216 = sphi 0, %s213
    %s217 = sphi 0, %s216
    %s233 = sphi 0, %s217
  $region4: #{transformer_forward.12} parent=0 // loop_header_branch
    %18 = sbr.rel (%p16) target = $region8
  $region5: #{transformer_forward.12} parent=0 // loop_body
    %s20 = ssub.s32 %s15, 1
    %s21 = ssub.s32 %s15, 2
    %s22 = sadd.s32 %s15, 1
    %s23 = ssub.s32 %s15, %s22
    %p24 = scmp.eq.s32.totalorder %s23, 0
    %s26 = sadd.s32 %s25, 1
    %s27 = scalar_select %p24, %s25, %s26
    %p30 = pneg %p24
    %p31 = scmp.eq.s32.totalorder %s15, 1
    %p32 = por %p30, %p31
    %p33 = scmp.ne.s32.totalorder %s25, %s28
    %p34 = scmp.eq.s32.totalorder %s15, 0
    %p35 = por %p33, %p34
    %p36 = scmp.ne.s32.totalorder %s25, %s28
    %p37 = scmp.eq.s32.totalorder %s20, 1
    %p38 = por %p36, %p37
    %p39 = scmp.ne.s32.totalorder %s28, %s29
    %p40 = scmp.eq.s32.totalorder %s20, 0
    %p41 = por %p39, %p40
    %p42 = scmp.ne.s32.totalorder %s28, %s29
    %p43 = scmp.eq.s32.totalorder %s21, 1
    %p44 = por %p42, %p43
    %p46 = scmp.ne.s32.totalorder %s29, %s45
    %p47 = scmp.eq.s32.totalorder %s21, 0
    %p48 = por %p46, %p47
    %s49 = ssub.s32 %s15, %s22
    %p50 = scmp.eq.s32.totalorder %s49, 0
    %s52 = sadd.s32 %s51, 1
    %s53 = scalar_select %p50, %s51, %s52
    %p56 = pneg %p50
    %p57 = scmp.eq.s32.totalorder %s15, 1
    %p58 = por %p56, %p57
    %p59 = scmp.ne.s32.totalorder %s51, %s54
    %p60 = scmp.eq.s32.totalorder %s15, 0
    %p61 = por %p59, %p60
    %p62 = scmp.ne.s32.totalorder %s51, %s54
    %p63 = scmp.eq.s32.totalorder %s20, 1
    %p64 = por %p62, %p63
    %p65 = scmp.ne.s32.totalorder %s54, %s55
    %p66 = scmp.eq.s32.totalorder %s20, 0
    %p67 = por %p65, %p66
    %p68 = scmp.ne.s32.totalorder %s54, %s55
    %p69 = scmp.eq.s32.totalorder %s21, 1
    %p70 = por %p68, %p69
    %p72 = scmp.ne.s32.totalorder %s55, %s71
    %p73 = scmp.eq.s32.totalorder %s21, 0
    %p74 = por %p72, %p73
    %s76 = sadd.s32 %s75, 1
    %p79 = scmp.eq.s32.totalorder %s15, 1
    %p80 = scmp.ne.s32.totalorder %s75, %s77
    %p81 = scmp.eq.s32.totalorder %s15, 0
    %p82 = por %p80, %p81
    %p83 = scmp.ne.s32.totalorder %s75, %s77
    %p84 = scmp.eq.s32.totalorder %s20, 1
    %p85 = por %p83, %p84
    %p86 = scmp.ne.s32.totalorder %s77, %s78
    %p87 = scmp.eq.s32.totalorder %s20, 0
    %p88 = por %p86, %p87
    %p89 = scmp.ne.s32.totalorder %s77, %s78
    %p90 = scmp.eq.s32.totalorder %s21, 1
    %p91 = por %p89, %p90
    %p93 = scmp.ne.s32.totalorder %s78, %s92
    %p94 = scmp.eq.s32.totalorder %s21, 0
    %p95 = por %p93, %p94
    %s97 = sadd.s32 %s96, 1
    %p100 = scmp.eq.s32.totalorder %s15, 1
    %p101 = scmp.ne.s32.totalorder %s96, %s98
    %p102 = scmp.eq.s32.totalorder %s15, 0
    %p103 = por %p101, %p102
    %p104 = scmp.ne.s32.totalorder %s96, %s98
    %p105 = scmp.eq.s32.totalorder %s20, 1
    %p106 = por %p104, %p105
    %p107 = scmp.ne.s32.totalorder %s98, %s99
    %p108 = scmp.eq.s32.totalorder %s20, 0
    %p109 = por %p107, %p108
    %p110 = scmp.ne.s32.totalorder %s98, %s99
    %p111 = scmp.eq.s32.totalorder %s21, 1
    %p112 = por %p110, %p111
    %p114 = scmp.ne.s32.totalorder %s99, %s113
    %p115 = scmp.eq.s32.totalorder %s21, 0
    %p116 = por %p114, %p115
    %s118 = sadd.s32 %s117, 1
    %p121 = scmp.eq.s32.totalorder %s15, 1
    %p122 = scmp.ne.s32.totalorder %s117, %s119
    %p123 = scmp.eq.s32.totalorder %s15, 0
    %p124 = por %p122, %p123
    %p125 = scmp.ne.s32.totalorder %s117, %s119
    %p126 = scmp.eq.s32.totalorder %s20, 1
    %p127 = por %p125, %p126
    %p128 = scmp.ne.s32.totalorder %s119, %s120
    %p129 = scmp.eq.s32.totalorder %s20, 0
    %p130 = por %p128, %p129
    %p131 = scmp.ne.s32.totalorder %s119, %s120
    %p132 = scmp.eq.s32.totalorder %s21, 1
    %p133 = por %p131, %p132
    %p135 = scmp.ne.s32.totalorder %s120, %s134
    %p136 = scmp.eq.s32.totalorder %s21, 0
    %p137 = por %p135, %p136
    %s139 = sadd.s32 %s138, 1
    %p142 = scmp.eq.s32.totalorder %s15, 1
    %p143 = scmp.ne.s32.totalorder %s138, %s140
    %p144 = scmp.eq.s32.totalorder %s15, 0
    %p145 = por %p143, %p144
    %p146 = scmp.ne.s32.totalorder %s138, %s140
    %p147 = scmp.eq.s32.totalorder %s20, 1
    %p148 = por %p146, %p147
    %p149 = scmp.ne.s32.totalorder %s140, %s141
    %p150 = scmp.eq.s32.totalorder %s20, 0
    %p151 = por %p149, %p150
    %p152 = scmp.ne.s32.totalorder %s140, %s141
    %p153 = scmp.eq.s32.totalorder %s21, 1
    %p154 = por %p152, %p153
    %p156 = scmp.ne.s32.totalorder %s141, %s155
    %p157 = scmp.eq.s32.totalorder %s21, 0
    %p158 = por %p156, %p157
    %s159 = ssub.s32 %s15, %s22
    %p160 = scmp.eq.s32.totalorder %s159, 0
    %s162 = sadd.s32 %s161, 1
    %s163 = scalar_select %p160, %s161, %s162
    %p166 = pneg %p160
    %p167 = scmp.eq.s32.totalorder %s15, 1
    %p168 = por %p166, %p167
    %p169 = scmp.ne.s32.totalorder %s161, %s164
    %p170 = scmp.eq.s32.totalorder %s15, 0
    %p171 = por %p169, %p170
    %p172 = scmp.ne.s32.totalorder %s161, %s164
    %p173 = scmp.eq.s32.totalorder %s20, 1
    %p174 = por %p172, %p173
    %p175 = scmp.ne.s32.totalorder %s164, %s165
    %p176 = scmp.eq.s32.totalorder %s20, 0
    %p177 = por %p175, %p176
    %p178 = scmp.ne.s32.totalorder %s164, %s165
    %p179 = scmp.eq.s32.totalorder %s21, 1
    %p180 = por %p178, %p179
    %p182 = scmp.ne.s32.totalorder %s165, %s181
    %p183 = scmp.eq.s32.totalorder %s21, 0
    %p184 = por %p182, %p183
    %s185 = ssub.s32 %s15, %s22
    %p186 = scmp.eq.s32.totalorder %s185, 0
    %s188 = sadd.s32 %s187, 1
    %s189 = scalar_select %p186, %s187, %s188
    %p192 = pneg %p186
    %p193 = scmp.eq.s32.totalorder %s15, 1
    %p194 = por %p192, %p193
    %p195 = scmp.ne.s32.totalorder %s187, %s190
    %p196 = scmp.eq.s32.totalorder %s15, 0
    %p197 = por %p195, %p196
    %p198 = scmp.ne.s32.totalorder %s187, %s190
    %p199 = scmp.eq.s32.totalorder %s20, 1
    %p200 = por %p198, %p199
    %p201 = scmp.ne.s32.totalorder %s190, %s191
    %p202 = scmp.eq.s32.totalorder %s20, 0
    %p203 = por %p201, %p202
    %p204 = scmp.ne.s32.totalorder %s190, %s191
    %p205 = scmp.eq.s32.totalorder %s21, 1
    %p206 = por %p204, %p205
    %p208 = scmp.ne.s32.totalorder %s191, %s207
    %p209 = scmp.eq.s32.totalorder %s21, 0
    %p210 = por %p208, %p209
    %s211 = ssub.s32 %s15, %s22
    %p212 = scmp.eq.s32.totalorder %s211, 0
    %s214 = sadd.s32 %s213, 1
    %s215 = scalar_select %p212, %s213, %s214
    %p218 = pneg %p212
    %p219 = scmp.eq.s32.totalorder %s15, 1
    %p220 = por %p218, %p219
    %p221 = scmp.ne.s32.totalorder %s213, %s216
    %p222 = scmp.eq.s32.totalorder %s15, 0
    %p223 = por %p221, %p222
    %p224 = scmp.ne.s32.totalorder %s213, %s216
    %p225 = scmp.eq.s32.totalorder %s20, 1
    %p226 = por %p224, %p225
    %p227 = scmp.ne.s32.totalorder %s216, %s217
    %p228 = scmp.eq.s32.totalorder %s20, 0
    %p229 = por %p227, %p228
    %p230 = scmp.ne.s32.totalorder %s216, %s217
    %p231 = scmp.eq.s32.totalorder %s21, 1
    %p232 = por %p230, %p231
    %p234 = scmp.ne.s32.totalorder %s217, %s233
    %p235 = scmp.eq.s32.totalorder %s21, 0
    %p236 = por %p234, %p235
    %p237 = scmp.le.s32.totalorder 1, %s15
    %p238 = scmp.lt.s32.totalorder %s15, 3
    %p239 = pnand %p237, %p238
    %p240 = pneg %p239
    // Predicated region
    $region9: #{transformer_forward.12} parent=5 // pred_check
      _
    $region10: #{transformer_forward.12} parent=5 // pred_check_branch
      %242 = sbr.rel (%p239) target = $region12
    $region11: #{transformer_forward.12} parent=5 // pred_region
      %s243 = ssub.s32 %s15, 1
      // Predicated region
      $region13: #{transformer_forward.12} parent=11 // pred_check
        %p244 = pneg %p88
      $region14: #{transformer_forward.12} parent=11 // pred_check_branch
        %246 = sbr.rel (%p244) target = $region16
      $region15: #{transformer_forward.12} parent=11 // pred_region
        _
      $region16: #{transformer_forward.12} parent=11 // pred_fallthru
        _
      // Predicated region
      $region17: #{transformer_forward.12} parent=11 // pred_check
        %p247 = pneg %p109
      $region18: #{transformer_forward.12} parent=11 // pred_check_branch
        %249 = sbr.rel (%p247) target = $region20
      $region19: #{transformer_forward.12} parent=11 // pred_region
        _
      $region20: #{transformer_forward.12} parent=11 // pred_fallthru
        _
      // Predicated region
      $region21: #{transformer_forward.12} parent=11 // pred_check
        %p250 = pneg %p130
      $region22: #{transformer_forward.12} parent=11 // pred_check_branch
        %252 = sbr.rel (%p250) target = $region24
      $region23: #{transformer_forward.12} parent=11 // pred_region
        _
      $region24: #{transformer_forward.12} parent=11 // pred_fallthru
        _
      // Predicated region
      $region25: #{transformer_forward.12} parent=11 // pred_check
        %p253 = pneg %p151
      $region26: #{transformer_forward.12} parent=11 // pred_check_branch
        %255 = sbr.rel (%p253) target = $region28
      $region27: #{transformer_forward.12} parent=11 // pred_region
        _
      $region28: #{transformer_forward.12} parent=11 // pred_fallthru
        _
    $region12: #{transformer_forward.12} parent=5 // pred_fallthru
      _
    %p256 = scmp.lt.s32.totalorder %s15, 2
    // Predicated region
    $region29: #{transformer_forward.12} parent=5 // pred_check
      %p257 = pneg %p256
    $region30: #{transformer_forward.12} parent=5 // pred_check_branch
      %259 = sbr.rel (%p257) target = $region32
    $region31: #{transformer_forward.12} parent=5 // pred_region
      // Predicated region
      $region33: #{transformer_forward.12} parent=31 // pred_check
        %p260 = pneg %p35
      $region34: #{transformer_forward.12} parent=31 // pred_check_branch
        %262 = sbr.rel (%p260) target = $region36
      $region35: #{transformer_forward.12} parent=31 // pred_region
        %p263 = scmp.lt.s32.totalorder %s15, 1
        %s264 = scalar_select %p263, %s15, 1
        %s265 = smul.addr %s264, 8
        %s266 = scalar_lea.vmem %s0, %s265
      $region36: #{transformer_forward.12} parent=31 // pred_fallthru
        _
      // Predicated region
      $region37: #{transformer_forward.12} parent=31 // pred_check
        %p267 = pneg %p61
      $region38: #{transformer_forward.12} parent=31 // pred_check_branch
        %269 = sbr.rel (%p267) target = $region40
      $region39: #{transformer_forward.12} parent=31 // pred_region
        %p270 = scmp.lt.s32.totalorder %s15, 1
        %s271 = scalar_select %p270, %s15, 1
        %s272 = smul.addr %s271, 8
        %s273 = scalar_lea.vmem %s1, %s272
      $region40: #{transformer_forward.12} parent=31 // pred_fallthru
        _
    $region32: #{transformer_forward.12} parent=5 // pred_fallthru
      _
    %p274 = scmp.le.s32.totalorder 1, %s15
    %p275 = scmp.lt.s32.totalorder %s15, 3
    %p276 = pnand %p274, %p275
    %p277 = pneg %p276
    // Predicated region
    $region41: #{transformer_forward.12} parent=5 // pred_check
      _
    $region42: #{transformer_forward.12} parent=5 // pred_check_branch
      %279 = sbr.rel (%p276) target = $region44
    $region43: #{transformer_forward.12} parent=5 // pred_region
      %s280 = ssub.s32 %s15, 1
      %p281 = scmp.lt.s32.totalorder %s20, 1
      %s282 = scalar_select %p281, %s20, 1
      %s283 = smul.addr %s282, 8
      %s284 = scalar_lea.vmem %s0, %s283
      %p285 = pneg %p41
      %p286 = pneg %p38
      %p287 = scmp.lt.s32.totalorder %s20, 1
      %s288 = scalar_select %p287, %s20, 1
      %s289 = smul.addr %s288, 8
      %s290 = scalar_lea.vmem %s1, %s289
      %p291 = pneg %p67
      %p292 = pneg %p64
      %p293 = pneg %p88
      %p294 = pneg %p85
      %p295 = pneg %p109
      %p296 = pneg %p106
      %p297 = pneg %p130
      %p298 = pneg %p127
      %p299 = pneg %p151
      %p300 = pneg %p148
      %p301 = pneg %p177
      %p302 = pneg %p174
      %p303 = scmp.lt.s32.totalorder %s20, 1
      %s304 = scalar_select %p303, %s20, 1
      %s305 = smul.addr %s304, 8
      %s306 = scalar_lea.vmem %s6, %s305
      %p307 = pneg %p203
      %p308 = pneg %p200
      %p309 = scmp.lt.s32.totalorder %s20, 1
      %s310 = scalar_select %p309, %s20, 1
      %s311 = smul.addr %s310, 8
      %s312 = scalar_lea.vmem %s7, %s311
      %p313 = pneg %p229
      %p314 = pneg %p226
      %p315 = scmp.lt.s32.totalorder %s20, 1
      %s316 = scalar_select %p315, %s20, 1
      %s317 = smul.addr %s316, 8
      %s318 = scalar_lea.vmem %s8, %s317
      %p319 = scmp.lt.s32.totalorder %s20, 1
      %s320 = scalar_select %p319, %s20, 1
      %s321 = smul.addr %s320, 8
      %s322 = scalar_lea.vmem %s0, %s321
      %p323 = scmp.lt.s32.totalorder %s20, 1
      %s324 = scalar_select %p323, %s20, 1
      %s325 = smul.addr %s324, 8
      %s326 = scalar_lea.vmem %s1, %s325
      %p327 = scmp.lt.s32.totalorder %s20, 1
      %s328 = scalar_select %p327, %s20, 1
      %s329 = smul.addr %s328, 8
      %s330 = scalar_lea.vmem %s6, %s329
      %p331 = scmp.lt.s32.totalorder %s20, 1
      %s332 = scalar_select %p331, %s20, 1
      %s333 = smul.addr %s332, 8
      %s334 = scalar_lea.vmem %s7, %s333
      %p335 = scmp.lt.s32.totalorder %s20, 1
      %s336 = scalar_select %p335, %s20, 1
      %s337 = smul.addr %s336, 8
      %s338 = scalar_lea.vmem %s8, %s337
      %v339 = vld [vmem:[%s322] sm:$0xff]
      %v340 = vld [vmem:[%s326] sm:$0xff]
      %v341 = vld [vmem:[%s2] sm:$0xff]
      %v342 = vld [vmem:[%s2 + $0x8] sm:$0xff]
      %v343 = vld [vmem:[%s2 + $0x10] sm:$0xff]
      %v344 = vld [vmem:[%s2 + $0x18] sm:$0xff]
      %v345 = vld [vmem:[%s2 + $0x20] sm:$0xff]
      %v346 = vld [vmem:[%s2 + $0x28] sm:$0xff]
      %v347 = vld [vmem:[%s2 + $0x30] sm:$0xff]
      %v348 = vld [vmem:[%s2 + $0x38] sm:$0xff]
      %v349 = vld [vmem:[%s3] sm:$0x3]
      %v351 = vlaneseq
      %v352 = vshrl.u32 %v351, 7
      %v353 = vsub.s32 0, %v352
      %v354 = vrot.slane %v349, %v353
      %v355 = vlaneseq
      %v356 = vshrl.u32 %v355, 7
      %v357 = vsub.s32 1, %v356
      %v358 = vrot.slane %v349, %v357
      %vm361 = vcmask 261120
      %v363 = vsel %vm361, %v339, 0
      %365 = vmatprep.subr.mxu0 0.0
      %366 = vmatpush1.msra.mxu0 0.0
      %367 = vmatprep.subr.mxu0 0.0
      %368 = vmatpush1.msra.mxu0 0.0
      %369 = vmatprep.subr.mxu0 0.0
      %370 = vmatpush1.msra.mxu0 0.0
      %371 = vmatprep.subr.mxu0 0.0
      %372 = vmatpush1.msra.mxu0 0.0
      %373 = vmatprep.subr.mxu0 0.0
      %374 = vmatpush1.msra.mxu0 0.0
      %375 = vmatprep.subr.mxu0 0.0
      %376 = vmatpush1.msra.mxu0 0.0
      %377 = vmatprep.subr.mxu0 0.0
      %378 = vmatpush1.msra.mxu0 0.0
      %379 = vmatprep.subr.mxu0 0.0
      %380 = vmatpush1.msra.mxu0 0.0
      %381 = vmatprep.subr.mxu0 0.0
      %382 = vmatpush1.msra.mxu0 0.0
      %383 = vmatprep.subr.mxu0 0.0
      %384 = vmatpush1.msra.mxu0 0.0
      %385 = vmatprep.subr.mxu0 0.0
      %386 = vmatpush1.msra.mxu0 0.0
      %387 = vmatprep.subr.mxu0 0.0
      %388 = vmatpush1.msra.mxu0 0.0
      %389 = vmatprep.subr.mxu0 %v348
      %390 = vmatpush1.msra.mxu0 %v347
      %391 = vmatprep.subr.mxu0 %v346
      %392 = vmatpush1.msra.mxu0 %v345
      %393 = vmatprep.subr.mxu0 %v344
      %394 = vmatpush1.msra.mxu0 %v343
      %395 = vmatprep.subr.mxu0 %v342
      %396 = vmatpush1.msra.mxu0 %v341
      %397 = vmatprep.subr.mxu0 0.0
      %398 = vmatpush2.msra.mxu0 0.0
      %399 = vmatprep.subr.mxu0 0.0
      %400 = vmatpush2.msra.mxu0 0.0
      %401 = vmatprep.subr.mxu0 0.0
      %402 = vmatpush2.msra.mxu0 0.0
      %403 = vmatprep.subr.mxu0 0.0
      %404 = vmatpush2.msra.mxu0 0.0
      %405 = vmatprep.subr.mxu0 0.0
      %406 = vmatpush2.msra.mxu0 0.0
      %407 = vmatprep.subr.mxu0 0.0
      %408 = vmatpush2.msra.mxu0 0.0
      %409 = vmatprep.subr.mxu0 0.0
      %410 = vmatpush2.msra.mxu0 0.0
      %411 = vmatprep.subr.mxu0 0.0
      %412 = vmatpush2.msra.mxu0 0.0
      %413 = vmatprep.subr.mxu0 0.0
      %414 = vmatpush2.msra.mxu0 0.0
      %415 = vmatprep.subr.mxu0 0.0
      %416 = vmatpush2.msra.mxu0 0.0
      %417 = vmatprep.subr.mxu0 0.0
      %418 = vmatpush2.msra.mxu0 0.0
      %419 = vmatprep.subr.mxu0 0.0
      %420 = vmatpush2.msra.mxu0 0.0
      %421 = vmatprep.subr.mxu0 0.0
      %422 = vmatpush2.msra.mxu0 0.0
      %423 = vmatprep.subr.mxu0 0.0
      %424 = vmatpush2.msra.mxu0 0.0
      %425 = vmatprep.subr.mxu0 0.0
      %426 = vmatpush2.msra.mxu0 0.0
      %427 = vmatprep.subr.mxu0 0.0
      %428 = vmatpush2.msra.mxu0 0.0
      %429 = vmatprep.mubr.f32.mxu0 0.0
      %430 = vmatmul.mubr.f32.gmra.mxu0 %v363
      %v431 = vpop.f32.mrf.mxu0
      %v432 = vadd.f32 %v354, %v431
      %v433 = vpop.f32.mrf.mxu0
      %v434 = vadd.f32 %v358, %v433
      %435 = vdwg.mxu0
      %v436 = vld [vmem:[%s4] sm:$0xff]
      %v437 = vld [vmem:[%s4 + $0x8] sm:$0xff]
      %v438 = vld [vmem:[%s4 + $0x10] sm:$0xff]
      %v439 = vld [vmem:[%s4 + $0x18] sm:$0xff]
      %v440 = vld [vmem:[%s5] sm:$0x1]
      %v442 = vlaneseq
      %v443 = vshrl.u32 %v442, 7
      %v444 = vsub.s32 0, %v443
      %v445 = vrot.slane %v440, %v444
      %v448 = vsel %vm361, %v340, 0
      %450 = vmatprep.subr.mxu0 0.0
      %451 = vmatpush1.msra.mxu0 0.0
      %452 = vmatprep.subr.mxu0 0.0
      %453 = vmatpush1.msra.mxu0 0.0
      %454 = vmatprep.subr.mxu0 0.0
      %455 = vmatpush1.msra.mxu0 0.0
      %456 = vmatprep.subr.mxu0 0.0
      %457 = vmatpush1.msra.mxu0 0.0
      %458 = vmatprep.subr.mxu0 0.0
      %459 = vmatpush1.msra.mxu0 0.0
      %460 = vmatprep.subr.mxu0 0.0
      %461 = vmatpush1.msra.mxu0 0.0
      %462 = vmatprep.subr.mxu0 0.0
      %463 = vmatpush1.msra.mxu0 0.0
      %464 = vmatprep.subr.mxu0 0.0
      %465 = vmatpush1.msra.mxu0 0.0
      %466 = vmatprep.subr.mxu0 0.0
      %467 = vmatpush1.msra.mxu0 0.0
      %468 = vmatprep.subr.mxu0 0.0
      %469 = vmatpush1.msra.mxu0 0.0
      %470 = vmatprep.subr.mxu0 0.0
      %471 = vmatpush1.msra.mxu0 0.0
      %472 = vmatprep.subr.mxu0 0.0
      %473 = vmatpush1.msra.mxu0 0.0
      %474 = vmatprep.subr.mxu0 0.0
      %475 = vmatpush1.msra.mxu0 %v439
      %476 = vmatprep.subr.mxu0 0.0
      %477 = vmatpush1.msra.mxu0 %v438
      %478 = vmatprep.subr.mxu0 0.0
      %479 = vmatpush1.msra.mxu0 %v437
      %480 = vmatprep.subr.mxu0 0.0
      %481 = vmatpush1.msra.mxu0 %v436
      %482 = vmatprep.subr.mxu0 0.0
      %483 = vmatpush2.msra.mxu0 0.0
      %484 = vmatprep.subr.mxu0 0.0
      %485 = vmatpush2.msra.mxu0 0.0
      %486 = vmatprep.subr.mxu0 0.0
      %487 = vmatpush2.msra.mxu0 0.0
      %488 = vmatprep.subr.mxu0 0.0
      %489 = vmatpush2.msra.mxu0 0.0
      %490 = vmatprep.subr.mxu0 0.0
      %491 = vmatpush2.msra.mxu0 0.0
      %492 = vmatprep.subr.mxu0 0.0
      %493 = vmatpush2.msra.mxu0 0.0
      %494 = vmatprep.subr.mxu0 0.0
      %495 = vmatpush2.msra.mxu0 0.0
      %496 = vmatprep.subr.mxu0 0.0
      %497 = vmatpush2.msra.mxu0 0.0
      %498 = vmatprep.subr.mxu0 0.0
      %499 = vmatpush2.msra.mxu0 0.0
      %500 = vmatprep.subr.mxu0 0.0
      %501 = vmatpush2.msra.mxu0 0.0
      %502 = vmatprep.subr.mxu0 0.0
      %503 = vmatpush2.msra.mxu0 0.0
      %504 = vmatprep.subr.mxu0 0.0
      %505 = vmatpush2.msra.mxu0 0.0
      %506 = vmatprep.subr.mxu0 0.0
      %507 = vmatpush2.msra.mxu0 0.0
      %508 = vmatprep.subr.mxu0 0.0
      %509 = vmatpush2.msra.mxu0 0.0
      %510 = vmatprep.subr.mxu0 0.0
      %511 = vmatpush2.msra.mxu0 0.0
      %512 = vmatprep.subr.mxu0 0.0
      %513 = vmatpush2.msra.mxu0 0.0
      %514 = vmatprep.mubr.f32.mxu0 0.0
      %515 = vmatmul.mubr.f32.gmra.mxu0 %v448
      %v516 = vpop.f32.mrf.mxu0
      %v517 = vadd.f32 %v445, %v516
      %v518 = vpop.f32.mrf.mxu0
      %519 = vdwg.mxu0
      %520 = vst [vmem:[%s330] sm:$0xff] %v432
      %521 = vst [vmem:[%s334] sm:$0xff] %v434
      %522 = vst [vmem:[%s338] sm:$0xff] %v517
      %p523 = scmp.lt.s32.totalorder %s20, 1
      %s524 = scalar_select %p523, %s20, 1
      %s525 = smul.addr %s524, 8
      %s526 = scalar_lea.vmem %s6, %s525
      %p527 = scmp.lt.s32.totalorder %s20, 1
      %s528 = scalar_select %p527, %s20, 1
      %s529 = smul.addr %s528, 8
      %s530 = scalar_lea.vmem %s7, %s529
      %p531 = scmp.lt.s32.totalorder %s20, 1
      %s532 = scalar_select %p531, %s20, 1
      %s533 = smul.addr %s532, 8
      %s534 = scalar_lea.vmem %s8, %s533
      // Predicated region
      $region45: #{transformer_forward.12} parent=43 // pred_check
        %p535 = pneg %p174
      $region46: #{transformer_forward.12} parent=43 // pred_check_branch
        %537 = sbr.rel (%p535) target = $region48
      $region47: #{transformer_forward.12} parent=43 // pred_region
        _
      $region48: #{transformer_forward.12} parent=43 // pred_fallthru
        _
      // Predicated region
      $region49: #{transformer_forward.12} parent=43 // pred_check
        %p538 = pneg %p200
      $region50: #{transformer_forward.12} parent=43 // pred_check_branch
        %540 = sbr.rel (%p538) target = $region52
      $region51: #{transformer_forward.12} parent=43 // pred_region
        _
      $region52: #{transformer_forward.12} parent=43 // pred_fallthru
        _
      // Predicated region
      $region53: #{transformer_forward.12} parent=43 // pred_check
        %p541 = pneg %p226
      $region54: #{transformer_forward.12} parent=43 // pred_check_branch
        %543 = sbr.rel (%p541) target = $region56
      $region55: #{transformer_forward.12} parent=43 // pred_region
        _
      $region56: #{transformer_forward.12} parent=43 // pred_fallthru
        _
    $region44: #{transformer_forward.12} parent=5 // pred_fallthru
      _
    %p544 = scmp.le.s32.totalorder 2, %s15
    // Predicated region
    $region57: #{transformer_forward.12} parent=5 // pred_check
      %p545 = pneg %p544
    $region58: #{transformer_forward.12} parent=5 // pred_check_branch
      %547 = sbr.rel (%p545) target = $region60
    $region59: #{transformer_forward.12} parent=5 // pred_region
      %s548 = ssub.s32 %s15, 2
      // Predicated region
      $region61: #{transformer_forward.12} parent=59 // pred_check
        %p549 = pneg %p180
      $region62: #{transformer_forward.12} parent=59 // pred_check_branch
        %551 = sbr.rel (%p549) target = $region64
      $region63: #{transformer_forward.12} parent=59 // pred_region
        %p552 = scmp.lt.s32.totalorder %s21, 1
        %s553 = scalar_select %p552, %s21, 1
        %s554 = smul.addr %s553, 8
        %s555 = scalar_lea.vmem %s6, %s554
      $region64: #{transformer_forward.12} parent=59 // pred_fallthru
        _
      // Predicated region
      $region65: #{transformer_forward.12} parent=59 // pred_check
        %p556 = pneg %p206
      $region66: #{transformer_forward.12} parent=59 // pred_check_branch
        %558 = sbr.rel (%p556) target = $region68
      $region67: #{transformer_forward.12} parent=59 // pred_region
        %p559 = scmp.lt.s32.totalorder %s21, 1
        %s560 = scalar_select %p559, %s21, 1
        %s561 = smul.addr %s560, 8
        %s562 = scalar_lea.vmem %s7, %s561
      $region68: #{transformer_forward.12} parent=59 // pred_fallthru
        _
      // Predicated region
      $region69: #{transformer_forward.12} parent=59 // pred_check
        %p563 = pneg %p232
      $region70: #{transformer_forward.12} parent=59 // pred_check_branch
        %565 = sbr.rel (%p563) target = $region72
      $region71: #{transformer_forward.12} parent=59 // pred_region
        %p566 = scmp.lt.s32.totalorder %s21, 1
        %s567 = scalar_select %p566, %s21, 1
        %s568 = smul.addr %s567, 8
        %s569 = scalar_lea.vmem %s8, %s568
      $region72: #{transformer_forward.12} parent=59 // pred_fallthru
        _
    $region60: #{transformer_forward.12} parent=5 // pred_fallthru
      _
  $region6: #{transformer_forward.12} parent=0 // loop_footer
    %s19 = sadd.s32 1, %s15
  $region7: #{transformer_forward.12} parent=0 // loop_footer_branch
    %14 = sbr.rel target = $region3
  $region8: #{transformer_forward.12} parent=0 // loop_exit
    _

// kernel: transformer_forward.11
$region0: #{transformer_forward.11}
  #allocation0 [shape = 'u32[]', space=smem, size = 0x4, offset = 0x4, fixed_abs, tag = 'smem constant byte address 0x4 - core index']
  #allocation1 [shape = 'u32[144,128]{1,0:T(1,128)}', space=vmem, size = 0x12000, scoped, tag = 'internal scratch']
  %s0 = inlined_call_operand.vmem [shape: f32[16,32], index: 0, kind: input, shape index: {}]
  %s1 = inlined_call_operand.vmem [shape: f32[32,64], index: 1, kind: input, shape index: {}]
  %s2 = inlined_call_operand.vmem [shape: f32[1,64], index: 2, kind: input, shape index: {}]
  %s3 = inlined_call_operand.vmem [shape: f32[64,32], index: 3, kind: input, shape index: {}]
  %s4 = inlined_call_operand.vmem [shape: f32[1,32], index: 4, kind: input, shape index: {}]
  %s5 = inlined_call_operand.vmem [shape: f32[1,32], index: 5, kind: input, shape index: {}]
  %s6 = inlined_call_operand.vmem [shape: f32[1,32], index: 6, kind: input, shape index: {}]
  %s7 = inlined_call_operand.vmem [shape: f32[16,32], index: 7, kind: output, shape index: {}]
  %s8 = sld [smem:[#allocation0]]
  $region61: #{transformer_forward.11} parent=0
    _
  %s10 = ssub.s32 1, %s8
  %s11 = scalar_select 0, %s10, %s8
  loop: start=0, step=1, limit=4
  $region2: #{transformer_forward.11} parent=0 // loop_pre_header
    _
  $region3: #{transformer_forward.11} parent=0 // loop_header
    %s13 = sphi 0, %s17
    %p14 = scmp.ge.s32.totalorder %s13, 4
    %s23 = sphi 0, %s25
    %s26 = sphi 0, %s23
    %s27 = sphi 0, %s26
    %s43 = sphi 0, %s27
    %s47 = sphi 0, %s47
    %s49 = sphi 0, %s47
    %s50 = sphi 0, %s49
    %s64 = sphi 0, %s50
    %s68 = sphi 0, %s68
    %s70 = sphi 0, %s68
    %s71 = sphi 0, %s70
    %s85 = sphi 0, %s71
    %s89 = sphi 0, %s89
    %s91 = sphi 0, %s89
    %s92 = sphi 0, %s91
    %s106 = sphi 0, %s92
    %s110 = sphi 0, %s110
    %s112 = sphi 0, %s110
    %s113 = sphi 0, %s112
    %s127 = sphi 0, %s113
    %s131 = sphi 0, %s131
    %s133 = sphi 0, %s131
    %s134 = sphi 0, %s133
    %s148 = sphi 0, %s134
    %s152 = sphi 0, %s152
    %s154 = sphi 0, %s152
    %s155 = sphi 0, %s154
    %s169 = sphi 0, %s155
    %s175 = sphi 0, %s177
    %s178 = sphi 0, %s175
    %s179 = sphi 0, %s178
    %s195 = sphi 0, %s179
  $region4: #{transformer_forward.11} parent=0 // loop_header_branch
    %16 = sbr.rel (%p14) target = $region8
  $region5: #{transformer_forward.11} parent=0 // loop_body
    %s18 = ssub.s32 %s13, 1
    %s19 = ssub.s32 %s13, 2
    %s20 = sadd.s32 %s13, 1
    %s21 = ssub.s32 %s13, %s20
    %p22 = scmp.eq.s32.totalorder %s21, 0
    %s24 = sadd.s32 %s23, 1
    %s25 = scalar_select %p22, %s23, %s24
    %p28 = pneg %p22
    %p29 = scmp.eq.s32.totalorder %s13, 1
    %p30 = por %p28, %p29
    %p31 = scmp.ne.s32.totalorder %s23, %s26
    %p32 = scmp.eq.s32.totalorder %s13, 0
    %p33 = por %p31, %p32
    %p34 = scmp.ne.s32.totalorder %s23, %s26
    %p35 = scmp.eq.s32.totalorder %s18, 1
    %p36 = por %p34, %p35
    %p37 = scmp.ne.s32.totalorder %s26, %s27
    %p38 = scmp.eq.s32.totalorder %s18, 0
    %p39 = por %p37, %p38
    %p40 = scmp.ne.s32.totalorder %s26, %s27
    %p41 = scmp.eq.s32.totalorder %s19, 1
    %p42 = por %p40, %p41
    %p44 = scmp.ne.s32.totalorder %s27, %s43
    %p45 = scmp.eq.s32.totalorder %s19, 0
    %p46 = por %p44, %p45
    %s48 = sadd.s32 %s47, 1
    %p51 = scmp.eq.s32.totalorder %s13, 1
    %p52 = scmp.ne.s32.totalorder %s47, %s49
    %p53 = scmp.eq.s32.totalorder %s13, 0
    %p54 = por %p52, %p53
    %p55 = scmp.ne.s32.totalorder %s47, %s49
    %p56 = scmp.eq.s32.totalorder %s18, 1
    %p57 = por %p55, %p56
    %p58 = scmp.ne.s32.totalorder %s49, %s50
    %p59 = scmp.eq.s32.totalorder %s18, 0
    %p60 = por %p58, %p59
    %p61 = scmp.ne.s32.totalorder %s49, %s50
    %p62 = scmp.eq.s32.totalorder %s19, 1
    %p63 = por %p61, %p62
    %p65 = scmp.ne.s32.totalorder %s50, %s64
    %p66 = scmp.eq.s32.totalorder %s19, 0
    %p67 = por %p65, %p66
    %s69 = sadd.s32 %s68, 1
    %p72 = scmp.eq.s32.totalorder %s13, 1
    %p73 = scmp.ne.s32.totalorder %s68, %s70
    %p74 = scmp.eq.s32.totalorder %s13, 0
    %p75 = por %p73, %p74
    %p76 = scmp.ne.s32.totalorder %s68, %s70
    %p77 = scmp.eq.s32.totalorder %s18, 1
    %p78 = por %p76, %p77
    %p79 = scmp.ne.s32.totalorder %s70, %s71
    %p80 = scmp.eq.s32.totalorder %s18, 0
    %p81 = por %p79, %p80
    %p82 = scmp.ne.s32.totalorder %s70, %s71
    %p83 = scmp.eq.s32.totalorder %s19, 1
    %p84 = por %p82, %p83
    %p86 = scmp.ne.s32.totalorder %s71, %s85
    %p87 = scmp.eq.s32.totalorder %s19, 0
    %p88 = por %p86, %p87
    %s90 = sadd.s32 %s89, 1
    %p93 = scmp.eq.s32.totalorder %s13, 1
    %p94 = scmp.ne.s32.totalorder %s89, %s91
    %p95 = scmp.eq.s32.totalorder %s13, 0
    %p96 = por %p94, %p95
    %p97 = scmp.ne.s32.totalorder %s89, %s91
    %p98 = scmp.eq.s32.totalorder %s18, 1
    %p99 = por %p97, %p98
    %p100 = scmp.ne.s32.totalorder %s91, %s92
    %p101 = scmp.eq.s32.totalorder %s18, 0
    %p102 = por %p100, %p101
    %p103 = scmp.ne.s32.totalorder %s91, %s92
    %p104 = scmp.eq.s32.totalorder %s19, 1
    %p105 = por %p103, %p104
    %p107 = scmp.ne.s32.totalorder %s92, %s106
    %p108 = scmp.eq.s32.totalorder %s19, 0
    %p109 = por %p107, %p108
    %s111 = sadd.s32 %s110, 1
    %p114 = scmp.eq.s32.totalorder %s13, 1
    %p115 = scmp.ne.s32.totalorder %s110, %s112
    %p116 = scmp.eq.s32.totalorder %s13, 0
    %p117 = por %p115, %p116
    %p118 = scmp.ne.s32.totalorder %s110, %s112
    %p119 = scmp.eq.s32.totalorder %s18, 1
    %p120 = por %p118, %p119
    %p121 = scmp.ne.s32.totalorder %s112, %s113
    %p122 = scmp.eq.s32.totalorder %s18, 0
    %p123 = por %p121, %p122
    %p124 = scmp.ne.s32.totalorder %s112, %s113
    %p125 = scmp.eq.s32.totalorder %s19, 1
    %p126 = por %p124, %p125
    %p128 = scmp.ne.s32.totalorder %s113, %s127
    %p129 = scmp.eq.s32.totalorder %s19, 0
    %p130 = por %p128, %p129
    %s132 = sadd.s32 %s131, 1
    %p135 = scmp.eq.s32.totalorder %s13, 1
    %p136 = scmp.ne.s32.totalorder %s131, %s133
    %p137 = scmp.eq.s32.totalorder %s13, 0
    %p138 = por %p136, %p137
    %p139 = scmp.ne.s32.totalorder %s131, %s133
    %p140 = scmp.eq.s32.totalorder %s18, 1
    %p141 = por %p139, %p140
    %p142 = scmp.ne.s32.totalorder %s133, %s134
    %p143 = scmp.eq.s32.totalorder %s18, 0
    %p144 = por %p142, %p143
    %p145 = scmp.ne.s32.totalorder %s133, %s134
    %p146 = scmp.eq.s32.totalorder %s19, 1
    %p147 = por %p145, %p146
    %p149 = scmp.ne.s32.totalorder %s134, %s148
    %p150 = scmp.eq.s32.totalorder %s19, 0
    %p151 = por %p149, %p150
    %s153 = sadd.s32 %s152, 1
    %p156 = scmp.eq.s32.totalorder %s13, 1
    %p157 = scmp.ne.s32.totalorder %s152, %s154
    %p158 = scmp.eq.s32.totalorder %s13, 0
    %p159 = por %p157, %p158
    %p160 = scmp.ne.s32.totalorder %s152, %s154
    %p161 = scmp.eq.s32.totalorder %s18, 1
    %p162 = por %p160, %p161
    %p163 = scmp.ne.s32.totalorder %s154, %s155
    %p164 = scmp.eq.s32.totalorder %s18, 0
    %p165 = por %p163, %p164
    %p166 = scmp.ne.s32.totalorder %s154, %s155
    %p167 = scmp.eq.s32.totalorder %s19, 1
    %p168 = por %p166, %p167
    %p170 = scmp.ne.s32.totalorder %s155, %s169
    %p171 = scmp.eq.s32.totalorder %s19, 0
    %p172 = por %p170, %p171
    %s173 = ssub.s32 %s13, %s20
    %p174 = scmp.eq.s32.totalorder %s173, 0
    %s176 = sadd.s32 %s175, 1
    %s177 = scalar_select %p174, %s175, %s176
    %p180 = pneg %p174
    %p181 = scmp.eq.s32.totalorder %s13, 1
    %p182 = por %p180, %p181
    %p183 = scmp.ne.s32.totalorder %s175, %s178
    %p184 = scmp.eq.s32.totalorder %s13, 0
    %p185 = por %p183, %p184
    %p186 = scmp.ne.s32.totalorder %s175, %s178
    %p187 = scmp.eq.s32.totalorder %s18, 1
    %p188 = por %p186, %p187
    %p189 = scmp.ne.s32.totalorder %s178, %s179
    %p190 = scmp.eq.s32.totalorder %s18, 0
    %p191 = por %p189, %p190
    %p192 = scmp.ne.s32.totalorder %s178, %s179
    %p193 = scmp.eq.s32.totalorder %s19, 1
    %p194 = por %p192, %p193
    %p196 = scmp.ne.s32.totalorder %s179, %s195
    %p197 = scmp.eq.s32.totalorder %s19, 0
    %p198 = por %p196, %p197
    %p199 = scmp.le.s32.totalorder 1, %s13
    %p200 = scmp.lt.s32.totalorder %s13, 3
    %p201 = pnand %p199, %p200
    %p202 = pneg %p201
    // Predicated region
    $region9: #{transformer_forward.11} parent=5 // pred_check
      _
    $region10: #{transformer_forward.11} parent=5 // pred_check_branch
      %204 = sbr.rel (%p201) target = $region12
    $region11: #{transformer_forward.11} parent=5 // pred_region
      %s205 = ssub.s32 %s13, 1
      // Predicated region
      $region13: #{transformer_forward.11} parent=11 // pred_check
        %p206 = pneg %p60
      $region14: #{transformer_forward.11} parent=11 // pred_check_branch
        %208 = sbr.rel (%p206) target = $region16
      $region15: #{transformer_forward.11} parent=11 // pred_region
        _
      $region16: #{transformer_forward.11} parent=11 // pred_fallthru
        _
      // Predicated region
      $region17: #{transformer_forward.11} parent=11 // pred_check
        %p209 = pneg %p81
      $region18: #{transformer_forward.11} parent=11 // pred_check_branch
        %211 = sbr.rel (%p209) target = $region20
      $region19: #{transformer_forward.11} parent=11 // pred_region
        _
      $region20: #{transformer_forward.11} parent=11 // pred_fallthru
        _
      // Predicated region
      $region21: #{transformer_forward.11} parent=11 // pred_check
        %p212 = pneg %p102
      $region22: #{transformer_forward.11} parent=11 // pred_check_branch
        %214 = sbr.rel (%p212) target = $region24
      $region23: #{transformer_forward.11} parent=11 // pred_region
        _
      $region24: #{transformer_forward.11} parent=11 // pred_fallthru
        _
      // Predicated region
      $region25: #{transformer_forward.11} parent=11 // pred_check
        %p215 = pneg %p123
      $region26: #{transformer_forward.11} parent=11 // pred_check_branch
        %217 = sbr.rel (%p215) target = $region28
      $region27: #{transformer_forward.11} parent=11 // pred_region
        _
      $region28: #{transformer_forward.11} parent=11 // pred_fallthru
        _
      // Predicated region
      $region29: #{transformer_forward.11} parent=11 // pred_check
        %p218 = pneg %p144
      $region30: #{transformer_forward.11} parent=11 // pred_check_branch
        %220 = sbr.rel (%p218) target = $region32
      $region31: #{transformer_forward.11} parent=11 // pred_region
        _
      $region32: #{transformer_forward.11} parent=11 // pred_fallthru
        _
      // Predicated region
      $region33: #{transformer_forward.11} parent=11 // pred_check
        %p221 = pneg %p165
      $region34: #{transformer_forward.11} parent=11 // pred_check_branch
        %223 = sbr.rel (%p221) target = $region36
      $region35: #{transformer_forward.11} parent=11 // pred_region
        _
      $region36: #{transformer_forward.11} parent=11 // pred_fallthru
        _
    $region12: #{transformer_forward.11} parent=5 // pred_fallthru
      _
    %p224 = scmp.lt.s32.totalorder %s13, 2
    // Predicated region
    $region37: #{transformer_forward.11} parent=5 // pred_check
      %p225 = pneg %p224
    $region38: #{transformer_forward.11} parent=5 // pred_check_branch
      %227 = sbr.rel (%p225) target = $region40
    $region39: #{transformer_forward.11} parent=5 // pred_region
      // Predicated region
      $region41: #{transformer_forward.11} parent=39 // pred_check
        %p228 = pneg %p33
      $region42: #{transformer_forward.11} parent=39 // pred_check_branch
        %230 = sbr.rel (%p228) target = $region44
      $region43: #{transformer_forward.11} parent=39 // pred_region
        %p231 = scmp.lt.s32.totalorder %s13, 1
        %s232 = scalar_select %p231, %s13, 1
        %s233 = smul.addr %s232, 8
        %s234 = scalar_lea.vmem %s0, %s233
      $region44: #{transformer_forward.11} parent=39 // pred_fallthru
        _
    $region40: #{transformer_forward.11} parent=5 // pred_fallthru
      _
    %p235 = scmp.le.s32.totalorder 1, %s13
    %p236 = scmp.lt.s32.totalorder %s13, 3
    %p237 = pnand %p235, %p236
    %p238 = pneg %p237
    // Predicated region
    $region45: #{transformer_forward.11} parent=5 // pred_check
      _
    $region46: #{transformer_forward.11} parent=5 // pred_check_branch
      %240 = sbr.rel (%p237) target = $region48
    $region47: #{transformer_forward.11} parent=5 // pred_region
      %s241 = ssub.s32 %s13, 1
      %p242 = scmp.lt.s32.totalorder %s18, 1
      %s243 = scalar_select %p242, %s18, 1
      %s244 = smul.addr %s243, 8
      %s245 = scalar_lea.vmem %s0, %s244
      %p246 = pneg %p39
      %p247 = pneg %p36
      %p248 = pneg %p60
      %p249 = pneg %p57
      %p250 = pneg %p81
      %p251 = pneg %p78
      %p252 = pneg %p102
      %p253 = pneg %p99
      %p254 = pneg %p123
      %p255 = pneg %p120
      %p256 = pneg %p144
      %p257 = pneg %p141
      %p258 = pneg %p165
      %p259 = pneg %p162
      %p260 = pneg %p191
      %p261 = pneg %p188
      %p262 = scmp.lt.s32.totalorder %s18, 1
      %s263 = scalar_select %p262, %s18, 1
      %s264 = smul.addr %s263, 8
      %s265 = scalar_lea.vmem %s7, %s264
      %p266 = scmp.lt.s32.totalorder %s18, 1
      %s267 = scalar_select %p266, %s18, 1
      %s268 = smul.addr %s267, 8
      %s269 = scalar_lea.vmem %s0, %s268
      %p270 = scmp.lt.s32.totalorder %s18, 1
      %s271 = scalar_select %p270, %s18, 1
      %s272 = smul.addr %s271, 8
      %s273 = scalar_lea.vmem %s7, %s272
      %v274 = vld [vmem:[%s269] sm:$0xff]
      %v275 = vld [vmem:[%s1] sm:$0xff]
      %v276 = vld [vmem:[%s1 + $0x8] sm:$0xff]
      %v277 = vld [vmem:[%s1 + $0x10] sm:$0xff]
      %v278 = vld [vmem:[%s1 + $0x18] sm:$0xff]
      %v279 = vld [vmem:[%s2] sm:$0x1]
      %v281 = vlaneseq
      %v282 = vshrl.u32 %v281, 7
      %v283 = vsub.s32 0, %v282
      %v284 = vrot.slane %v279, %v283
      %vm286 = vcmask 261120
      %v288 = vsel %vm286, %v274, 0
      %290 = vmatprep.subr.mxu0 0.0
      %291 = vmatpush1.msra.mxu0 0.0
      %292 = vmatprep.subr.mxu0 0.0
      %293 = vmatpush1.msra.mxu0 0.0
      %294 = vmatprep.subr.mxu0 0.0
      %295 = vmatpush1.msra.mxu0 0.0
      %296 = vmatprep.subr.mxu0 0.0
      %297 = vmatpush1.msra.mxu0 0.0
      %298 = vmatprep.subr.mxu0 0.0
      %299 = vmatpush1.msra.mxu0 0.0
      %300 = vmatprep.subr.mxu0 0.0
      %301 = vmatpush1.msra.mxu0 0.0
      %302 = vmatprep.subr.mxu0 0.0
      %303 = vmatpush1.msra.mxu0 0.0
      %304 = vmatprep.subr.mxu0 0.0
      %305 = vmatpush1.msra.mxu0 0.0
      %306 = vmatprep.subr.mxu0 0.0
      %307 = vmatpush1.msra.mxu0 0.0
      %308 = vmatprep.subr.mxu0 0.0
      %309 = vmatpush1.msra.mxu0 0.0
      %310 = vmatprep.subr.mxu0 0.0
      %311 = vmatpush1.msra.mxu0 0.0
      %312 = vmatprep.subr.mxu0 0.0
      %313 = vmatpush1.msra.mxu0 0.0
      %314 = vmatprep.subr.mxu0 0.0
      %315 = vmatpush1.msra.mxu0 %v278
      %316 = vmatprep.subr.mxu0 0.0
      %317 = vmatpush1.msra.mxu0 %v277
      %318 = vmatprep.subr.mxu0 0.0
      %319 = vmatpush1.msra.mxu0 %v276
      %320 = vmatprep.subr.mxu0 0.0
      %321 = vmatpush1.msra.mxu0 %v275
      %322 = vmatprep.subr.mxu0 0.0
      %323 = vmatpush2.msra.mxu0 0.0
      %324 = vmatprep.subr.mxu0 0.0
      %325 = vmatpush2.msra.mxu0 0.0
      %326 = vmatprep.subr.mxu0 0.0
      %327 = vmatpush2.msra.mxu0 0.0
      %328 = vmatprep.subr.mxu0 0.0
      %329 = vmatpush2.msra.mxu0 0.0
      %330 = vmatprep.subr.mxu0 0.0
      %331 = vmatpush2.msra.mxu0 0.0
      %332 = vmatprep.subr.mxu0 0.0
      %333 = vmatpush2.msra.mxu0 0.0
      %334 = vmatprep.subr.mxu0 0.0
      %335 = vmatpush2.msra.mxu0 0.0
      %336 = vmatprep.subr.mxu0 0.0
      %337 = vmatpush2.msra.mxu0 0.0
      %338 = vmatprep.subr.mxu0 0.0
      %339 = vmatpush2.msra.mxu0 0.0
      %340 = vmatprep.subr.mxu0 0.0
      %341 = vmatpush2.msra.mxu0 0.0
      %342 = vmatprep.subr.mxu0 0.0
      %343 = vmatpush2.msra.mxu0 0.0
      %344 = vmatprep.subr.mxu0 0.0
      %345 = vmatpush2.msra.mxu0 0.0
      %346 = vmatprep.subr.mxu0 0.0
      %347 = vmatpush2.msra.mxu0 0.0
      %348 = vmatprep.subr.mxu0 0.0
      %349 = vmatpush2.msra.mxu0 0.0
      %350 = vmatprep.subr.mxu0 0.0
      %351 = vmatpush2.msra.mxu0 0.0
      %352 = vmatprep.subr.mxu0 0.0
      %353 = vmatpush2.msra.mxu0 0.0
      %354 = vmatprep.mubr.f32.mxu0 0.0
      %355 = vmatmul.mubr.f32.gmra.mxu0 %v288
      %v356 = vpop.f32.mrf.mxu0
      %v357 = vadd.f32 %v284, %v356
      %v358 = vpop.f32.mrf.mxu0
      %359 = vdwg.mxu0
      %v360 = vmax.f32 %v357, 0.0
      %v361 = vld [vmem:[%s3] sm:$0xff]
      %v362 = vld [vmem:[%s3 + $0x8] sm:$0xff]
      %v363 = vld [vmem:[%s3 + $0x10] sm:$0xff]
      %v364 = vld [vmem:[%s3 + $0x18] sm:$0xff]
      %v365 = vld [vmem:[%s3 + $0x20] sm:$0xff]
      %v366 = vld [vmem:[%s3 + $0x28] sm:$0xff]
      %v367 = vld [vmem:[%s3 + $0x30] sm:$0xff]
      %v368 = vld [vmem:[%s3 + $0x38] sm:$0xff]
      %v369 = vld [vmem:[%s4] sm:$0x1]
      %v371 = vlaneseq
      %v372 = vshrl.u32 %v371, 7
      %v373 = vsub.s32 0, %v372
      %v374 = vrot.slane %v369, %v373
      %vm376 = vcmask 523264
      %v378 = vsel %vm376, %v360, 0
      %380 = vmatprep.subr.mxu0 0.0
      %381 = vmatpush1.msra.mxu0 0.0
      %382 = vmatprep.subr.mxu0 0.0
      %383 = vmatpush1.msra.mxu0 0.0
      %384 = vmatprep.subr.mxu0 0.0
      %385 = vmatpush1.msra.mxu0 0.0
      %386 = vmatprep.subr.mxu0 0.0
      %387 = vmatpush1.msra.mxu0 0.0
      %388 = vmatprep.subr.mxu0 0.0
      %389 = vmatpush1.msra.mxu0 0.0
      %390 = vmatprep.subr.mxu0 0.0
      %391 = vmatpush1.msra.mxu0 0.0
      %392 = vmatprep.subr.mxu0 0.0
      %393 = vmatpush1.msra.mxu0 0.0
      %394 = vmatprep.subr.mxu0 0.0
      %395 = vmatpush1.msra.mxu0 0.0
      %396 = vmatprep.subr.mxu0 0.0
      %397 = vmatpush1.msra.mxu0 %v368
      %398 = vmatprep.subr.mxu0 0.0
      %399 = vmatpush1.msra.mxu0 %v367
      %400 = vmatprep.subr.mxu0 0.0
      %401 = vmatpush1.msra.mxu0 %v366
      %402 = vmatprep.subr.mxu0 0.0
      %403 = vmatpush1.msra.mxu0 %v365
      %404 = vmatprep.subr.mxu0 0.0
      %405 = vmatpush1.msra.mxu0 %v364
      %406 = vmatprep.subr.mxu0 0.0
      %407 = vmatpush1.msra.mxu0 %v363
      %408 = vmatprep.subr.mxu0 0.0
      %409 = vmatpush1.msra.mxu0 %v362
      %410 = vmatprep.subr.mxu0 0.0
      %411 = vmatpush1.msra.mxu0 %v361
      %412 = vmatprep.subr.mxu0 0.0
      %413 = vmatpush2.msra.mxu0 0.0
      %414 = vmatprep.subr.mxu0 0.0
      %415 = vmatpush2.msra.mxu0 0.0
      %416 = vmatprep.subr.mxu0 0.0
      %417 = vmatpush2.msra.mxu0 0.0
      %418 = vmatprep.subr.mxu0 0.0
      %419 = vmatpush2.msra.mxu0 0.0
      %420 = vmatprep.subr.mxu0 0.0
      %421 = vmatpush2.msra.mxu0 0.0
      %422 = vmatprep.subr.mxu0 0.0
      %423 = vmatpush2.msra.mxu0 0.0
      %424 = vmatprep.subr.mxu0 0.0
      %425 = vmatpush2.msra.mxu0 0.0
      %426 = vmatprep.subr.mxu0 0.0
      %427 = vmatpush2.msra.mxu0 0.0
      %428 = vmatprep.subr.mxu0 0.0
      %429 = vmatpush2.msra.mxu0 0.0
      %430 = vmatprep.subr.mxu0 0.0
      %431 = vmatpush2.msra.mxu0 0.0
      %432 = vmatprep.subr.mxu0 0.0
      %433 = vmatpush2.msra.mxu0 0.0
      %434 = vmatprep.subr.mxu0 0.0
      %435 = vmatpush2.msra.mxu0 0.0
      %436 = vmatprep.subr.mxu0 0.0
      %437 = vmatpush2.msra.mxu0 0.0
      %438 = vmatprep.subr.mxu0 0.0
      %439 = vmatpush2.msra.mxu0 0.0
      %440 = vmatprep.subr.mxu0 0.0
      %441 = vmatpush2.msra.mxu0 0.0
      %442 = vmatprep.subr.mxu0 0.0
      %443 = vmatpush2.msra.mxu0 0.0
      %444 = vmatprep.mubr.f32.mxu0 0.0
      %445 = vmatmul.mubr.f32.gmra.mxu0 %v378
      %v446 = vpop.f32.mrf.mxu0
      %v447 = vadd.f32 %v374, %v446
      %v448 = vpop.f32.mrf.mxu0
      %449 = vdwg.mxu0
      %v450 = vadd.f32 %v274, %v447
      %v451 = vsel %vm286, %v450, 0.0
      %452 = vadd.xlane.f32.xlu0 %v451
      %v453 = vpop.xlane.xlu0 %452
      %v454 = vrcp.pop 32.0
      %v455 = vmul.f32 %v453, %v454
      %v456 = vsub.f32 %v450, %v455
      %v457 = vmul.f32 %v456, %v456
      %v458 = vsel %vm286, %v457, 0.0
      %459 = vadd.xlane.f32.xlu0 %v458
      %v460 = vpop.xlane.xlu0 %459
      %v461 = vmul.f32 %v460, %v454
      %v462 = vadd.f32 %v461, 1e-05
      %v463 = vrsqrt.pop %v462
      %v464 = vmul.f32 %v456, %v463
      %v465 = vld [vmem:[%s5] sm:$0x1]
      %v467 = vlaneseq
      %v468 = vshrl.u32 %v467, 7
      %v469 = vsub.s32 0, %v468
      %v470 = vrot.slane %v465, %v469
      %v472 = vmul.f32 %v464, %v470
      %v473 = vld [vmem:[%s6] sm:$0x1]
      %v475 = vlaneseq
      %v476 = vshrl.u32 %v475, 7
      %v477 = vsub.s32 0, %v476
      %v478 = vrot.slane %v473, %v477
      %v480 = vadd.f32 %v472, %v478
      %481 = vst.msk [vmem:[%s273] sm:$0xff] %vm286, %v480
      %p482 = scmp.lt.s32.totalorder %s18, 1
      %s483 = scalar_select %p482, %s18, 1
      %s484 = smul.addr %s483, 8
      %s485 = scalar_lea.vmem %s7, %s484
      // Predicated region
      $region49: #{transformer_forward.11} parent=47 // pred_check
        %p486 = pneg %p188
      $region50: #{transformer_forward.11} parent=47 // pred_check_branch
        %488 = sbr.rel (%p486) target = $region52
      $region51: #{transformer_forward.11} parent=47 // pred_region
        _
      $region52: #{transformer_forward.11} parent=47 // pred_fallthru
        _
    $region48: #{transformer_forward.11} parent=5 // pred_fallthru
      _
    %p489 = scmp.le.s32.totalorder 2, %s13
    // Predicated region
    $region53: #{transformer_forward.11} parent=5 // pred_check
      %p490 = pneg %p489
    $region54: #{transformer_forward.11} parent=5 // pred_check_branch
      %492 = sbr.rel (%p490) target = $region56
    $region55: #{transformer_forward.11} parent=5 // pred_region
      %s493 = ssub.s32 %s13, 2
      // Predicated region
      $region57: #{transformer_forward.11} parent=55 // pred_check
        %p494 = pneg %p194
      $region58: #{transformer_forward.11} parent=55 // pred_check_branch
        %496 = sbr.rel (%p494) target = $region60
      $region59: #{transformer_forward.11} parent=55 // pred_region
        %p497 = scmp.lt.s32.totalorder %s19, 1
        %s498 = scalar_select %p497, %s19, 1
        %s499 = smul.addr %s498, 8
        %s500 = scalar_lea.vmem %s7, %s499
      $region60: #{transformer_forward.11} parent=55 // pred_fallthru
        _
    $region56: #{transformer_forward.11} parent=5 // pred_fallthru
      _
  $region6: #{transformer_forward.11} parent=0 // loop_footer
    %s17 = sadd.s32 1, %s13
  $region7: #{transformer_forward.11} parent=0 // loop_footer_branch
    %12 = sbr.rel target = $region3
  $region8: #{transformer_forward.11} parent=0 // loop_exit
    _

// kernel: transformer_forward.10
$region0: #{transformer_forward.10}
  #allocation0 [shape = 'u32[]', space=smem, size = 0x4, offset = 0x4, fixed_abs, tag = 'smem constant byte address 0x4 - core index']
  #allocation1 [shape = 'u32[144,128]{1,0:T(1,128)}', space=vmem, size = 0x12000, scoped, tag = 'internal scratch']
  %s0 = inlined_call_operand.vmem [shape: f32[2,4,8,32], index: 0, kind: input, shape index: {}]
  %s1 = inlined_call_operand.vmem [shape: f32[2,4,8,32], index: 1, kind: input, shape index: {}]
  %s2 = inlined_call_operand.vmem [shape: f32[2,4,8,32], index: 2, kind: input, shape index: {}]
  %s3 = inlined_call_operand.vmem [shape: f32[2,8,32], index: 3, kind: input, shape index: {}]
  %s4 = inlined_call_operand.vmem [shape: f32[128,32], index: 4, kind: input, shape index: {}]
  %s5 = inlined_call_operand.vmem [shape: f32[1,32], index: 5, kind: input, shape index: {}]
  %s6 = inlined_call_operand.vmem [shape: f32[1,32], index: 6, kind: input, shape index: {}]
  %s7 = inlined_call_operand.vmem [shape: f32[1,32], index: 7, kind: input, shape index: {}]
  %s8 = inlined_call_operand.vmem [shape: f32[2,8,32], index: 8, kind: output, shape index: {}]
  %s9 = sld [smem:[#allocation0]]
  $region65: #{transformer_forward.10} parent=0
    _
  %s11 = ssub.s32 1, %s9
  %s12 = scalar_select 0, %s11, %s9
  loop: start=0, step=1, limit=4
  $region2: #{transformer_forward.10} parent=0 // loop_pre_header
    _
  $region3: #{transformer_forward.10} parent=0 // loop_header
    %s14 = sphi 0, %s18
    %p15 = scmp.ge.s32.totalorder %s14, 4
    %s24 = sphi 0, %s26
    %s27 = sphi 0, %s24
    %s28 = sphi 0, %s27
    %s44 = sphi 0, %s28
    %s50 = sphi 0, %s52
    %s53 = sphi 0, %s50
    %s54 = sphi 0, %s53
    %s70 = sphi 0, %s54
    %s76 = sphi 0, %s78
    %s79 = sphi 0, %s76
    %s80 = sphi 0, %s79
    %s96 = sphi 0, %s80
    %s102 = sphi 0, %s104
    %s105 = sphi 0, %s102
    %s106 = sphi 0, %s105
    %s122 = sphi 0, %s106
    %s126 = sphi 0, %s126
    %s128 = sphi 0, %s126
    %s129 = sphi 0, %s128
    %s143 = sphi 0, %s129
    %s147 = sphi 0, %s147
    %s149 = sphi 0, %s147
    %s150 = sphi 0, %s149
    %s164 = sphi 0, %s150
    %s168 = sphi 0, %s168
    %s170 = sphi 0, %s168
    %s171 = sphi 0, %s170
    %s185 = sphi 0, %s171
    %s189 = sphi 0, %s189
    %s191 = sphi 0, %s189
    %s192 = sphi 0, %s191
    %s206 = sphi 0, %s192
    %s212 = sphi 0, %s214
    %s215 = sphi 0, %s212
    %s216 = sphi 0, %s215
    %s232 = sphi 0, %s216
  $region4: #{transformer_forward.10} parent=0 // loop_header_branch
    %17 = sbr.rel (%p15) target = $region8
  $region5: #{transformer_forward.10} parent=0 // loop_body
    %s19 = ssub.s32 %s14, 1
    %s20 = ssub.s32 %s14, 2
    %s21 = sadd.s32 %s14, 1
    %s22 = ssub.s32 %s14, %s21
    %p23 = scmp.eq.s32.totalorder %s22, 0
    %s25 = sadd.s32 %s24, 1
    %s26 = scalar_select %p23, %s24, %s25
    %p29 = pneg %p23
    %p30 = scmp.eq.s32.totalorder %s14, 1
    %p31 = por %p29, %p30
    %p32 = scmp.ne.s32.totalorder %s24, %s27
    %p33 = scmp.eq.s32.totalorder %s14, 0
    %p34 = por %p32, %p33
    %p35 = scmp.ne.s32.totalorder %s24, %s27
    %p36 = scmp.eq.s32.totalorder %s19, 1
    %p37 = por %p35, %p36
    %p38 = scmp.ne.s32.totalorder %s27, %s28
    %p39 = scmp.eq.s32.totalorder %s19, 0
    %p40 = por %p38, %p39
    %p41 = scmp.ne.s32.totalorder %s27, %s28
    %p42 = scmp.eq.s32.totalorder %s20, 1
    %p43 = por %p41, %p42
    %p45 = scmp.ne.s32.totalorder %s28, %s44
    %p46 = scmp.eq.s32.totalorder %s20, 0
    %p47 = por %p45, %p46
    %s48 = ssub.s32 %s14, %s21
    %p49 = scmp.eq.s32.totalorder %s48, 0
    %s51 = sadd.s32 %s50, 1
    %s52 = scalar_select %p49, %s50, %s51
    %p55 = pneg %p49
    %p56 = scmp.eq.s32.totalorder %s14, 1
    %p57 = por %p55, %p56
    %p58 = scmp.ne.s32.totalorder %s50, %s53
    %p59 = scmp.eq.s32.totalorder %s14, 0
    %p60 = por %p58, %p59
    %p61 = scmp.ne.s32.totalorder %s50, %s53
    %p62 = scmp.eq.s32.totalorder %s19, 1
    %p63 = por %p61, %p62
    %p64 = scmp.ne.s32.totalorder %s53, %s54
    %p65 = scmp.eq.s32.totalorder %s19, 0
    %p66 = por %p64, %p65
    %p67 = scmp.ne.s32.totalorder %s53, %s54
    %p68 = scmp.eq.s32.totalorder %s20, 1
    %p69 = por %p67, %p68
    %p71 = scmp.ne.s32.totalorder %s54, %s70
    %p72 = scmp.eq.s32.totalorder %s20, 0
    %p73 = por %p71, %p72
    %s74 = ssub.s32 %s14, %s21
    %p75 = scmp.eq.s32.totalorder %s74, 0
    %s77 = sadd.s32 %s76, 1
    %s78 = scalar_select %p75, %s76, %s77
    %p81 = pneg %p75
    %p82 = scmp.eq.s32.totalorder %s14, 1
    %p83 = por %p81, %p82
    %p84 = scmp.ne.s32.totalorder %s76, %s79
    %p85 = scmp.eq.s32.totalorder %s14, 0
    %p86 = por %p84, %p85
    %p87 = scmp.ne.s32.totalorder %s76, %s79
    %p88 = scmp.eq.s32.totalorder %s19, 1
    %p89 = por %p87, %p88
    %p90 = scmp.ne.s32.totalorder %s79, %s80
    %p91 = scmp.eq.s32.totalorder %s19, 0
    %p92 = por %p90, %p91
    %p93 = scmp.ne.s32.totalorder %s79, %s80
    %p94 = scmp.eq.s32.totalorder %s20, 1
    %p95 = por %p93, %p94
    %p97 = scmp.ne.s32.totalorder %s80, %s96
    %p98 = scmp.eq.s32.totalorder %s20, 0
    %p99 = por %p97, %p98
    %s100 = ssub.s32 %s14, %s21
    %p101 = scmp.eq.s32.totalorder %s100, 0
    %s103 = sadd.s32 %s102, 1
    %s104 = scalar_select %p101, %s102, %s103
    %p107 = pneg %p101
    %p108 = scmp.eq.s32.totalorder %s14, 1
    %p109 = por %p107, %p108
    %p110 = scmp.ne.s32.totalorder %s102, %s105
    %p111 = scmp.eq.s32.totalorder %s14, 0
    %p112 = por %p110, %p111
    %p113 = scmp.ne.s32.totalorder %s102, %s105
    %p114 = scmp.eq.s32.totalorder %s19, 1
    %p115 = por %p113, %p114
    %p116 = scmp.ne.s32.totalorder %s105, %s106
    %p117 = scmp.eq.s32.totalorder %s19, 0
    %p118 = por %p116, %p117
    %p119 = scmp.ne.s32.totalorder %s105, %s106
    %p120 = scmp.eq.s32.totalorder %s20, 1
    %p121 = por %p119, %p120
    %p123 = scmp.ne.s32.totalorder %s106, %s122
    %p124 = scmp.eq.s32.totalorder %s20, 0
    %p125 = por %p123, %p124
    %s127 = sadd.s32 %s126, 1
    %p130 = scmp.eq.s32.totalorder %s14, 1
    %p131 = scmp.ne.s32.totalorder %s126, %s128
    %p132 = scmp.eq.s32.totalorder %s14, 0
    %p133 = por %p131, %p132
    %p134 = scmp.ne.s32.totalorder %s126, %s128
    %p135 = scmp.eq.s32.totalorder %s19, 1
    %p136 = por %p134, %p135
    %p137 = scmp.ne.s32.totalorder %s128, %s129
    %p138 = scmp.eq.s32.totalorder %s19, 0
    %p139 = por %p137, %p138
    %p140 = scmp.ne.s32.totalorder %s128, %s129
    %p141 = scmp.eq.s32.totalorder %s20, 1
    %p142 = por %p140, %p141
    %p144 = scmp.ne.s32.totalorder %s129, %s143
    %p145 = scmp.eq.s32.totalorder %s20, 0
    %p146 = por %p144, %p145
    %s148 = sadd.s32 %s147, 1
    %p151 = scmp.eq.s32.totalorder %s14, 1
    %p152 = scmp.ne.s32.totalorder %s147, %s149
    %p153 = scmp.eq.s32.totalorder %s14, 0
    %p154 = por %p152, %p153
    %p155 = scmp.ne.s32.totalorder %s147, %s149
    %p156 = scmp.eq.s32.totalorder %s19, 1
    %p157 = por %p155, %p156
    %p158 = scmp.ne.s32.totalorder %s149, %s150
    %p159 = scmp.eq.s32.totalorder %s19, 0
    %p160 = por %p158, %p159
    %p161 = scmp.ne.s32.totalorder %s149, %s150
    %p162 = scmp.eq.s32.totalorder %s20, 1
    %p163 = por %p161, %p162
    %p165 = scmp.ne.s32.totalorder %s150, %s164
    %p166 = scmp.eq.s32.totalorder %s20, 0
    %p167 = por %p165, %p166
    %s169 = sadd.s32 %s168, 1
    %p172 = scmp.eq.s32.totalorder %s14, 1
    %p173 = scmp.ne.s32.totalorder %s168, %s170
    %p174 = scmp.eq.s32.totalorder %s14, 0
    %p175 = por %p173, %p174
    %p176 = scmp.ne.s32.totalorder %s168, %s170
    %p177 = scmp.eq.s32.totalorder %s19, 1
    %p178 = por %p176, %p177
    %p179 = scmp.ne.s32.totalorder %s170, %s171
    %p180 = scmp.eq.s32.totalorder %s19, 0
    %p181 = por %p179, %p180
    %p182 = scmp.ne.s32.totalorder %s170, %s171
    %p183 = scmp.eq.s32.totalorder %s20, 1
    %p184 = por %p182, %p183
    %p186 = scmp.ne.s32.totalorder %s171, %s185
    %p187 = scmp.eq.s32.totalorder %s20, 0
    %p188 = por %p186, %p187
    %s190 = sadd.s32 %s189, 1
    %p193 = scmp.eq.s32.totalorder %s14, 1
    %p194 = scmp.ne.s32.totalorder %s189, %s191
    %p195 = scmp.eq.s32.totalorder %s14, 0
    %p196 = por %p194, %p195
    %p197 = scmp.ne.s32.totalorder %s189, %s191
    %p198 = scmp.eq.s32.totalorder %s19, 1
    %p199 = por %p197, %p198
    %p200 = scmp.ne.s32.totalorder %s191, %s192
    %p201 = scmp.eq.s32.totalorder %s19, 0
    %p202 = por %p200, %p201
    %p203 = scmp.ne.s32.totalorder %s191, %s192
    %p204 = scmp.eq.s32.totalorder %s20, 1
    %p205 = por %p203, %p204
    %p207 = scmp.ne.s32.totalorder %s192, %s206
    %p208 = scmp.eq.s32.totalorder %s20, 0
    %p209 = por %p207, %p208
    %s210 = ssub.s32 %s14, %s21
    %p211 = scmp.eq.s32.totalorder %s210, 0
    %s213 = sadd.s32 %s212, 1
    %s214 = scalar_select %p211, %s212, %s213
    %p217 = pneg %p211
    %p218 = scmp.eq.s32.totalorder %s14, 1
    %p219 = por %p217, %p218
    %p220 = scmp.ne.s32.totalorder %s212, %s215
    %p221 = scmp.eq.s32.totalorder %s14, 0
    %p222 = por %p220, %p221
    %p223 = scmp.ne.s32.totalorder %s212, %s215
    %p224 = scmp.eq.s32.totalorder %s19, 1
    %p225 = por %p223, %p224
    %p226 = scmp.ne.s32.totalorder %s215, %s216
    %p227 = scmp.eq.s32.totalorder %s19, 0
    %p228 = por %p226, %p227
    %p229 = scmp.ne.s32.totalorder %s215, %s216
    %p230 = scmp.eq.s32.totalorder %s20, 1
    %p231 = por %p229, %p230
    %p233 = scmp.ne.s32.totalorder %s216, %s232
    %p234 = scmp.eq.s32.totalorder %s20, 0
    %p235 = por %p233, %p234
    %p236 = scmp.le.s32.totalorder 1, %s14
    %p237 = scmp.lt.s32.totalorder %s14, 3
    %p238 = pnand %p236, %p237
    %p239 = pneg %p238
    // Predicated region
    $region9: #{transformer_forward.10} parent=5 // pred_check
      _
    $region10: #{transformer_forward.10} parent=5 // pred_check_branch
      %241 = sbr.rel (%p238) target = $region12
    $region11: #{transformer_forward.10} parent=5 // pred_region
      %s242 = ssub.s32 %s14, 1
      // Predicated region
      $region13: #{transformer_forward.10} parent=11 // pred_check
        %p243 = pneg %p139
      $region14: #{transformer_forward.10} parent=11 // pred_check_branch
        %245 = sbr.rel (%p243) target = $region16
      $region15: #{transformer_forward.10} parent=11 // pred_region
        _
      $region16: #{transformer_forward.10} parent=11 // pred_fallthru
        _
      // Predicated region
      $region17: #{transformer_forward.10} parent=11 // pred_check
        %p246 = pneg %p160
      $region18: #{transformer_forward.10} parent=11 // pred_check_branch
        %248 = sbr.rel (%p246) target = $region20
      $region19: #{transformer_forward.10} parent=11 // pred_region
        _
      $region20: #{transformer_forward.10} parent=11 // pred_fallthru
        _
      // Predicated region
      $region21: #{transformer_forward.10} parent=11 // pred_check
        %p249 = pneg %p181
      $region22: #{transformer_forward.10} parent=11 // pred_check_branch
        %251 = sbr.rel (%p249) target = $region24
      $region23: #{transformer_forward.10} parent=11 // pred_region
        _
      $region24: #{transformer_forward.10} parent=11 // pred_fallthru
        _
      // Predicated region
      $region25: #{transformer_forward.10} parent=11 // pred_check
        %p252 = pneg %p202
      $region26: #{transformer_forward.10} parent=11 // pred_check_branch
        %254 = sbr.rel (%p252) target = $region28
      $region27: #{transformer_forward.10} parent=11 // pred_region
        _
      $region28: #{transformer_forward.10} parent=11 // pred_fallthru
        _
    $region12: #{transformer_forward.10} parent=5 // pred_fallthru
      _
    %p255 = scmp.lt.s32.totalorder %s14, 2
    // Predicated region
    $region29: #{transformer_forward.10} parent=5 // pred_check
      %p256 = pneg %p255
    $region30: #{transformer_forward.10} parent=5 // pred_check_branch
      %258 = sbr.rel (%p256) target = $region32
    $region31: #{transformer_forward.10} parent=5 // pred_region
      // Predicated region
      $region33: #{transformer_forward.10} parent=31 // pred_check
        %p259 = pneg %p34
      $region34: #{transformer_forward.10} parent=31 // pred_check_branch
        %261 = sbr.rel (%p259) target = $region36
      $region35: #{transformer_forward.10} parent=31 // pred_region
        %p262 = scmp.lt.s32.totalorder %s14, 1
        %s263 = scalar_select %p262, %s14, 1
        %s264 = smul.addr %s263, 4
        %s265 = smul.addr %s264, 8
        %s266 = scalar_lea.vmem %s0, %s265
      $region36: #{transformer_forward.10} parent=31 // pred_fallthru
        _
      // Predicated region
      $region37: #{transformer_forward.10} parent=31 // pred_check
        %p267 = pneg %p60
      $region38: #{transformer_forward.10} parent=31 // pred_check_branch
        %269 = sbr.rel (%p267) target = $region40
      $region39: #{transformer_forward.10} parent=31 // pred_region
        %p270 = scmp.lt.s32.totalorder %s14, 1
        %s271 = scalar_select %p270, %s14, 1
        %s272 = smul.addr %s271, 4
        %s273 = smul.addr %s272, 8
        %s274 = scalar_lea.vmem %s1, %s273
      $region40: #{transformer_forward.10} parent=31 // pred_fallthru
        _
      // Predicated region
      $region41: #{transformer_forward.10} parent=31 // pred_check
        %p275 = pneg %p86
      $region42: #{transformer_forward.10} parent=31 // pred_check_branch
        %277 = sbr.rel (%p275) target = $region44
      $region43: #{transformer_forward.10} parent=31 // pred_region
        %p278 = scmp.lt.s32.totalorder %s14, 1
        %s279 = scalar_select %p278, %s14, 1
        %s280 = smul.addr %s279, 4
        %s281 = smul.addr %s280, 8
        %s282 = scalar_lea.vmem %s2, %s281
      $region44: #{transformer_forward.10} parent=31 // pred_fallthru
        _
      // Predicated region
      $region45: #{transformer_forward.10} parent=31 // pred_check
        %p283 = pneg %p112
      $region46: #{transformer_forward.10} parent=31 // pred_check_branch
        %285 = sbr.rel (%p283) target = $region48
      $region47: #{transformer_forward.10} parent=31 // pred_region
        %p286 = scmp.lt.s32.totalorder %s14, 1
        %s287 = scalar_select %p286, %s14, 1
        %s288 = smul.addr %s287, 8
        %s289 = scalar_lea.vmem %s3, %s288
      $region48: #{transformer_forward.10} parent=31 // pred_fallthru
        _
    $region32: #{transformer_forward.10} parent=5 // pred_fallthru
      _
    %p290 = scmp.le.s32.totalorder 1, %s14
    %p291 = scmp.lt.s32.totalorder %s14, 3
    %p292 = pnand %p290, %p291
    %p293 = pneg %p292
    // Predicated region
    $region49: #{transformer_forward.10} parent=5 // pred_check
      _
    $region50: #{transformer_forward.10} parent=5 // pred_check_branch
      %295 = sbr.rel (%p292) target = $region52
    $region51: #{transformer_forward.10} parent=5 // pred_region
      %s296 = ssub.s32 %s14, 1
      %p297 = scmp.lt.s32.totalorder %s19, 1
      %s298 = scalar_select %p297, %s19, 1
      %s299 = smul.addr %s298, 4
      %s300 = smul.addr %s299, 8
      %s301 = scalar_lea.vmem %s0, %s300
      %p302 = pneg %p40
      %p303 = pneg %p37
      %p304 = scmp.lt.s32.totalorder %s19, 1
      %s305 = scalar_select %p304, %s19, 1
      %s306 = smul.addr %s305, 4
      %s307 = smul.addr %s306, 8
      %s308 = scalar_lea.vmem %s1, %s307
      %p309 = pneg %p66
      %p310 = pneg %p63
      %p311 = scmp.lt.s32.totalorder %s19, 1
      %s312 = scalar_select %p311, %s19, 1
      %s313 = smul.addr %s312, 4
      %s314 = smul.addr %s313, 8
      %s315 = scalar_lea.vmem %s2, %s314
      %p316 = pneg %p92
      %p317 = pneg %p89
      %p318 = scmp.lt.s32.totalorder %s19, 1
      %s319 = scalar_select %p318, %s19, 1
      %s320 = smul.addr %s319, 8
      %s321 = scalar_lea.vmem %s3, %s320
      %p322 = pneg %p118
      %p323 = pneg %p115
      %p324 = pneg %p139
      %p325 = pneg %p136
      %p326 = pneg %p160
      %p327 = pneg %p157
      %p328 = pneg %p181
      %p329 = pneg %p178
      %p330 = pneg %p202
      %p331 = pneg %p199
      %p332 = pneg %p228
      %p333 = pneg %p225
      %p334 = scmp.lt.s32.totalorder %s19, 1
      %s335 = scalar_select %p334, %s19, 1
      %s336 = smul.addr %s335, 8
      %s337 = scalar_lea.vmem %s8, %s336
      %p338 = scmp.lt.s32.totalorder %s19, 1
      %s339 = scalar_select %p338, %s19, 1
      %s340 = smul.addr %s339, 4
      %s341 = smul.addr %s340, 8
      %s342 = scalar_lea.vmem %s0, %s341
      %p343 = scmp.lt.s32.totalorder %s19, 1
      %s344 = scalar_select %p343, %s19, 1
      %s345 = smul.addr %s344, 4
      %s346 = smul.addr %s345, 8
      %s347 = scalar_lea.vmem %s1, %s346
      %p348 = scmp.lt.s32.totalorder %s19, 1
      %s349 = scalar_select %p348, %s19, 1
      %s350 = smul.addr %s349, 4
      %s351 = smul.addr %s350, 8
      %s352 = scalar_lea.vmem %s2, %s351
      %p353 = scmp.lt.s32.totalorder %s19, 1
      %s354 = scalar_select %p353, %s19, 1
      %s355 = smul.addr %s354, 8
      %s356 = scalar_lea.vmem %s3, %s355
      %p357 = scmp.lt.s32.totalorder %s19, 1
      %s358 = scalar_select %p357, %s19, 1
      %s359 = smul.addr %s358, 8
      %s360 = scalar_lea.vmem %s8, %s359
      %v361 = vld [vmem:[%s342] sm:$0xff]
      %v362 = vld [vmem:[%s347] sm:$0xff]
      %v363 = vld [vmem:[%s352] sm:$0xff]
      %vm364 = vcmask 261120
      %v366 = vsel %vm364, %v361, 0
      %v369 = vsel %vm364, %v362, 0
      %371 = vmatprep.subr.mxu0 0.0
      %372 = vmatpush1.xpose.msra.mxu0 0.0
      %373 = vmatprep.subr.mxu0 0.0
      %374 = vmatpush1.xpose.msra.mxu0 0.0
      %375 = vmatprep.subr.mxu0 0.0
      %376 = vmatpush1.xpose.msra.mxu0 0.0
      %377 = vmatprep.subr.mxu0 0.0
      %378 = vmatpush1.xpose.msra.mxu0 0.0
      %379 = vmatprep.subr.mxu0 0.0
      %380 = vmatpush1.xpose.msra.mxu0 0.0
      %381 = vmatprep.subr.mxu0 0.0
      %382 = vmatpush1.xpose.msra.mxu0 0.0
      %383 = vmatprep.subr.mxu0 0.0
      %384 = vmatpush1.xpose.msra.mxu0 0.0
      %385 = vmatprep.subr.mxu0 0.0
      %386 = vmatpush1.xpose.msra.mxu0 0.0
      %387 = vmatprep.subr.mxu0 0.0
      %388 = vmatpush1.xpose.msra.mxu0 0.0
      %389 = vmatprep.subr.mxu0 0.0
      %390 = vmatpush1.xpose.msra.mxu0 0.0
      %391 = vmatprep.subr.mxu0 0.0
      %392 = vmatpush1.xpose.msra.mxu0 0.0
      %393 = vmatprep.subr.mxu0 0.0
      %394 = vmatpush1.xpose.msra.mxu0 0.0
      %395 = vmatprep.subr.mxu0 0.0
      %396 = vmatpush1.xpose.msra.mxu0 0.0
      %397 = vmatprep.subr.mxu0 0.0
      %398 = vmatpush1.xpose.msra.mxu0 0.0
      %399 = vmatprep.subr.mxu0 0.0
      %400 = vmatpush1.xpose.msra.mxu0 0.0
      %401 = vmatprep.subr.mxu0 0.0
      %402 = vmatpush1.xpose.msra.mxu0 %v369
      %403 = vmatprep.subr.mxu0 0.0
      %404 = vmatpush2.xpose.msra.mxu0 0.0
      %405 = vmatprep.subr.mxu0 0.0
      %406 = vmatpush2.xpose.msra.mxu0 0.0
      %407 = vmatprep.subr.mxu0 0.0
      %408 = vmatpush2.xpose.msra.mxu0 0.0
      %409 = vmatprep.subr.mxu0 0.0
      %410 = vmatpush2.xpose.msra.mxu0 0.0
      %411 = vmatprep.subr.mxu0 0.0
      %412 = vmatpush2.xpose.msra.mxu0 0.0
      %413 = vmatprep.subr.mxu0 0.0
      %414 = vmatpush2.xpose.msra.mxu0 0.0
      %415 = vmatprep.subr.mxu0 0.0
      %416 = vmatpush2.xpose.msra.mxu0 0.0
      %417 = vmatprep.subr.mxu0 0.0
      %418 = vmatpush2.xpose.msra.mxu0 0.0
      %419 = vmatprep.subr.mxu0 0.0
      %420 = vmatpush2.xpose.msra.mxu0 0.0
      %421 = vmatprep.subr.mxu0 0.0
      %422 = vmatpush2.xpose.msra.mxu0 0.0
      %423 = vmatprep.subr.mxu0 0.0
      %424 = vmatpush2.xpose.msra.mxu0 0.0
      %425 = vmatprep.subr.mxu0 0.0
      %426 = vmatpush2.xpose.msra.mxu0 0.0
      %427 = vmatprep.subr.mxu0 0.0
      %428 = vmatpush2.xpose.msra.mxu0 0.0
      %429 = vmatprep.subr.mxu0 0.0
      %430 = vmatpush2.xpose.msra.mxu0 0.0
      %431 = vmatprep.subr.mxu0 0.0
      %432 = vmatpush2.xpose.msra.mxu0 0.0
      %433 = vmatprep.subr.mxu0 0.0
      %434 = vmatpush2.xpose.msra.mxu0 0.0
      %435 = vmatprep.mubr.f32.mxu0 0.0
      %436 = vmatmul.mubr.f32.gmra.mxu0 %v366
      %v437 = vpop.f32.mrf.mxu0
      %v438 = vadd.f32 0.0, %v437
      %v439 = vpop.f32.mrf.mxu0
      %440 = vdwg.mxu0
      %vm441 = vcmask 64512
      %v442 = vsel %vm441, %v438, -inf
      %443 = vmax.xlane.f32.xlu0 %v442
      %v444 = vpop.xlane.xlu0 %443
      %v445 = vsub.f32 %v438, %v444
      %v446 = vmul.f32 %v445, 1.442695
      %v447 = vpow.pop %v446
      %v448 = vsel %vm441, %v447, 0.0
      %449 = vadd.xlane.f32.xlu0 %v448
      %v450 = vpop.xlane.xlu0 %449
      %v451 = vrcp.pop %v450
      %v452 = vmul.f32 %v447, %v451
      %v454 = vsel %vm441, %v452, 0
      %456 = vmatprep.subr.mxu0 0.0
      %457 = vmatpush1.msra.mxu0 0.0
      %458 = vmatprep.subr.mxu0 0.0
      %459 = vmatpush1.msra.mxu0 0.0
      %460 = vmatprep.subr.mxu0 0.0
      %461 = vmatpush1.msra.mxu0 0.0
      %462 = vmatprep.subr.mxu0 0.0
      %463 = vmatpush1.msra.mxu0 0.0
      %464 = vmatprep.subr.mxu0 0.0
      %465 = vmatpush1.msra.mxu0 0.0
      %466 = vmatprep.subr.mxu0 0.0
      %467 = vmatpush1.msra.mxu0 0.0
      %468 = vmatprep.subr.mxu0 0.0
      %469 = vmatpush1.msra.mxu0 0.0
      %470 = vmatprep.subr.mxu0 0.0
      %471 = vmatpush1.msra.mxu0 0.0
      %472 = vmatprep.subr.mxu0 0.0
      %473 = vmatpush1.msra.mxu0 0.0
      %474 = vmatprep.subr.mxu0 0.0
      %475 = vmatpush1.msra.mxu0 0.0
      %476 = vmatprep.subr.mxu0 0.0
      %477 = vmatpush1.msra.mxu0 0.0
      %478 = vmatprep.subr.mxu0 0.0
      %479 = vmatpush1.msra.mxu0 0.0
      %480 = vmatprep.subr.mxu0 0.0
      %481 = vmatpush1.msra.mxu0 0.0
      %482 = vmatprep.subr.mxu0 0.0
      %483 = vmatpush1.msra.mxu0 0.0
      %484 = vmatprep.subr.mxu0 0.0
      %485 = vmatpush1.msra.mxu0 0.0
      %486 = vmatprep.subr.mxu0 0.0
      %487 = vmatpush1.msra.mxu0 %v363
      %488 = vmatprep.subr.mxu0 0.0
      %489 = vmatpush2.msra.mxu0 0.0
      %490 = vmatprep.subr.mxu0 0.0
      %491 = vmatpush2.msra.mxu0 0.0
      %492 = vmatprep.subr.mxu0 0.0
      %493 = vmatpush2.msra.mxu0 0.0
      %494 = vmatprep.subr.mxu0 0.0
      %495 = vmatpush2.msra.mxu0 0.0
      %496 = vmatprep.subr.mxu0 0.0
      %497 = vmatpush2.msra.mxu0 0.0
      %498 = vmatprep.subr.mxu0 0.0
      %499 = vmatpush2.msra.mxu0 0.0
      %500 = vmatprep.subr.mxu0 0.0
      %501 = vmatpush2.msra.mxu0 0.0
      %502 = vmatprep.subr.mxu0 0.0
      %503 = vmatpush2.msra.mxu0 0.0
      %504 = vmatprep.subr.mxu0 0.0
      %505 = vmatpush2.msra.mxu0 0.0
      %506 = vmatprep.subr.mxu0 0.0
      %507 = vmatpush2.msra.mxu0 0.0
      %508 = vmatprep.subr.mxu0 0.0
      %509 = vmatpush2.msra.mxu0 0.0
      %510 = vmatprep.subr.mxu0 0.0
      %511 = vmatpush2.msra.mxu0 0.0
      %512 = vmatprep.subr.mxu0 0.0
      %513 = vmatpush2.msra.mxu0 0.0
      %514 = vmatprep.subr.mxu0 0.0
      %515 = vmatpush2.msra.mxu0 0.0
      %516 = vmatprep.subr.mxu0 0.0
      %517 = vmatpush2.msra.mxu0 0.0
      %518 = vmatprep.subr.mxu0 0.0
      %519 = vmatpush2.msra.mxu0 0.0
      %520 = vmatprep.mubr.f32.mxu0 0.0
      %521 = vmatmul.mubr.f32.gmra.mxu0 %v454
      %v522 = vpop.f32.mrf.mxu0
      %v523 = vadd.f32 0.0, %v522
      %v524 = vpop.f32.mrf.mxu0
      %525 = vdwg.mxu0
      %v526 = vld [vmem:[%s4] sm:$0xff]
      %v527 = vld [vmem:[%s4 + $0x8] sm:$0xff]
      %v528 = vld [vmem:[%s4 + $0x10] sm:$0xff]
      %v529 = vld [vmem:[%s4 + $0x18] sm:$0xff]
      %s530 = scalar_lea.vmem %s342, 8
      %v531 = vld [vmem:[%s530] sm:$0xff]
      %s532 = scalar_lea.vmem %s347, 8
      %v533 = vld [vmem:[%s532] sm:$0xff]
      %s534 = scalar_lea.vmem %s352, 8
      %v535 = vld [vmem:[%s534] sm:$0xff]
      %v537 = vsel %vm364, %v531, 0
      %v540 = vsel %vm364, %v533, 0
      %542 = vmatprep.subr.mxu0 0.0
      %543 = vmatpush1.xpose.msra.mxu0 0.0
      %544 = vmatprep.subr.mxu0 0.0
      %545 = vmatpush1.xpose.msra.mxu0 0.0
      %546 = vmatprep.subr.mxu0 0.0
      %547 = vmatpush1.xpose.msra.mxu0 0.0
      %548 = vmatprep.subr.mxu0 0.0
      %549 = vmatpush1.xpose.msra.mxu0 0.0
      %550 = vmatprep.subr.mxu0 0.0
      %551 = vmatpush1.xpose.msra.mxu0 0.0
      %552 = vmatprep.subr.mxu0 0.0
      %553 = vmatpush1.xpose.msra.mxu0 0.0
      %554 = vmatprep.subr.mxu0 0.0
      %555 = vmatpush1.xpose.msra.mxu0 0.0
      %556 = vmatprep.subr.mxu0 0.0
      %557 = vmatpush1.xpose.msra.mxu0 0.0
      %558 = vmatprep.subr.mxu0 0.0
      %559 = vmatpush1.xpose.msra.mxu0 0.0
      %560 = vmatprep.subr.mxu0 0.0
      %561 = vmatpush1.xpose.msra.mxu0 0.0
      %562 = vmatprep.subr.mxu0 0.0
      %563 = vmatpush1.xpose.msra.mxu0 0.0
      %564 = vmatprep.subr.mxu0 0.0
      %565 = vmatpush1.xpose.msra.mxu0 0.0
      %566 = vmatprep.subr.mxu0 0.0
      %567 = vmatpush1.xpose.msra.mxu0 0.0
      %568 = vmatprep.subr.mxu0 0.0
      %569 = vmatpush1.xpose.msra.mxu0 0.0
      %570 = vmatprep.subr.mxu0 0.0
      %571 = vmatpush1.xpose.msra.mxu0 0.0
      %572 = vmatprep.subr.mxu0 0.0
      %573 = vmatpush1.xpose.msra.mxu0 %v540
      %574 = vmatprep.subr.mxu0 0.0
      %575 = vmatpush2.xpose.msra.mxu0 0.0
      %576 = vmatprep.subr.mxu0 0.0
      %577 = vmatpush2.xpose.msra.mxu0 0.0
      %578 = vmatprep.subr.mxu0 0.0
      %579 = vmatpush2.xpose.msra.mxu0 0.0
      %580 = vmatprep.subr.mxu0 0.0
      %581 = vmatpush2.xpose.msra.mxu0 0.0
      %582 = vmatprep.subr.mxu0 0.0
      %583 = vmatpush2.xpose.msra.mxu0 0.0
      %584 = vmatprep.subr.mxu0 0.0
      %585 = vmatpush2.xpose.msra.mxu0 0.0
      %586 = vmatprep.subr.mxu0 0.0
      %587 = vmatpush2.xpose.msra.mxu0 0.0
      %588 = vmatprep.subr.mxu0 0.0
      %589 = vmatpush2.xpose.msra.mxu0 0.0
      %590 = vmatprep.subr.mxu0 0.0
      %591 = vmatpush2.xpose.msra.mxu0 0.0
      %592 = vmatprep.subr.mxu0 0.0
      %593 = vmatpush2.xpose.msra.mxu0 0.0
      %594 = vmatprep.subr.mxu0 0.0
      %595 = vmatpush2.xpose.msra.mxu0 0.0
      %596 = vmatprep.subr.mxu0 0.0
      %597 = vmatpush2.xpose.msra.mxu0 0.0
      %598 = vmatprep.subr.mxu0 0.0
      %599 = vmatpush2.xpose.msra.mxu0 0.0
      %600 = vmatprep.subr.mxu0 0.0
      %601 = vmatpush2.xpose.msra.mxu0 0.0
      %602 = vmatprep.subr.mxu0 0.0
      %603 = vmatpush2.xpose.msra.mxu0 0.0
      %604 = vmatprep.subr.mxu0 0.0
      %605 = vmatpush2.xpose.msra.mxu0 0.0
      %606 = vmatprep.mubr.f32.mxu0 0.0
      %607 = vmatmul.mubr.f32.gmra.mxu0 %v537
      %v608 = vpop.f32.mrf.mxu0
      %v609 = vadd.f32 0.0, %v608
      %v610 = vpop.f32.mrf.mxu0
      %611 = vdwg.mxu0
      %v612 = vsel %vm441, %v609, -inf
      %613 = vmax.xlane.f32.xlu0 %v612
      %v614 = vpop.xlane.xlu0 %613
      %v615 = vsub.f32 %v609, %v614
      %v616 = vmul.f32 %v615, 1.442695
      %v617 = vpow.pop %v616
      %v618 = vsel %vm441, %v617, 0.0
      %619 = vadd.xlane.f32.xlu0 %v618
      %v620 = vpop.xlane.xlu0 %619
      %v621 = vrcp.pop %v620
      %v622 = vmul.f32 %v617, %v621
      %v624 = vsel %vm441, %v622, 0
      %626 = vmatprep.subr.mxu0 0.0
      %627 = vmatpush1.msra.mxu0 0.0
      %628 = vmatprep.subr.mxu0 0.0
      %629 = vmatpush1.msra.mxu0 0.0
      %630 = vmatprep.subr.mxu0 0.0
      %631 = vmatpush1.msra.mxu0 0.0
      %632 = vmatprep.subr.mxu0 0.0
      %633 = vmatpush1.msra.mxu0 0.0
      %634 = vmatprep.subr.mxu0 0.0
      %635 = vmatpush1.msra.mxu0 0.0
      %636 = vmatprep.subr.mxu0 0.0
      %637 = vmatpush1.msra.mxu0 0.0
      %638 = vmatprep.subr.mxu0 0.0
      %639 = vmatpush1.msra.mxu0 0.0
      %640 = vmatprep.subr.mxu0 0.0
      %641 = vmatpush1.msra.mxu0 0.0
      %642 = vmatprep.subr.mxu0 0.0
      %643 = vmatpush1.msra.mxu0 0.0
      %644 = vmatprep.subr.mxu0 0.0
      %645 = vmatpush1.msra.mxu0 0.0
      %646 = vmatprep.subr.mxu0 0.0
      %647 = vmatpush1.msra.mxu0 0.0
      %648 = vmatprep.subr.mxu0 0.0
      %649 = vmatpush1.msra.mxu0 0.0
      %650 = vmatprep.subr.mxu0 0.0
      %651 = vmatpush1.msra.mxu0 0.0
      %652 = vmatprep.subr.mxu0 0.0
      %653 = vmatpush1.msra.mxu0 0.0
      %654 = vmatprep.subr.mxu0 0.0
      %655 = vmatpush1.msra.mxu0 0.0
      %656 = vmatprep.subr.mxu0 0.0
      %657 = vmatpush1.msra.mxu0 %v535
      %658 = vmatprep.subr.mxu0 0.0
      %659 = vmatpush2.msra.mxu0 0.0
      %660 = vmatprep.subr.mxu0 0.0
      %661 = vmatpush2.msra.mxu0 0.0
      %662 = vmatprep.subr.mxu0 0.0
      %663 = vmatpush2.msra.mxu0 0.0
      %664 = vmatprep.subr.mxu0 0.0
      %665 = vmatpush2.msra.mxu0 0.0
      %666 = vmatprep.subr.mxu0 0.0
      %667 = vmatpush2.msra.mxu0 0.0
      %668 = vmatprep.subr.mxu0 0.0
      %669 = vmatpush2.msra.mxu0 0.0
      %670 = vmatprep.subr.mxu0 0.0
      %671 = vmatpush2.msra.mxu0 0.0
      %672 = vmatprep.subr.mxu0 0.0
      %673 = vmatpush2.msra.mxu0 0.0
      %674 = vmatprep.subr.mxu0 0.0
      %675 = vmatpush2.msra.mxu0 0.0
      %676 = vmatprep.subr.mxu0 0.0
      %677 = vmatpush2.msra.mxu0 0.0
      %678 = vmatprep.subr.mxu0 0.0
      %679 = vmatpush2.msra.mxu0 0.0
      %680 = vmatprep.subr.mxu0 0.0
      %681 = vmatpush2.msra.mxu0 0.0
      %682 = vmatprep.subr.mxu0 0.0
      %683 = vmatpush2.msra.mxu0 0.0
      %684 = vmatprep.subr.mxu0 0.0
      %685 = vmatpush2.msra.mxu0 0.0
      %686 = vmatprep.subr.mxu0 0.0
      %687 = vmatpush2.msra.mxu0 0.0
      %688 = vmatprep.subr.mxu0 0.0
      %689 = vmatpush2.msra.mxu0 0.0
      %690 = vmatprep.mubr.f32.mxu0 0.0
      %691 = vmatmul.mubr.f32.gmra.mxu0 %v624
      %v692 = vpop.f32.mrf.mxu0
      %v693 = vadd.f32 0.0, %v692
      %v694 = vpop.f32.mrf.mxu0
      %695 = vdwg.mxu0
      %v696 = vld [vmem:[%s4 + $0x20] sm:$0xff]
      %v697 = vld [vmem:[%s4 + $0x28] sm:$0xff]
      %v698 = vld [vmem:[%s4 + $0x30] sm:$0xff]
      %v699 = vld [vmem:[%s4 + $0x38] sm:$0xff]
      %v701 = vsel %vm364, %v693, 0
      %703 = vmatprep.subr.mxu0 0.0
      %704 = vmatpush1.msra.mxu0 0.0
      %705 = vmatprep.subr.mxu0 0.0
      %706 = vmatpush1.msra.mxu0 0.0
      %707 = vmatprep.subr.mxu0 0.0
      %708 = vmatpush1.msra.mxu0 0.0
      %709 = vmatprep.subr.mxu0 0.0
      %710 = vmatpush1.msra.mxu0 0.0
      %711 = vmatprep.subr.mxu0 0.0
      %712 = vmatpush1.msra.mxu0 0.0
      %713 = vmatprep.subr.mxu0 0.0
      %714 = vmatpush1.msra.mxu0 0.0
      %715 = vmatprep.subr.mxu0 0.0
      %716 = vmatpush1.msra.mxu0 0.0
      %717 = vmatprep.subr.mxu0 0.0
      %718 = vmatpush1.msra.mxu0 0.0
      %719 = vmatprep.subr.mxu0 0.0
      %720 = vmatpush1.msra.mxu0 0.0
      %721 = vmatprep.subr.mxu0 0.0
      %722 = vmatpush1.msra.mxu0 0.0
      %723 = vmatprep.subr.mxu0 0.0
      %724 = vmatpush1.msra.mxu0 0.0
      %725 = vmatprep.subr.mxu0 0.0
      %726 = vmatpush1.msra.mxu0 0.0
      %727 = vmatprep.subr.mxu0 0.0
      %728 = vmatpush1.msra.mxu0 %v699
      %729 = vmatprep.subr.mxu0 0.0
      %730 = vmatpush1.msra.mxu0 %v698
      %731 = vmatprep.subr.mxu0 0.0
      %732 = vmatpush1.msra.mxu0 %v697
      %733 = vmatprep.subr.mxu0 0.0
      %734 = vmatpush1.msra.mxu0 %v696
      %735 = vmatprep.subr.mxu0 0.0
      %736 = vmatpush2.msra.mxu0 0.0
      %737 = vmatprep.subr.mxu0 0.0
      %738 = vmatpush2.msra.mxu0 0.0
      %739 = vmatprep.subr.mxu0 0.0
      %740 = vmatpush2.msra.mxu0 0.0
      %741 = vmatprep.subr.mxu0 0.0
      %742 = vmatpush2.msra.mxu0 0.0
      %743 = vmatprep.subr.mxu0 0.0
      %744 = vmatpush2.msra.mxu0 0.0
      %745 = vmatprep.subr.mxu0 0.0
      %746 = vmatpush2.msra.mxu0 0.0
      %747 = vmatprep.subr.mxu0 0.0
      %748 = vmatpush2.msra.mxu0 0.0
      %749 = vmatprep.subr.mxu0 0.0
      %750 = vmatpush2.msra.mxu0 0.0
      %751 = vmatprep.subr.mxu0 0.0
      %752 = vmatpush2.msra.mxu0 0.0
      %753 = vmatprep.subr.mxu0 0.0
      %754 = vmatpush2.msra.mxu0 0.0
      %755 = vmatprep.subr.mxu0 0.0
      %756 = vmatpush2.msra.mxu0 0.0
      %757 = vmatprep.subr.mxu0 0.0
      %758 = vmatpush2.msra.mxu0 0.0
      %759 = vmatprep.subr.mxu0 0.0
      %760 = vmatpush2.msra.mxu0 0.0
      %761 = vmatprep.subr.mxu0 0.0
      %762 = vmatpush2.msra.mxu0 0.0
      %763 = vmatprep.subr.mxu0 0.0
      %764 = vmatpush2.msra.mxu0 0.0
      %765 = vmatprep.subr.mxu0 0.0
      %766 = vmatpush2.msra.mxu0 0.0
      %767 = vmatprep.mubr.f32.mxu0 0.0
      %768 = vmatmul.mubr.f32.gmra.mxu0 %v701
      %v769 = vpop.f32.mrf.mxu0
      %v770 = vadd.f32 0.0, %v769
      %v771 = vpop.f32.mrf.mxu0
      %772 = vdwg.mxu0
      %v774 = vsel %vm364, %v523, 0
      %776 = vmatprep.subr.mxu0 0.0
      %777 = vmatpush1.msra.mxu0 0.0
      %778 = vmatprep.subr.mxu0 0.0
      %779 = vmatpush1.msra.mxu0 0.0
      %780 = vmatprep.subr.mxu0 0.0
      %781 = vmatpush1.msra.mxu0 0.0
      %782 = vmatprep.subr.mxu0 0.0
      %783 = vmatpush1.msra.mxu0 0.0
      %784 = vmatprep.subr.mxu0 0.0
      %785 = vmatpush1.msra.mxu0 0.0
      %786 = vmatprep.subr.mxu0 0.0
      %787 = vmatpush1.msra.mxu0 0.0
      %788 = vmatprep.subr.mxu0 0.0
      %789 = vmatpush1.msra.mxu0 0.0
      %790 = vmatprep.subr.mxu0 0.0
      %791 = vmatpush1.msra.mxu0 0.0
      %792 = vmatprep.subr.mxu0 0.0
      %793 = vmatpush1.msra.mxu0 0.0
      %794 = vmatprep.subr.mxu0 0.0
      %795 = vmatpush1.msra.mxu0 0.0
      %796 = vmatprep.subr.mxu0 0.0
      %797 = vmatpush1.msra.mxu0 0.0
      %798 = vmatprep.subr.mxu0 0.0
      %799 = vmatpush1.msra.mxu0 0.0
      %800 = vmatprep.subr.mxu0 0.0
      %801 = vmatpush1.msra.mxu0 %v529
      %802 = vmatprep.subr.mxu0 0.0
      %803 = vmatpush1.msra.mxu0 %v528
      %804 = vmatprep.subr.mxu0 0.0
      %805 = vmatpush1.msra.mxu0 %v527
      %806 = vmatprep.subr.mxu0 0.0
      %807 = vmatpush1.msra.mxu0 %v526
      %808 = vmatprep.subr.mxu0 0.0
      %809 = vmatpush2.msra.mxu0 0.0
      %810 = vmatprep.subr.mxu0 0.0
      %811 = vmatpush2.msra.mxu0 0.0
      %812 = vmatprep.subr.mxu0 0.0
      %813 = vmatpush2.msra.mxu0 0.0
      %814 = vmatprep.subr.mxu0 0.0
      %815 = vmatpush2.msra.mxu0 0.0
      %816 = vmatprep.subr.mxu0 0.0
      %817 = vmatpush2.msra.mxu0 0.0
      %818 = vmatprep.subr.mxu0 0.0
      %819 = vmatpush2.msra.mxu0 0.0
      %820 = vmatprep.subr.mxu0 0.0
      %821 = vmatpush2.msra.mxu0 0.0
      %822 = vmatprep.subr.mxu0 0.0
      %823 = vmatpush2.msra.mxu0 0.0
      %824 = vmatprep.subr.mxu0 0.0
      %825 = vmatpush2.msra.mxu0 0.0
      %826 = vmatprep.subr.mxu0 0.0
      %827 = vmatpush2.msra.mxu0 0.0
      %828 = vmatprep.subr.mxu0 0.0
      %829 = vmatpush2.msra.mxu0 0.0
      %830 = vmatprep.subr.mxu0 0.0
      %831 = vmatpush2.msra.mxu0 0.0
      %832 = vmatprep.subr.mxu0 0.0
      %833 = vmatpush2.msra.mxu0 0.0
      %834 = vmatprep.subr.mxu0 0.0
      %835 = vmatpush2.msra.mxu0 0.0
      %836 = vmatprep.subr.mxu0 0.0
      %837 = vmatpush2.msra.mxu0 0.0
      %838 = vmatprep.subr.mxu0 0.0
      %839 = vmatpush2.msra.mxu0 0.0
      %840 = vmatprep.mubr.f32.mxu0 0.0
      %841 = vmatmul.mubr.f32.gmra.mxu0 %v774
      %v842 = vpop.f32.mrf.mxu0
      %v843 = vadd.f32 %v770, %v842
      %v844 = vpop.f32.mrf.mxu0
      %845 = vdwg.mxu0
      %s846 = scalar_lea.vmem %s342, 16
      %v847 = vld [vmem:[%s846] sm:$0xff]
      %s848 = scalar_lea.vmem %s347, 16
      %v849 = vld [vmem:[%s848] sm:$0xff]
      %s850 = scalar_lea.vmem %s352, 16
      %v851 = vld [vmem:[%s850] sm:$0xff]
      %v853 = vsel %vm364, %v847, 0
      %v856 = vsel %vm364, %v849, 0
      %858 = vmatprep.subr.mxu0 0.0
      %859 = vmatpush1.xpose.msra.mxu0 0.0
      %860 = vmatprep.subr.mxu0 0.0
      %861 = vmatpush1.xpose.msra.mxu0 0.0
      %862 = vmatprep.subr.mxu0 0.0
      %863 = vmatpush1.xpose.msra.mxu0 0.0
      %864 = vmatprep.subr.mxu0 0.0
      %865 = vmatpush1.xpose.msra.mxu0 0.0
      %866 = vmatprep.subr.mxu0 0.0
      %867 = vmatpush1.xpose.msra.mxu0 0.0
      %868 = vmatprep.subr.mxu0 0.0
      %869 = vmatpush1.xpose.msra.mxu0 0.0
      %870 = vmatprep.subr.mxu0 0.0
      %871 = vmatpush1.xpose.msra.mxu0 0.0
      %872 = vmatprep.subr.mxu0 0.0
      %873 = vmatpush1.xpose.msra.mxu0 0.0
      %874 = vmatprep.subr.mxu0 0.0
      %875 = vmatpush1.xpose.msra.mxu0 0.0
      %876 = vmatprep.subr.mxu0 0.0
      %877 = vmatpush1.xpose.msra.mxu0 0.0
      %878 = vmatprep.subr.mxu0 0.0
      %879 = vmatpush1.xpose.msra.mxu0 0.0
      %880 = vmatprep.subr.mxu0 0.0
      %881 = vmatpush1.xpose.msra.mxu0 0.0
      %882 = vmatprep.subr.mxu0 0.0
      %883 = vmatpush1.xpose.msra.mxu0 0.0
      %884 = vmatprep.subr.mxu0 0.0
      %885 = vmatpush1.xpose.msra.mxu0 0.0
      %886 = vmatprep.subr.mxu0 0.0
      %887 = vmatpush1.xpose.msra.mxu0 0.0
      %888 = vmatprep.subr.mxu0 0.0
      %889 = vmatpush1.xpose.msra.mxu0 %v856
      %890 = vmatprep.subr.mxu0 0.0
      %891 = vmatpush2.xpose.msra.mxu0 0.0
      %892 = vmatprep.subr.mxu0 0.0
      %893 = vmatpush2.xpose.msra.mxu0 0.0
      %894 = vmatprep.subr.mxu0 0.0
      %895 = vmatpush2.xpose.msra.mxu0 0.0
      %896 = vmatprep.subr.mxu0 0.0
      %897 = vmatpush2.xpose.msra.mxu0 0.0
      %898 = vmatprep.subr.mxu0 0.0
      %899 = vmatpush2.xpose.msra.mxu0 0.0
      %900 = vmatprep.subr.mxu0 0.0
      %901 = vmatpush2.xpose.msra.mxu0 0.0
      %902 = vmatprep.subr.mxu0 0.0
      %903 = vmatpush2.xpose.msra.mxu0 0.0
      %904 = vmatprep.subr.mxu0 0.0
      %905 = vmatpush2.xpose.msra.mxu0 0.0
      %906 = vmatprep.subr.mxu0 0.0
      %907 = vmatpush2.xpose.msra.mxu0 0.0
      %908 = vmatprep.subr.mxu0 0.0
      %909 = vmatpush2.xpose.msra.mxu0 0.0
      %910 = vmatprep.subr.mxu0 0.0
      %911 = vmatpush2.xpose.msra.mxu0 0.0
      %912 = vmatprep.subr.mxu0 0.0
      %913 = vmatpush2.xpose.msra.mxu0 0.0
      %914 = vmatprep.subr.mxu0 0.0
      %915 = vmatpush2.xpose.msra.mxu0 0.0
      %916 = vmatprep.subr.mxu0 0.0
      %917 = vmatpush2.xpose.msra.mxu0 0.0
      %918 = vmatprep.subr.mxu0 0.0
      %919 = vmatpush2.xpose.msra.mxu0 0.0
      %920 = vmatprep.subr.mxu0 0.0
      %921 = vmatpush2.xpose.msra.mxu0 0.0
      %922 = vmatprep.mubr.f32.mxu0 0.0
      %923 = vmatmul.mubr.f32.gmra.mxu0 %v853
      %v924 = vpop.f32.mrf.mxu0
      %v925 = vadd.f32 0.0, %v924
      %v926 = vpop.f32.mrf.mxu0
      %927 = vdwg.mxu0
      %v928 = vsel %vm441, %v925, -inf
      %929 = vmax.xlane.f32.xlu0 %v928
      %v930 = vpop.xlane.xlu0 %929
      %v931 = vsub.f32 %v925, %v930
      %v932 = vmul.f32 %v931, 1.442695
      %v933 = vpow.pop %v932
      %v934 = vsel %vm441, %v933, 0.0
      %935 = vadd.xlane.f32.xlu0 %v934
      %v936 = vpop.xlane.xlu0 %935
      %v937 = vrcp.pop %v936
      %v938 = vmul.f32 %v933, %v937
      %v940 = vsel %vm441, %v938, 0
      %942 = vmatprep.subr.mxu0 0.0
      %943 = vmatpush1.msra.mxu0 0.0
      %944 = vmatprep.subr.mxu0 0.0
      %945 = vmatpush1.msra.mxu0 0.0
      %946 = vmatprep.subr.mxu0 0.0
      %947 = vmatpush1.msra.mxu0 0.0
      %948 = vmatprep.subr.mxu0 0.0
      %949 = vmatpush1.msra.mxu0 0.0
      %950 = vmatprep.subr.mxu0 0.0
      %951 = vmatpush1.msra.mxu0 0.0
      %952 = vmatprep.subr.mxu0 0.0
      %953 = vmatpush1.msra.mxu0 0.0
      %954 = vmatprep.subr.mxu0 0.0
      %955 = vmatpush1.msra.mxu0 0.0
      %956 = vmatprep.subr.mxu0 0.0
      %957 = vmatpush1.msra.mxu0 0.0
      %958 = vmatprep.subr.mxu0 0.0
      %959 = vmatpush1.msra.mxu0 0.0
      %960 = vmatprep.subr.mxu0 0.0
      %961 = vmatpush1.msra.mxu0 0.0
      %962 = vmatprep.subr.mxu0 0.0
      %963 = vmatpush1.msra.mxu0 0.0
      %964 = vmatprep.subr.mxu0 0.0
      %965 = vmatpush1.msra.mxu0 0.0
      %966 = vmatprep.subr.mxu0 0.0
      %967 = vmatpush1.msra.mxu0 0.0
      %968 = vmatprep.subr.mxu0 0.0
      %969 = vmatpush1.msra.mxu0 0.0
      %970 = vmatprep.subr.mxu0 0.0
      %971 = vmatpush1.msra.mxu0 0.0
      %972 = vmatprep.subr.mxu0 0.0
      %973 = vmatpush1.msra.mxu0 %v851
      %974 = vmatprep.subr.mxu0 0.0
      %975 = vmatpush2.msra.mxu0 0.0
      %976 = vmatprep.subr.mxu0 0.0
      %977 = vmatpush2.msra.mxu0 0.0
      %978 = vmatprep.subr.mxu0 0.0
      %979 = vmatpush2.msra.mxu0 0.0
      %980 = vmatprep.subr.mxu0 0.0
      %981 = vmatpush2.msra.mxu0 0.0
      %982 = vmatprep.subr.mxu0 0.0
      %983 = vmatpush2.msra.mxu0 0.0
      %984 = vmatprep.subr.mxu0 0.0
      %985 = vmatpush2.msra.mxu0 0.0
      %986 = vmatprep.subr.mxu0 0.0
      %987 = vmatpush2.msra.mxu0 0.0
      %988 = vmatprep.subr.mxu0 0.0
      %989 = vmatpush2.msra.mxu0 0.0
      %990 = vmatprep.subr.mxu0 0.0
      %991 = vmatpush2.msra.mxu0 0.0
      %992 = vmatprep.subr.mxu0 0.0
      %993 = vmatpush2.msra.mxu0 0.0
      %994 = vmatprep.subr.mxu0 0.0
      %995 = vmatpush2.msra.mxu0 0.0
      %996 = vmatprep.subr.mxu0 0.0
      %997 = vmatpush2.msra.mxu0 0.0
      %998 = vmatprep.subr.mxu0 0.0
      %999 = vmatpush2.msra.mxu0 0.0
      %1000 = vmatprep.subr.mxu0 0.0
      %1001 = vmatpush2.msra.mxu0 0.0
      %1002 = vmatprep.subr.mxu0 0.0
      %1003 = vmatpush2.msra.mxu0 0.0
      %1004 = vmatprep.subr.mxu0 0.0
      %1005 = vmatpush2.msra.mxu0 0.0
      %1006 = vmatprep.mubr.f32.mxu0 0.0
      %1007 = vmatmul.mubr.f32.gmra.mxu0 %v940
      %v1008 = vpop.f32.mrf.mxu0
      %v1009 = vadd.f32 0.0, %v1008
      %v1010 = vpop.f32.mrf.mxu0
      %1011 = vdwg.mxu0
      %v1012 = vld [vmem:[%s4 + $0x40] sm:$0xff]
      %v1013 = vld [vmem:[%s4 + $0x48] sm:$0xff]
      %v1014 = vld [vmem:[%s4 + $0x50] sm:$0xff]
      %v1015 = vld [vmem:[%s4 + $0x58] sm:$0xff]
      %v1017 = vsel %vm364, %v1009, 0
      %1019 = vmatprep.subr.mxu0 0.0
      %1020 = vmatpush1.msra.mxu0 0.0
      %1021 = vmatprep.subr.mxu0 0.0
      %1022 = vmatpush1.msra.mxu0 0.0
      %1023 = vmatprep.subr.mxu0 0.0
      %1024 = vmatpush1.msra.mxu0 0.0
      %1025 = vmatprep.subr.mxu0 0.0
      %1026 = vmatpush1.msra.mxu0 0.0
      %1027 = vmatprep.subr.mxu0 0.0
      %1028 = vmatpush1.msra.mxu0 0.0
      %1029 = vmatprep.subr.mxu0 0.0
      %1030 = vmatpush1.msra.mxu0 0.0
      %1031 = vmatprep.subr.mxu0 0.0
      %1032 = vmatpush1.msra.mxu0 0.0
      %1033 = vmatprep.subr.mxu0 0.0
      %1034 = vmatpush1.msra.mxu0 0.0
      %1035 = vmatprep.subr.mxu0 0.0
      %1036 = vmatpush1.msra.mxu0 0.0
      %1037 = vmatprep.subr.mxu0 0.0
      %1038 = vmatpush1.msra.mxu0 0.0
      %1039 = vmatprep.subr.mxu0 0.0
      %1040 = vmatpush1.msra.mxu0 0.0
      %1041 = vmatprep.subr.mxu0 0.0
      %1042 = vmatpush1.msra.mxu0 0.0
      %1043 = vmatprep.subr.mxu0 0.0
      %1044 = vmatpush1.msra.mxu0 %v1015
      %1045 = vmatprep.subr.mxu0 0.0
      %1046 = vmatpush1.msra.mxu0 %v1014
      %1047 = vmatprep.subr.mxu0 0.0
      %1048 = vmatpush1.msra.mxu0 %v1013
      %1049 = vmatprep.subr.mxu0 0.0
      %1050 = vmatpush1.msra.mxu0 %v1012
      %1051 = vmatprep.subr.mxu0 0.0
      %1052 = vmatpush2.msra.mxu0 0.0
      %1053 = vmatprep.subr.mxu0 0.0
      %1054 = vmatpush2.msra.mxu0 0.0
      %1055 = vmatprep.subr.mxu0 0.0
      %1056 = vmatpush2.msra.mxu0 0.0
      %1057 = vmatprep.subr.mxu0 0.0
      %1058 = vmatpush2.msra.mxu0 0.0
      %1059 = vmatprep.subr.mxu0 0.0
      %1060 = vmatpush2.msra.mxu0 0.0
      %1061 = vmatprep.subr.mxu0 0.0
      %1062 = vmatpush2.msra.mxu0 0.0
      %1063 = vmatprep.subr.mxu0 0.0
      %1064 = vmatpush2.msra.mxu0 0.0
      %1065 = vmatprep.subr.mxu0 0.0
      %1066 = vmatpush2.msra.mxu0 0.0
      %1067 = vmatprep.subr.mxu0 0.0
      %1068 = vmatpush2.msra.mxu0 0.0
      %1069 = vmatprep.subr.mxu0 0.0
      %1070 = vmatpush2.msra.mxu0 0.0
      %1071 = vmatprep.subr.mxu0 0.0
      %1072 = vmatpush2.msra.mxu0 0.0
      %1073 = vmatprep.subr.mxu0 0.0
      %1074 = vmatpush2.msra.mxu0 0.0
      %1075 = vmatprep.subr.mxu0 0.0
      %1076 = vmatpush2.msra.mxu0 0.0
      %1077 = vmatprep.subr.mxu0 0.0
      %1078 = vmatpush2.msra.mxu0 0.0
      %1079 = vmatprep.subr.mxu0 0.0
      %1080 = vmatpush2.msra.mxu0 0.0
      %1081 = vmatprep.subr.mxu0 0.0
      %1082 = vmatpush2.msra.mxu0 0.0
      %1083 = vmatprep.mubr.f32.mxu0 0.0
      %1084 = vmatmul.mubr.f32.gmra.mxu0 %v1017
      %v1085 = vpop.f32.mrf.mxu0
      %v1086 = vadd.f32 0.0, %v1085
      %v1087 = vpop.f32.mrf.mxu0
      %1088 = vdwg.mxu0
      %v1089 = vadd.f32 %v843, %v1086
      %s1090 = scalar_lea.vmem %s342, 24
      %v1091 = vld [vmem:[%s1090] sm:$0xff]
      %s1092 = scalar_lea.vmem %s347, 24
      %v1093 = vld [vmem:[%s1092] sm:$0xff]
      %s1094 = scalar_lea.vmem %s352, 24
      %v1095 = vld [vmem:[%s1094] sm:$0xff]
      %v1097 = vsel %vm364, %v1091, 0
      %v1100 = vsel %vm364, %v1093, 0
      %1102 = vmatprep.subr.mxu0 0.0
      %1103 = vmatpush1.xpose.msra.mxu0 0.0
      %1104 = vmatprep.subr.mxu0 0.0
      %1105 = vmatpush1.xpose.msra.mxu0 0.0
      %1106 = vmatprep.subr.mxu0 0.0
      %1107 = vmatpush1.xpose.msra.mxu0 0.0
      %1108 = vmatprep.subr.mxu0 0.0
      %1109 = vmatpush1.xpose.msra.mxu0 0.0
      %1110 = vmatprep.subr.mxu0 0.0
      %1111 = vmatpush1.xpose.msra.mxu0 0.0
      %1112 = vmatprep.subr.mxu0 0.0
      %1113 = vmatpush1.xpose.msra.mxu0 0.0
      %1114 = vmatprep.subr.mxu0 0.0
      %1115 = vmatpush1.xpose.msra.mxu0 0.0
      %1116 = vmatprep.subr.mxu0 0.0
      %1117 = vmatpush1.xpose.msra.mxu0 0.0
      %1118 = vmatprep.subr.mxu0 0.0
      %1119 = vmatpush1.xpose.msra.mxu0 0.0
      %1120 = vmatprep.subr.mxu0 0.0
      %1121 = vmatpush1.xpose.msra.mxu0 0.0
      %1122 = vmatprep.subr.mxu0 0.0
      %1123 = vmatpush1.xpose.msra.mxu0 0.0
      %1124 = vmatprep.subr.mxu0 0.0
      %1125 = vmatpush1.xpose.msra.mxu0 0.0
      %1126 = vmatprep.subr.mxu0 0.0
      %1127 = vmatpush1.xpose.msra.mxu0 0.0
      %1128 = vmatprep.subr.mxu0 0.0
      %1129 = vmatpush1.xpose.msra.mxu0 0.0
      %1130 = vmatprep.subr.mxu0 0.0
      %1131 = vmatpush1.xpose.msra.mxu0 0.0
      %1132 = vmatprep.subr.mxu0 0.0
      %1133 = vmatpush1.xpose.msra.mxu0 %v1100
      %1134 = vmatprep.subr.mxu0 0.0
      %1135 = vmatpush2.xpose.msra.mxu0 0.0
      %1136 = vmatprep.subr.mxu0 0.0
      %1137 = vmatpush2.xpose.msra.mxu0 0.0
      %1138 = vmatprep.subr.mxu0 0.0
      %1139 = vmatpush2.xpose.msra.mxu0 0.0
      %1140 = vmatprep.subr.mxu0 0.0
      %1141 = vmatpush2.xpose.msra.mxu0 0.0
      %1142 = vmatprep.subr.mxu0 0.0
      %1143 = vmatpush2.xpose.msra.mxu0 0.0
      %1144 = vmatprep.subr.mxu0 0.0
      %1145 = vmatpush2.xpose.msra.mxu0 0.0
      %1146 = vmatprep.subr.mxu0 0.0
      %1147 = vmatpush2.xpose.msra.mxu0 0.0
      %1148 = vmatprep.subr.mxu0 0.0
      %1149 = vmatpush2.xpose.msra.mxu0 0.0
      %1150 = vmatprep.subr.mxu0 0.0
      %1151 = vmatpush2.xpose.msra.mxu0 0.0
      %1152 = vmatprep.subr.mxu0 0.0
      %1153 = vmatpush2.xpose.msra.mxu0 0.0
      %1154 = vmatprep.subr.mxu0 0.0
      %1155 = vmatpush2.xpose.msra.mxu0 0.0
      %1156 = vmatprep.subr.mxu0 0.0
      %1157 = vmatpush2.xpose.msra.mxu0 0.0
      %1158 = vmatprep.subr.mxu0 0.0
      %1159 = vmatpush2.xpose.msra.mxu0 0.0
      %1160 = vmatprep.subr.mxu0 0.0
      %1161 = vmatpush2.xpose.msra.mxu0 0.0
      %1162 = vmatprep.subr.mxu0 0.0
      %1163 = vmatpush2.xpose.msra.mxu0 0.0
      %1164 = vmatprep.subr.mxu0 0.0
      %1165 = vmatpush2.xpose.msra.mxu0 0.0
      %1166 = vmatprep.mubr.f32.mxu0 0.0
      %1167 = vmatmul.mubr.f32.gmra.mxu0 %v1097
      %v1168 = vpop.f32.mrf.mxu0
      %v1169 = vadd.f32 0.0, %v1168
      %v1170 = vpop.f32.mrf.mxu0
      %1171 = vdwg.mxu0
      %v1172 = vsel %vm441, %v1169, -inf
      %1173 = vmax.xlane.f32.xlu0 %v1172
      %v1174 = vpop.xlane.xlu0 %1173
      %v1175 = vsub.f32 %v1169, %v1174
      %v1176 = vmul.f32 %v1175, 1.442695
      %v1177 = vpow.pop %v1176
      %v1178 = vsel %vm441, %v1177, 0.0
      %1179 = vadd.xlane.f32.xlu0 %v1178
      %v1180 = vpop.xlane.xlu0 %1179
      %v1181 = vrcp.pop %v1180
      %v1182 = vmul.f32 %v1177, %v1181
      %v1184 = vsel %vm441, %v1182, 0
      %1186 = vmatprep.subr.mxu0 0.0
      %1187 = vmatpush1.msra.mxu0 0.0
      %1188 = vmatprep.subr.mxu0 0.0
      %1189 = vmatpush1.msra.mxu0 0.0
      %1190 = vmatprep.subr.mxu0 0.0
      %1191 = vmatpush1.msra.mxu0 0.0
      %1192 = vmatprep.subr.mxu0 0.0
      %1193 = vmatpush1.msra.mxu0 0.0
      %1194 = vmatprep.subr.mxu0 0.0
      %1195 = vmatpush1.msra.mxu0 0.0
      %1196 = vmatprep.subr.mxu0 0.0
      %1197 = vmatpush1.msra.mxu0 0.0
      %1198 = vmatprep.subr.mxu0 0.0
      %1199 = vmatpush1.msra.mxu0 0.0
      %1200 = vmatprep.subr.mxu0 0.0
      %1201 = vmatpush1.msra.mxu0 0.0
      %1202 = vmatprep.subr.mxu0 0.0
      %1203 = vmatpush1.msra.mxu0 0.0
      %1204 = vmatprep.subr.mxu0 0.0
      %1205 = vmatpush1.msra.mxu0 0.0
      %1206 = vmatprep.subr.mxu0 0.0
      %1207 = vmatpush1.msra.mxu0 0.0
      %1208 = vmatprep.subr.mxu0 0.0
      %1209 = vmatpush1.msra.mxu0 0.0
      %1210 = vmatprep.subr.mxu0 0.0
      %1211 = vmatpush1.msra.mxu0 0.0
      %1212 = vmatprep.subr.mxu0 0.0
      %1213 = vmatpush1.msra.mxu0 0.0
      %1214 = vmatprep.subr.mxu0 0.0
      %1215 = vmatpush1.msra.mxu0 0.0
      %1216 = vmatprep.subr.mxu0 0.0
      %1217 = vmatpush1.msra.mxu0 %v1095
      %1218 = vmatprep.subr.mxu0 0.0
      %1219 = vmatpush2.msra.mxu0 0.0
      %1220 = vmatprep.subr.mxu0 0.0
      %1221 = vmatpush2.msra.mxu0 0.0
      %1222 = vmatprep.subr.mxu0 0.0
      %1223 = vmatpush2.msra.mxu0 0.0
      %1224 = vmatprep.subr.mxu0 0.0
      %1225 = vmatpush2.msra.mxu0 0.0
      %1226 = vmatprep.subr.mxu0 0.0
      %1227 = vmatpush2.msra.mxu0 0.0
      %1228 = vmatprep.subr.mxu0 0.0
      %1229 = vmatpush2.msra.mxu0 0.0
      %1230 = vmatprep.subr.mxu0 0.0
      %1231 = vmatpush2.msra.mxu0 0.0
      %1232 = vmatprep.subr.mxu0 0.0
      %1233 = vmatpush2.msra.mxu0 0.0
      %1234 = vmatprep.subr.mxu0 0.0
      %1235 = vmatpush2.msra.mxu0 0.0
      %1236 = vmatprep.subr.mxu0 0.0
      %1237 = vmatpush2.msra.mxu0 0.0
      %1238 = vmatprep.subr.mxu0 0.0
      %1239 = vmatpush2.msra.mxu0 0.0
      %1240 = vmatprep.subr.mxu0 0.0
      %1241 = vmatpush2.msra.mxu0 0.0
      %1242 = vmatprep.subr.mxu0 0.0
      %1243 = vmatpush2.msra.mxu0 0.0
      %1244 = vmatprep.subr.mxu0 0.0
      %1245 = vmatpush2.msra.mxu0 0.0
      %1246 = vmatprep.subr.mxu0 0.0
      %1247 = vmatpush2.msra.mxu0 0.0
      %1248 = vmatprep.subr.mxu0 0.0
      %1249 = vmatpush2.msra.mxu0 0.0
      %1250 = vmatprep.mubr.f32.mxu0 0.0
      %1251 = vmatmul.mubr.f32.gmra.mxu0 %v1184
      %v1252 = vpop.f32.mrf.mxu0
      %v1253 = vadd.f32 0.0, %v1252
      %v1254 = vpop.f32.mrf.mxu0
      %1255 = vdwg.mxu0
      %v1256 = vld [vmem:[%s4 + $0x60] sm:$0xff]
      %v1257 = vld [vmem:[%s4 + $0x68] sm:$0xff]
      %v1258 = vld [vmem:[%s4 + $0x70] sm:$0xff]
      %v1259 = vld [vmem:[%s4 + $0x78] sm:$0xff]
      %v1261 = vsel %vm364, %v1253, 0
      %1263 = vmatprep.subr.mxu0 0.0
      %1264 = vmatpush1.msra.mxu0 0.0
      %1265 = vmatprep.subr.mxu0 0.0
      %1266 = vmatpush1.msra.mxu0 0.0
      %1267 = vmatprep.subr.mxu0 0.0
      %1268 = vmatpush1.msra.mxu0 0.0
      %1269 = vmatprep.subr.mxu0 0.0
      %1270 = vmatpush1.msra.mxu0 0.0
      %1271 = vmatprep.subr.mxu0 0.0
      %1272 = vmatpush1.msra.mxu0 0.0
      %1273 = vmatprep.subr.mxu0 0.0
      %1274 = vmatpush1.msra.mxu0 0.0
      %1275 = vmatprep.subr.mxu0 0.0
      %1276 = vmatpush1.msra.mxu0 0.0
      %1277 = vmatprep.subr.mxu0 0.0
      %1278 = vmatpush1.msra.mxu0 0.0
      %1279 = vmatprep.subr.mxu0 0.0
      %1280 = vmatpush1.msra.mxu0 0.0
      %1281 = vmatprep.subr.mxu0 0.0
      %1282 = vmatpush1.msra.mxu0 0.0
      %1283 = vmatprep.subr.mxu0 0.0
      %1284 = vmatpush1.msra.mxu0 0.0
      %1285 = vmatprep.subr.mxu0 0.0
      %1286 = vmatpush1.msra.mxu0 0.0
      %1287 = vmatprep.subr.mxu0 0.0
      %1288 = vmatpush1.msra.mxu0 %v1259
      %1289 = vmatprep.subr.mxu0 0.0
      %1290 = vmatpush1.msra.mxu0 %v1258
      %1291 = vmatprep.subr.mxu0 0.0
      %1292 = vmatpush1.msra.mxu0 %v1257
      %1293 = vmatprep.subr.mxu0 0.0
      %1294 = vmatpush1.msra.mxu0 %v1256
      %1295 = vmatprep.subr.mxu0 0.0
      %1296 = vmatpush2.msra.mxu0 0.0
      %1297 = vmatprep.subr.mxu0 0.0
      %1298 = vmatpush2.msra.mxu0 0.0
      %1299 = vmatprep.subr.mxu0 0.0
      %1300 = vmatpush2.msra.mxu0 0.0
      %1301 = vmatprep.subr.mxu0 0.0
      %1302 = vmatpush2.msra.mxu0 0.0
      %1303 = vmatprep.subr.mxu0 0.0
      %1304 = vmatpush2.msra.mxu0 0.0
      %1305 = vmatprep.subr.mxu0 0.0
      %1306 = vmatpush2.msra.mxu0 0.0
      %1307 = vmatprep.subr.mxu0 0.0
      %1308 = vmatpush2.msra.mxu0 0.0
      %1309 = vmatprep.subr.mxu0 0.0
      %1310 = vmatpush2.msra.mxu0 0.0
      %1311 = vmatprep.subr.mxu0 0.0
      %1312 = vmatpush2.msra.mxu0 0.0
      %1313 = vmatprep.subr.mxu0 0.0
      %1314 = vmatpush2.msra.mxu0 0.0
      %1315 = vmatprep.subr.mxu0 0.0
      %1316 = vmatpush2.msra.mxu0 0.0
      %1317 = vmatprep.subr.mxu0 0.0
      %1318 = vmatpush2.msra.mxu0 0.0
      %1319 = vmatprep.subr.mxu0 0.0
      %1320 = vmatpush2.msra.mxu0 0.0
      %1321 = vmatprep.subr.mxu0 0.0
      %1322 = vmatpush2.msra.mxu0 0.0
      %1323 = vmatprep.subr.mxu0 0.0
      %1324 = vmatpush2.msra.mxu0 0.0
      %1325 = vmatprep.subr.mxu0 0.0
      %1326 = vmatpush2.msra.mxu0 0.0
      %1327 = vmatprep.mubr.f32.mxu0 0.0
      %1328 = vmatmul.mubr.f32.gmra.mxu0 %v1261
      %v1329 = vpop.f32.mrf.mxu0
      %v1330 = vadd.f32 0.0, %v1329
      %v1331 = vpop.f32.mrf.mxu0
      %1332 = vdwg.mxu0
      %v1333 = vadd.f32 %v1089, %v1330
      %v1334 = vld [vmem:[%s5] sm:$0x1]
      %v1336 = vlaneseq
      %v1337 = vshrl.u32 %v1336, 7
      %v1338 = vsub.s32 0, %v1337
      %v1339 = vrot.slane %v1334, %v1338
      %v1341 = vadd.f32 %v1333, %v1339
      %v1342 = vld [vmem:[%s356] sm:$0xff]
      %v1343 = vadd.f32 %v1341, %v1342
      %v1344 = vsel %vm364, %v1343, 0.0
      %1345 = vadd.xlane.f32.xlu0 %v1344
      %v1346 = vpop.xlane.xlu0 %1345
      %v1347 = vrcp.pop 32.0
      %v1348 = vmul.f32 %v1346, %v1347
      %v1349 = vsub.f32 %v1343, %v1348
      %v1350 = vmul.f32 %v1349, %v1349
      %v1351 = vsel %vm364, %v1350, 0.0
      %1352 = vadd.xlane.f32.xlu0 %v1351
      %v1353 = vpop.xlane.xlu0 %1352
      %v1354 = vmul.f32 %v1353, %v1347
      %v1355 = vadd.f32 %v1354, 1e-05
      %v1356 = vrsqrt.pop %v1355
      %v1357 = vmul.f32 %v1349, %v1356
      %v1358 = vld [vmem:[%s6] sm:$0x1]
      %v1360 = vlaneseq
      %v1361 = vshrl.u32 %v1360, 7
      %v1362 = vsub.s32 0, %v1361
      %v1363 = vrot.slane %v1358, %v1362
      %v1365 = vmul.f32 %v1357, %v1363
      %v1366 = vld [vmem:[%s7] sm:$0x1]
      %v1368 = vlaneseq
      %v1369 = vshrl.u32 %v1368, 7
      %v1370 = vsub.s32 0, %v1369
      %v1371 = vrot.slane %v1366, %v1370
      %v1373 = vadd.f32 %v1365, %v1371
      %1374 = vst.msk [vmem:[%s360] sm:$0xff] %vm364, %v1373
      %p1375 = scmp.lt.s32.totalorder %s19, 1
      %s1376 = scalar_select %p1375, %s19, 1
      %s1377 = smul.addr %s1376, 8
      %s1378 = scalar_lea.vmem %s8, %s1377
      // Predicated region
      $region53: #{transformer_forward.10} parent=51 // pred_check
        %p1379 = pneg %p225
      $region54: #{transformer_forward.10} parent=51 // pred_check_branch
        %1381 = sbr.rel (%p1379) target = $region56
      $region55: #{transformer_forward.10} parent=51 // pred_region
        _
      $region56: #{transformer_forward.10} parent=51 // pred_fallthru
        _
    $region52: #{transformer_forward.10} parent=5 // pred_fallthru
      _
    %p1382 = scmp.le.s32.totalorder 2, %s14
    // Predicated region
    $region57: #{transformer_forward.10} parent=5 // pred_check
      %p1383 = pneg %p1382
    $region58: #{transformer_forward.10} parent=5 // pred_check_branch
      %1385 = sbr.rel (%p1383) target = $region60
    $region59: #{transformer_forward.10} parent=5 // pred_region
      %s1386 = ssub.s32 %s14, 2
      // Predicated region
      $region61: #{transformer_forward.10} parent=59 // pred_check
        %p1387 = pneg %p231
      $region62: #{transformer_forward.10} parent=59 // pred_check_branch
        %1389 = sbr.rel (%p1387) target = $region64
      $region63: #{transformer_forward.10} parent=59 // pred_region
        %p1390 = scmp.lt.s32.totalorder %s20, 1
        %s1391 = scalar_select %p1390, %s20, 1
        %s1392 = smul.addr %s1391, 8
        %s1393 = scalar_lea.vmem %s8, %s1392
      $region64: #{transformer_forward.10} parent=59 // pred_fallthru
        _
    $region60: #{transformer_forward.10} parent=5 // pred_fallthru
      _
  $region6: #{transformer_forward.10} parent=0 // loop_footer
    %s18 = sadd.s32 1, %s14
  $region7: #{transformer_forward.10} parent=0 // loop_footer_branch
    %13 = sbr.rel target = $region3
  $region8: #{transformer_forward.10} parent=0 // loop_exit
    _

// kernel: transformer_forward.17
$region0: #{transformer_forward.17}
  #allocation0 [shape = 'u32[]', space=smem, size = 0x4, offset = 0x4, fixed_abs, tag = 'smem constant byte address 0x4 - core index']
  #allocation1 [shape = 'u32[144,128]{1,0:T(1,128)}', space=vmem, size = 0x12000, scoped, tag = 'internal scratch']
  %s0 = inlined_call_operand.vmem [shape: f32[16,32], index: 0, kind: input, shape index: {}]
  %s1 = inlined_call_operand.vmem [shape: f32[32,64], index: 1, kind: input, shape index: {}]
  %s2 = inlined_call_operand.vmem [shape: f32[1,64], index: 2, kind: input, shape index: {}]
  %s3 = inlined_call_operand.hbm [shape: f32[16,64], index: 3, kind: output, shape index: {}]
  %s4 = sld [smem:[#allocation0]]
  $region45: #{transformer_forward.17} parent=0
    _
  %s6 = ssub.s32 1, %s4
  %s7 = scalar_select 0, %s6, %s4
  $region1: #{transformer_forward.17} parent=0
    #allocation2 [shape = 'u8[8192]{0}', space=vmem, size = 0x2000, scoped, tag = 'output window, operand 0']
    #allocation3 [shape = 's32[2]{0}', space=sflag, size = 0x8, scoped, tag = 'scoped memory for transformer_forward.17']
    %8 = vsyncpa [#allocation3], 0
    %s9 = scalar_lea.sflag [#allocation3], 1
    %10 = vsyncpa %s9, 0
    loop: start=0, step=1, limit=4
    $region2: #{transformer_forward.17} parent=1 // loop_pre_header
      _
    $region3: #{transformer_forward.17} parent=1 // loop_header
      %s12 = sphi 0, %s16
      %p13 = scmp.ge.s32.totalorder %s12, 4
      %s22 = sphi 0, %s24
      %s25 = sphi 0, %s22
      %s26 = sphi 0, %s25
      %s42 = sphi 0, %s26
      %s46 = sphi 0, %s46
      %s48 = sphi 0, %s46
      %s49 = sphi 0, %s48
      %s63 = sphi 0, %s49
      %s67 = sphi 0, %s67
      %s69 = sphi 0, %s67
      %s70 = sphi 0, %s69
      %s84 = sphi 0, %s70
      %s90 = sphi 0, %s92
      %s93 = sphi 0, %s90
      %s94 = sphi 0, %s93
      %s110 = sphi 0, %s94
    $region4: #{transformer_forward.17} parent=1 // loop_header_branch
      %15 = sbr.rel (%p13) target = $region8
    $region5: #{transformer_forward.17} parent=1 // loop_body
      %s17 = ssub.s32 %s12, 1
      %s18 = ssub.s32 %s12, 2
      %s19 = sadd.s32 %s12, 1
      %s20 = ssub.s32 %s12, %s19
      %p21 = scmp.eq.s32.totalorder %s20, 0
      %s23 = sadd.s32 %s22, 1
      %s24 = scalar_select %p21, %s22, %s23
      %p27 = pneg %p21
      %p28 = scmp.eq.s32.totalorder %s12, 1
      %p29 = por %p27, %p28
      %p30 = scmp.ne.s32.totalorder %s22, %s25
      %p31 = scmp.eq.s32.totalorder %s12, 0
      %p32 = por %p30, %p31
      %p33 = scmp.ne.s32.totalorder %s22, %s25
      %p34 = scmp.eq.s32.totalorder %s17, 1
      %p35 = por %p33, %p34
      %p36 = scmp.ne.s32.totalorder %s25, %s26
      %p37 = scmp.eq.s32.totalorder %s17, 0
      %p38 = por %p36, %p37
      %p39 = scmp.ne.s32.totalorder %s25, %s26
      %p40 = scmp.eq.s32.totalorder %s18, 1
      %p41 = por %p39, %p40
      %p43 = scmp.ne.s32.totalorder %s26, %s42
      %p44 = scmp.eq.s32.totalorder %s18, 0
      %p45 = por %p43, %p44
      %s47 = sadd.s32 %s46, 1
      %p50 = scmp.eq.s32.totalorder %s12, 1
      %p51 = scmp.ne.s32.totalorder %s46, %s48
      %p52 = scmp.eq.s32.totalorder %s12, 0
      %p53 = por %p51, %p52
      %p54 = scmp.ne.s32.totalorder %s46, %s48
      %p55 = scmp.eq.s32.totalorder %s17, 1
      %p56 = por %p54, %p55
      %p57 = scmp.ne.s32.totalorder %s48, %s49
      %p58 = scmp.eq.s32.totalorder %s17, 0
      %p59 = por %p57, %p58
      %p60 = scmp.ne.s32.totalorder %s48, %s49
      %p61 = scmp.eq.s32.totalorder %s18, 1
      %p62 = por %p60, %p61
      %p64 = scmp.ne.s32.totalorder %s49, %s63
      %p65 = scmp.eq.s32.totalorder %s18, 0
      %p66 = por %p64, %p65
      %s68 = sadd.s32 %s67, 1
      %p71 = scmp.eq.s32.totalorder %s12, 1
      %p72 = scmp.ne.s32.totalorder %s67, %s69
      %p73 = scmp.eq.s32.totalorder %s12, 0
      %p74 = por %p72, %p73
      %p75 = scmp.ne.s32.totalorder %s67, %s69
      %p76 = scmp.eq.s32.totalorder %s17, 1
      %p77 = por %p75, %p76
      %p78 = scmp.ne.s32.totalorder %s69, %s70
      %p79 = scmp.eq.s32.totalorder %s17, 0
      %p80 = por %p78, %p79
      %p81 = scmp.ne.s32.totalorder %s69, %s70
      %p82 = scmp.eq.s32.totalorder %s18, 1
      %p83 = por %p81, %p82
      %p85 = scmp.ne.s32.totalorder %s70, %s84
      %p86 = scmp.eq.s32.totalorder %s18, 0
      %p87 = por %p85, %p86
      %s88 = ssub.s32 %s12, %s19
      %p89 = scmp.eq.s32.totalorder %s88, 0
      %s91 = sadd.s32 %s90, 1
      %s92 = scalar_select %p89, %s90, %s91
      %p95 = pneg %p89
      %p96 = scmp.eq.s32.totalorder %s12, 1
      %p97 = por %p95, %p96
      %p98 = scmp.ne.s32.totalorder %s90, %s93
      %p99 = scmp.eq.s32.totalorder %s12, 0
      %p100 = por %p98, %p99
      %p101 = scmp.ne.s32.totalorder %s90, %s93
      %p102 = scmp.eq.s32.totalorder %s17, 1
      %p103 = por %p101, %p102
      %p104 = scmp.ne.s32.totalorder %s93, %s94
      %p105 = scmp.eq.s32.totalorder %s17, 0
      %p106 = por %p104, %p105
      %p107 = scmp.ne.s32.totalorder %s93, %s94
      %p108 = scmp.eq.s32.totalorder %s18, 1
      %p109 = por %p107, %p108
      %p111 = scmp.ne.s32.totalorder %s94, %s110
      %p112 = scmp.eq.s32.totalorder %s18, 0
      %p113 = por %p111, %p112
      %p114 = scmp.le.s32.totalorder 1, %s12
      %p115 = scmp.lt.s32.totalorder %s12, 3
      %p116 = pnand %p114, %p115
      %p117 = pneg %p116
      // Predicated region
      $region9: #{transformer_forward.17} parent=5 // pred_check
        _
      $region10: #{transformer_forward.17} parent=5 // pred_check_branch
        %119 = sbr.rel (%p116) target = $region12
      $region11: #{transformer_forward.17} parent=5 // pred_region
        %s120 = ssub.s32 %s12, 1
        // Predicated region
        $region13: #{transformer_forward.17} parent=11 // pred_check
          %p121 = pneg %p59
        $region14: #{transformer_forward.17} parent=11 // pred_check_branch
          %123 = sbr.rel (%p121) target = $region16
        $region15: #{transformer_forward.17} parent=11 // pred_region
          _
        $region16: #{transformer_forward.17} parent=11 // pred_fallthru
          _
        // Predicated region
        $region17: #{transformer_forward.17} parent=11 // pred_check
          %p124 = pneg %p80
        $region18: #{transformer_forward.17} parent=11 // pred_check_branch
          %126 = sbr.rel (%p124) target = $region20
        $region19: #{transformer_forward.17} parent=11 // pred_region
          _
        $region20: #{transformer_forward.17} parent=11 // pred_fallthru
          _
      $region12: #{transformer_forward.17} parent=5 // pred_fallthru
        _
      %p127 = scmp.lt.s32.totalorder %s12, 2
      // Predicated region
      $region21: #{transformer_forward.17} parent=5 // pred_check
        %p128 = pneg %p127
      $region22: #{transformer_forward.17} parent=5 // pred_check_branch
        %130 = sbr.rel (%p128) target = $region24
      $region23: #{transformer_forward.17} parent=5 // pred_region
        // Predicated region
        $region25: #{transformer_forward.17} parent=23 // pred_check
          %p131 = pneg %p32
        $region26: #{transformer_forward.17} parent=23 // pred_check_branch
          %133 = sbr.rel (%p131) target = $region28
        $region27: #{transformer_forward.17} parent=23 // pred_region
          %p134 = scmp.lt.s32.totalorder %s12, 1
          %s135 = scalar_select %p134, %s12, 1
          %s136 = smul.addr %s135, 8
          %s137 = scalar_lea.vmem %s0, %s136
        $region28: #{transformer_forward.17} parent=23 // pred_fallthru
          _
      $region24: #{transformer_forward.17} parent=5 // pred_fallthru
        _
      %p138 = scmp.le.s32.totalorder 1, %s12
      %p139 = scmp.lt.s32.totalorder %s12, 3
      %p140 = pnand %p138, %p139
      %p141 = pneg %p140
      // Predicated region
      $region29: #{transformer_forward.17} parent=5 // pred_check
        _
      $region30: #{transformer_forward.17} parent=5 // pred_check_branch
        %143 = sbr.rel (%p140) target = $region32
      $region31: #{transformer_forward.17} parent=5 // pred_region
        %s144 = ssub.s32 %s12, 1
        %p145 = scmp.lt.s32.totalorder %s17, 1
        %s146 = scalar_select %p145, %s17, 1
        %s147 = smul.addr %s146, 8
        %s148 = scalar_lea.vmem %s0, %s147
        %p149 = pneg %p38
        %p150 = pneg %p35
        %p151 = pneg %p59
        %p152 = pneg %p56
        %p153 = pneg %p80
        %p154 = pneg %p77
        %p155 = pneg %p106
        %p156 = pneg %p103
        %s157 = sand.u32 %s93, 1
        %s158 = scalar_lea.sflag [#allocation3], %s157
        %s159 = sand.u32 %s93, 1
        %s160 = smul.addr %s159, 8
        %s161 = scalar_lea.vmem [#allocation2], %s160
        %p162 = scmp.lt.s32.totalorder %s17, 1
        %s163 = scalar_select %p162, %s17, 1
        %s164 = smul.addr %s163, 8
        %s165 = scalar_lea.vmem %s0, %s164
        %v166 = vld [vmem:[%s165] sm:$0xff]
        %v167 = vld [vmem:[%s1] sm:$0xff]
        %v168 = vld [vmem:[%s1 + $0x8] sm:$0xff]
        %v169 = vld [vmem:[%s1 + $0x10] sm:$0xff]
        %v170 = vld [vmem:[%s1 + $0x18] sm:$0xff]
        %v171 = vld [vmem:[%s2] sm:$0x1]
        %v173 = vlaneseq
        %v174 = vshrl.u32 %v173, 7
        %v175 = vsub.s32 0, %v174
        %v176 = vrot.slane %v171, %v175
        %vm178 = vcmask 261120
        %v180 = vsel %vm178, %v166, 0
        %182 = vmatprep.subr.mxu0 0.0
        %183 = vmatpush1.msra.mxu0 0.0
        %184 = vmatprep.subr.mxu0 0.0
        %185 = vmatpush1.msra.mxu0 0.0
        %186 = vmatprep.subr.mxu0 0.0
        %187 = vmatpush1.msra.mxu0 0.0
        %188 = vmatprep.subr.mxu0 0.0
        %189 = vmatpush1.msra.mxu0 0.0
        %190 = vmatprep.subr.mxu0 0.0
        %191 = vmatpush1.msra.mxu0 0.0
        %192 = vmatprep.subr.mxu0 0.0
        %193 = vmatpush1.msra.mxu0 0.0
        %194 = vmatprep.subr.mxu0 0.0
        %195 = vmatpush1.msra.mxu0 0.0
        %196 = vmatprep.subr.mxu0 0.0
        %197 = vmatpush1.msra.mxu0 0.0
        %198 = vmatprep.subr.mxu0 0.0
        %199 = vmatpush1.msra.mxu0 0.0
        %200 = vmatprep.subr.mxu0 0.0
        %201 = vmatpush1.msra.mxu0 0.0
        %202 = vmatprep.subr.mxu0 0.0
        %203 = vmatpush1.msra.mxu0 0.0
        %204 = vmatprep.subr.mxu0 0.0
        %205 = vmatpush1.msra.mxu0 0.0
        %206 = vmatprep.subr.mxu0 0.0
        %207 = vmatpush1.msra.mxu0 %v170
        %208 = vmatprep.subr.mxu0 0.0
        %209 = vmatpush1.msra.mxu0 %v169
        %210 = vmatprep.subr.mxu0 0.0
        %211 = vmatpush1.msra.mxu0 %v168
        %212 = vmatprep.subr.mxu0 0.0
        %213 = vmatpush1.msra.mxu0 %v167
        %214 = vmatprep.subr.mxu0 0.0
        %215 = vmatpush2.msra.mxu0 0.0
        %216 = vmatprep.subr.mxu0 0.0
        %217 = vmatpush2.msra.mxu0 0.0
        %218 = vmatprep.subr.mxu0 0.0
        %219 = vmatpush2.msra.mxu0 0.0
        %220 = vmatprep.subr.mxu0 0.0
        %221 = vmatpush2.msra.mxu0 0.0
        %222 = vmatprep.subr.mxu0 0.0
        %223 = vmatpush2.msra.mxu0 0.0
        %224 = vmatprep.subr.mxu0 0.0
        %225 = vmatpush2.msra.mxu0 0.0
        %226 = vmatprep.subr.mxu0 0.0
        %227 = vmatpush2.msra.mxu0 0.0
        %228 = vmatprep.subr.mxu0 0.0
        %229 = vmatpush2.msra.mxu0 0.0
        %230 = vmatprep.subr.mxu0 0.0
        %231 = vmatpush2.msra.mxu0 0.0
        %232 = vmatprep.subr.mxu0 0.0
        %233 = vmatpush2.msra.mxu0 0.0
        %234 = vmatprep.subr.mxu0 0.0
        %235 = vmatpush2.msra.mxu0 0.0
        %236 = vmatprep.subr.mxu0 0.0
        %237 = vmatpush2.msra.mxu0 0.0
        %238 = vmatprep.subr.mxu0 0.0
        %239 = vmatpush2.msra.mxu0 0.0
        %240 = vmatprep.subr.mxu0 0.0
        %241 = vmatpush2.msra.mxu0 0.0
        %242 = vmatprep.subr.mxu0 0.0
        %243 = vmatpush2.msra.mxu0 0.0
        %244 = vmatprep.subr.mxu0 0.0
        %245 = vmatpush2.msra.mxu0 0.0
        %246 = vmatprep.mubr.f32.mxu0 0.0
        %247 = vmatmul.mubr.f32.gmra.mxu0 %v180
        %v248 = vpop.f32.mrf.mxu0
        %v249 = vadd.f32 %v176, %v248
        %v250 = vpop.f32.mrf.mxu0
        %251 = vdwg.mxu0
        %vm252 = vcmask 523264
        %253 = vst.msk [vmem:[%s161] sm:$0xff] %vm252, %v249
        %s254 = sand.u32 %s93, 1
        %s255 = scalar_lea.sflag [#allocation3], %s254
        %s256 = sand.u32 %s93, 1
        %s257 = smul.addr %s256, 8
        %s258 = scalar_lea.vmem [#allocation2], %s257
        // Predicated region
        $region33: #{transformer_forward.17} parent=31 // pred_check
          %p259 = pneg %p103
        $region34: #{transformer_forward.17} parent=31 // pred_check_branch
          %261 = sbr.rel (%p259) target = $region36
        $region35: #{transformer_forward.17} parent=31 // pred_region
          %s263 = ssub.s32 128, 128
          %264 = vsyncadd %s255, %s263
          %s265 = smul.addr %s17, 128
          %s266 = scalar_lea.hbm %s3, %s265
          %s268 = sshll.u32 %s258, 4
          %s269 = int_to_ptr.vmem [resolvable:$true] %s268
          %271 = dma.vmem_to_hbm [thread:$0]  %s269, 128, %s266, %s255
        $region36: #{transformer_forward.17} parent=31 // pred_fallthru
          _
      $region32: #{transformer_forward.17} parent=5 // pred_fallthru
        _
      %p272 = scmp.le.s32.totalorder 2, %s12
      // Predicated region
      $region37: #{transformer_forward.17} parent=5 // pred_check
        %p273 = pneg %p272
      $region38: #{transformer_forward.17} parent=5 // pred_check_branch
        %275 = sbr.rel (%p273) target = $region40
      $region39: #{transformer_forward.17} parent=5 // pred_region
        %s276 = ssub.s32 %s12, 2
        // Predicated region
        $region41: #{transformer_forward.17} parent=39 // pred_check
          %p277 = pneg %p109
        $region42: #{transformer_forward.17} parent=39 // pred_check_branch
          %279 = sbr.rel (%p277) target = $region44
        $region43: #{transformer_forward.17} parent=39 // pred_region
          %s280 = sand.u32 %s94, 1
          %s281 = scalar_lea.sflag [#allocation3], %s280
          %s282 = sand.u32 %s94, 1
          %s283 = smul.addr %s282, 8
          %s284 = scalar_lea.vmem [#allocation2], %s283
          %285 = dma.done %s281, 128
        $region44: #{transformer_forward.17} parent=39 // pred_fallthru
          _
      $region40: #{transformer_forward.17} parent=5 // pred_fallthru
        _
    $region6: #{transformer_forward.17} parent=1 // loop_footer
      %s16 = sadd.s32 1, %s12
    $region7: #{transformer_forward.17} parent=1 // loop_footer_branch
      %11 = sbr.rel target = $region3
    $region8: #{transformer_forward.17} parent=1 // loop_exit
      _
    %286 = vsyncpa [#allocation3], 1
    %s287 = scalar_lea.sflag [#allocation3], 1
    %288 = vsyncpa %s287, 1

// kernel: transformer_forward.13
$region0: #{transformer_forward.13}
  #allocation0 [shape = 'u32[]', space=smem, size = 0x4, offset = 0x4, fixed_abs, tag = 'smem constant byte address 0x4 - core index']
  #allocation1 [shape = 'u32[144,128]{1,0:T(1,128)}', space=vmem, size = 0x12000, scoped, tag = 'internal scratch']
  %s0 = inlined_call_operand.vmem [shape: f32[2,4,8,32], index: 0, kind: input, shape index: {}]
  %s1 = inlined_call_operand.vmem [shape: f32[2,4,8,32], index: 1, kind: input, shape index: {}]
  %s2 = inlined_call_operand.vmem [shape: f32[2,4,8,32], index: 2, kind: input, shape index: {}]
  %s3 = inlined_call_operand.vmem [shape: f32[2,8,32], index: 3, kind: input, shape index: {}]
  %s4 = inlined_call_operand.vmem [shape: f32[128,32], index: 4, kind: input, shape index: {}]
  %s5 = inlined_call_operand.vmem [shape: f32[1,32], index: 5, kind: input, shape index: {}]
  %s6 = inlined_call_operand.vmem [shape: f32[1,32], index: 6, kind: input, shape index: {}]
  %s7 = inlined_call_operand.vmem [shape: f32[1,32], index: 7, kind: input, shape index: {}]
  %s8 = inlined_call_operand.vmem [shape: f32[2,8,32], index: 8, kind: output, shape index: {}]
  %s9 = sld [smem:[#allocation0]]
  $region65: #{transformer_forward.13} parent=0
    _
  %s11 = ssub.s32 1, %s9
  %s12 = scalar_select 0, %s11, %s9
  loop: start=0, step=1, limit=4
  $region2: #{transformer_forward.13} parent=0 // loop_pre_header
    _
  $region3: #{transformer_forward.13} parent=0 // loop_header
    %s14 = sphi 0, %s18
    %p15 = scmp.ge.s32.totalorder %s14, 4
    %s24 = sphi 0, %s26
    %s27 = sphi 0, %s24
    %s28 = sphi 0, %s27
    %s44 = sphi 0, %s28
    %s50 = sphi 0, %s52
    %s53 = sphi 0, %s50
    %s54 = sphi 0, %s53
    %s70 = sphi 0, %s54
    %s76 = sphi 0, %s78
    %s79 = sphi 0, %s76
    %s80 = sphi 0, %s79
    %s96 = sphi 0, %s80
    %s102 = sphi 0, %s104
    %s105 = sphi 0, %s102
    %s106 = sphi 0, %s105
    %s122 = sphi 0, %s106
    %s126 = sphi 0, %s126
    %s128 = sphi 0, %s126
    %s129 = sphi 0, %s128
    %s143 = sphi 0, %s129
    %s147 = sphi 0, %s147
    %s149 = sphi 0, %s147
    %s150 = sphi 0, %s149
    %s164 = sphi 0, %s150
    %s168 = sphi 0, %s168
    %s170 = sphi 0, %s168
    %s171 = sphi 0, %s170
    %s185 = sphi 0, %s171
    %s189 = sphi 0, %s189
    %s191 = sphi 0, %s189
    %s192 = sphi 0, %s191
    %s206 = sphi 0, %s192
    %s212 = sphi 0, %s214
    %s215 = sphi 0, %s212
    %s216 = sphi 0, %s215
    %s232 = sphi 0, %s216
  $region4: #{transformer_forward.13} parent=0 // loop_header_branch
    %17 = sbr.rel (%p15) target = $region8
  $region5: #{transformer_forward.13} parent=0 // loop_body
    %s19 = ssub.s32 %s14, 1
    %s20 = ssub.s32 %s14, 2
    %s21 = sadd.s32 %s14, 1
    %s22 = ssub.s32 %s14, %s21
    %p23 = scmp.eq.s32.totalorder %s22, 0
    %s25 = sadd.s32 %s24, 1
    %s26 = scalar_select %p23, %s24, %s25
    %p29 = pneg %p23
    %p30 = scmp.eq.s32.totalorder %s14, 1
    %p31 = por %p29, %p30
    %p32 = scmp.ne.s32.totalorder %s24, %s27
    %p33 = scmp.eq.s32.totalorder %s14, 0
    %p34 = por %p32, %p33
    %p35 = scmp.ne.s32.totalorder %s24, %s27
    %p36 = scmp.eq.s32.totalorder %s19, 1
    %p37 = por %p35, %p36
    %p38 = scmp.ne.s32.totalorder %s27, %s28
    %p39 = scmp.eq.s32.totalorder %s19, 0
    %p40 = por %p38, %p39
    %p41 = scmp.ne.s32.totalorder %s27, %s28
    %p42 = scmp.eq.s32.totalorder %s20, 1
    %p43 = por %p41, %p42
    %p45 = scmp.ne.s32.totalorder %s28, %s44
    %p46 = scmp.eq.s32.totalorder %s20, 0
    %p47 = por %p45, %p46
    %s48 = ssub.s32 %s14, %s21
    %p49 = scmp.eq.s32.totalorder %s48, 0
    %s51 = sadd.s32 %s50, 1
    %s52 = scalar_select %p49, %s50, %s51
    %p55 = pneg %p49
    %p56 = scmp.eq.s32.totalorder %s14, 1
    %p57 = por %p55, %p56
    %p58 = scmp.ne.s32.totalorder %s50, %s53
    %p59 = scmp.eq.s32.totalorder %s14, 0
    %p60 = por %p58, %p59
    %p61 = scmp.ne.s32.totalorder %s50, %s53
    %p62 = scmp.eq.s32.totalorder %s19, 1
    %p63 = por %p61, %p62
    %p64 = scmp.ne.s32.totalorder %s53, %s54
    %p65 = scmp.eq.s32.totalorder %s19, 0
    %p66 = por %p64, %p65
    %p67 = scmp.ne.s32.totalorder %s53, %s54
    %p68 = scmp.eq.s32.totalorder %s20, 1
    %p69 = por %p67, %p68
    %p71 = scmp.ne.s32.totalorder %s54, %s70
    %p72 = scmp.eq.s32.totalorder %s20, 0
    %p73 = por %p71, %p72
    %s74 = ssub.s32 %s14, %s21
    %p75 = scmp.eq.s32.totalorder %s74, 0
    %s77 = sadd.s32 %s76, 1
    %s78 = scalar_select %p75, %s76, %s77
    %p81 = pneg %p75
    %p82 = scmp.eq.s32.totalorder %s14, 1
    %p83 = por %p81, %p82
    %p84 = scmp.ne.s32.totalorder %s76, %s79
    %p85 = scmp.eq.s32.totalorder %s14, 0
    %p86 = por %p84, %p85
    %p87 = scmp.ne.s32.totalorder %s76, %s79
    %p88 = scmp.eq.s32.totalorder %s19, 1
    %p89 = por %p87, %p88
    %p90 = scmp.ne.s32.totalorder %s79, %s80
    %p91 = scmp.eq.s32.totalorder %s19, 0
    %p92 = por %p90, %p91
    %p93 = scmp.ne.s32.totalorder %s79, %s80
    %p94 = scmp.eq.s32.totalorder %s20, 1
    %p95 = por %p93, %p94
    %p97 = scmp.ne.s32.totalorder %s80, %s96
    %p98 = scmp.eq.s32.totalorder %s20, 0
    %p99 = por %p97, %p98
    %s100 = ssub.s32 %s14, %s21
    %p101 = scmp.eq.s32.totalorder %s100, 0
    %s103 = sadd.s32 %s102, 1
    %s104 = scalar_select %p101, %s102, %s103
    %p107 = pneg %p101
    %p108 = scmp.eq.s32.totalorder %s14, 1
    %p109 = por %p107, %p108
    %p110 = scmp.ne.s32.totalorder %s102, %s105
    %p111 = scmp.eq.s32.totalorder %s14, 0
    %p112 = por %p110, %p111
    %p113 = scmp.ne.s32.totalorder %s102, %s105
    %p114 = scmp.eq.s32.totalorder %s19, 1
    %p115 = por %p113, %p114
    %p116 = scmp.ne.s32.totalorder %s105, %s106
    %p117 = scmp.eq.s32.totalorder %s19, 0
    %p118 = por %p116, %p117
    %p119 = scmp.ne.s32.totalorder %s105, %s106
    %p120 = scmp.eq.s32.totalorder %s20, 1
    %p121 = por %p119, %p120
    %p123 = scmp.ne.s32.totalorder %s106, %s122
    %p124 = scmp.eq.s32.totalorder %s20, 0
    %p125 = por %p123, %p124
    %s127 = sadd.s32 %s126, 1
    %p130 = scmp.eq.s32.totalorder %s14, 1
    %p131 = scmp.ne.s32.totalorder %s126, %s128
    %p132 = scmp.eq.s32.totalorder %s14, 0
    %p133 = por %p131, %p132
    %p134 = scmp.ne.s32.totalorder %s126, %s128
    %p135 = scmp.eq.s32.totalorder %s19, 1
    %p136 = por %p134, %p135
    %p137 = scmp.ne.s32.totalorder %s128, %s129
    %p138 = scmp.eq.s32.totalorder %s19, 0
    %p139 = por %p137, %p138
    %p140 = scmp.ne.s32.totalorder %s128, %s129
    %p141 = scmp.eq.s32.totalorder %s20, 1
    %p142 = por %p140, %p141
    %p144 = scmp.ne.s32.totalorder %s129, %s143
    %p145 = scmp.eq.s32.totalorder %s20, 0
    %p146 = por %p144, %p145
    %s148 = sadd.s32 %s147, 1
    %p151 = scmp.eq.s32.totalorder %s14, 1
    %p152 = scmp.ne.s32.totalorder %s147, %s149
    %p153 = scmp.eq.s32.totalorder %s14, 0
    %p154 = por %p152, %p153
    %p155 = scmp.ne.s32.totalorder %s147, %s149
    %p156 = scmp.eq.s32.totalorder %s19, 1
    %p157 = por %p155, %p156
    %p158 = scmp.ne.s32.totalorder %s149, %s150
    %p159 = scmp.eq.s32.totalorder %s19, 0
    %p160 = por %p158, %p159
    %p161 = scmp.ne.s32.totalorder %s149, %s150
    %p162 = scmp.eq.s32.totalorder %s20, 1
    %p163 = por %p161, %p162
    %p165 = scmp.ne.s32.totalorder %s150, %s164
    %p166 = scmp.eq.s32.totalorder %s20, 0
    %p167 = por %p165, %p166
    %s169 = sadd.s32 %s168, 1
    %p172 = scmp.eq.s32.totalorder %s14, 1
    %p173 = scmp.ne.s32.totalorder %s168, %s170
    %p174 = scmp.eq.s32.totalorder %s14, 0
    %p175 = por %p173, %p174
    %p176 = scmp.ne.s32.totalorder %s168, %s170
    %p177 = scmp.eq.s32.totalorder %s19, 1
    %p178 = por %p176, %p177
    %p179 = scmp.ne.s32.totalorder %s170, %s171
    %p180 = scmp.eq.s32.totalorder %s19, 0
    %p181 = por %p179, %p180
    %p182 = scmp.ne.s32.totalorder %s170, %s171
    %p183 = scmp.eq.s32.totalorder %s20, 1
    %p184 = por %p182, %p183
    %p186 = scmp.ne.s32.totalorder %s171, %s185
    %p187 = scmp.eq.s32.totalorder %s20, 0
    %p188 = por %p186, %p187
    %s190 = sadd.s32 %s189, 1
    %p193 = scmp.eq.s32.totalorder %s14, 1
    %p194 = scmp.ne.s32.totalorder %s189, %s191
    %p195 = scmp.eq.s32.totalorder %s14, 0
    %p196 = por %p194, %p195
    %p197 = scmp.ne.s32.totalorder %s189, %s191
    %p198 = scmp.eq.s32.totalorder %s19, 1
    %p199 = por %p197, %p198
    %p200 = scmp.ne.s32.totalorder %s191, %s192
    %p201 = scmp.eq.s32.totalorder %s19, 0
    %p202 = por %p200, %p201
    %p203 = scmp.ne.s32.totalorder %s191, %s192
    %p204 = scmp.eq.s32.totalorder %s20, 1
    %p205 = por %p203, %p204
    %p207 = scmp.ne.s32.totalorder %s192, %s206
    %p208 = scmp.eq.s32.totalorder %s20, 0
    %p209 = por %p207, %p208
    %s210 = ssub.s32 %s14, %s21
    %p211 = scmp.eq.s32.totalorder %s210, 0
    %s213 = sadd.s32 %s212, 1
    %s214 = scalar_select %p211, %s212, %s213
    %p217 = pneg %p211
    %p218 = scmp.eq.s32.totalorder %s14, 1
    %p219 = por %p217, %p218
    %p220 = scmp.ne.s32.totalorder %s212, %s215
    %p221 = scmp.eq.s32.totalorder %s14, 0
    %p222 = por %p220, %p221
    %p223 = scmp.ne.s32.totalorder %s212, %s215
    %p224 = scmp.eq.s32.totalorder %s19, 1
    %p225 = por %p223, %p224
    %p226 = scmp.ne.s32.totalorder %s215, %s216
    %p227 = scmp.eq.s32.totalorder %s19, 0
    %p228 = por %p226, %p227
    %p229 = scmp.ne.s32.totalorder %s215, %s216
    %p230 = scmp.eq.s32.totalorder %s20, 1
    %p231 = por %p229, %p230
    %p233 = scmp.ne.s32.totalorder %s216, %s232
    %p234 = scmp.eq.s32.totalorder %s20, 0
    %p235 = por %p233, %p234
    %p236 = scmp.le.s32.totalorder 1, %s14
    %p237 = scmp.lt.s32.totalorder %s14, 3
    %p238 = pnand %p236, %p237
    %p239 = pneg %p238
    // Predicated region
    $region9: #{transformer_forward.13} parent=5 // pred_check
      _
    $region10: #{transformer_forward.13} parent=5 // pred_check_branch
      %241 = sbr.rel (%p238) target = $region12
    $region11: #{transformer_forward.13} parent=5 // pred_region
      %s242 = ssub.s32 %s14, 1
      // Predicated region
      $region13: #{transformer_forward.13} parent=11 // pred_check
        %p243 = pneg %p139
      $region14: #{transformer_forward.13} parent=11 // pred_check_branch
        %245 = sbr.rel (%p243) target = $region16
      $region15: #{transformer_forward.13} parent=11 // pred_region
        _
      $region16: #{transformer_forward.13} parent=11 // pred_fallthru
        _
      // Predicated region
      $region17: #{transformer_forward.13} parent=11 // pred_check
        %p246 = pneg %p160
      $region18: #{transformer_forward.13} parent=11 // pred_check_branch
        %248 = sbr.rel (%p246) target = $region20
      $region19: #{transformer_forward.13} parent=11 // pred_region
        _
      $region20: #{transformer_forward.13} parent=11 // pred_fallthru
        _
      // Predicated region
      $region21: #{transformer_forward.13} parent=11 // pred_check
        %p249 = pneg %p181
      $region22: #{transformer_forward.13} parent=11 // pred_check_branch
        %251 = sbr.rel (%p249) target = $region24
      $region23: #{transformer_forward.13} parent=11 // pred_region
        _
      $region24: #{transformer_forward.13} parent=11 // pred_fallthru
        _
      // Predicated region
      $region25: #{transformer_forward.13} parent=11 // pred_check
        %p252 = pneg %p202
      $region26: #{transformer_forward.13} parent=11 // pred_check_branch
        %254 = sbr.rel (%p252) target = $region28
      $region27: #{transformer_forward.13} parent=11 // pred_region
        _
      $region28: #{transformer_forward.13} parent=11 // pred_fallthru
        _
    $region12: #{transformer_forward.13} parent=5 // pred_fallthru
      _
    %p255 = scmp.lt.s32.totalorder %s14, 2
    // Predicated region
    $region29: #{transformer_forward.13} parent=5 // pred_check
      %p256 = pneg %p255
    $region30: #{transformer_forward.13} parent=5 // pred_check_branch
      %258 = sbr.rel (%p256) target = $region32
    $region31: #{transformer_forward.13} parent=5 // pred_region
      // Predicated region
      $region33: #{transformer_forward.13} parent=31 // pred_check
        %p259 = pneg %p34
      $region34: #{transformer_forward.13} parent=31 // pred_check_branch
        %261 = sbr.rel (%p259) target = $region36
      $region35: #{transformer_forward.13} parent=31 // pred_region
        %p262 = scmp.lt.s32.totalorder %s14, 1
        %s263 = scalar_select %p262, %s14, 1
        %s264 = smul.addr %s263, 4
        %s265 = smul.addr %s264, 8
        %s266 = scalar_lea.vmem %s0, %s265
      $region36: #{transformer_forward.13} parent=31 // pred_fallthru
        _
      // Predicated region
      $region37: #{transformer_forward.13} parent=31 // pred_check
        %p267 = pneg %p60
      $region38: #{transformer_forward.13} parent=31 // pred_check_branch
        %269 = sbr.rel (%p267) target = $region40
      $region39: #{transformer_forward.13} parent=31 // pred_region
        %p270 = scmp.lt.s32.totalorder %s14, 1
        %s271 = scalar_select %p270, %s14, 1
        %s272 = smul.addr %s271, 4
        %s273 = smul.addr %s272, 8
        %s274 = scalar_lea.vmem %s1, %s273
      $region40: #{transformer_forward.13} parent=31 // pred_fallthru
        _
      // Predicated region
      $region41: #{transformer_forward.13} parent=31 // pred_check
        %p275 = pneg %p86
      $region42: #{transformer_forward.13} parent=31 // pred_check_branch
        %277 = sbr.rel (%p275) target = $region44
      $region43: #{transformer_forward.13} parent=31 // pred_region
        %p278 = scmp.lt.s32.totalorder %s14, 1
        %s279 = scalar_select %p278, %s14, 1
        %s280 = smul.addr %s279, 4
        %s281 = smul.addr %s280, 8
        %s282 = scalar_lea.vmem %s2, %s281
      $region44: #{transformer_forward.13} parent=31 // pred_fallthru
        _
      // Predicated region
      $region45: #{transformer_forward.13} parent=31 // pred_check
        %p283 = pneg %p112
      $region46: #{transformer_forward.13} parent=31 // pred_check_branch
        %285 = sbr.rel (%p283) target = $region48
      $region47: #{transformer_forward.13} parent=31 // pred_region
        %p286 = scmp.lt.s32.totalorder %s14, 1
        %s287 = scalar_select %p286, %s14, 1
        %s288 = smul.addr %s287, 8
        %s289 = scalar_lea.vmem %s3, %s288
      $region48: #{transformer_forward.13} parent=31 // pred_fallthru
        _
    $region32: #{transformer_forward.13} parent=5 // pred_fallthru
      _
    %p290 = scmp.le.s32.totalorder 1, %s14
    %p291 = scmp.lt.s32.totalorder %s14, 3
    %p292 = pnand %p290, %p291
    %p293 = pneg %p292
    // Predicated region
    $region49: #{transformer_forward.13} parent=5 // pred_check
      _
    $region50: #{transformer_forward.13} parent=5 // pred_check_branch
      %295 = sbr.rel (%p292) target = $region52
    $region51: #{transformer_forward.13} parent=5 // pred_region
      %s296 = ssub.s32 %s14, 1
      %p297 = scmp.lt.s32.totalorder %s19, 1
      %s298 = scalar_select %p297, %s19, 1
      %s299 = smul.addr %s298, 4
      %s300 = smul.addr %s299, 8
      %s301 = scalar_lea.vmem %s0, %s300
      %p302 = pneg %p40
      %p303 = pneg %p37
      %p304 = scmp.lt.s32.totalorder %s19, 1
      %s305 = scalar_select %p304, %s19, 1
      %s306 = smul.addr %s305, 4
      %s307 = smul.addr %s306, 8
      %s308 = scalar_lea.vmem %s1, %s307
      %p309 = pneg %p66
      %p310 = pneg %p63
      %p311 = scmp.lt.s32.totalorder %s19, 1
      %s312 = scalar_select %p311, %s19, 1
      %s313 = smul.addr %s312, 4
      %s314 = smul.addr %s313, 8
      %s315 = scalar_lea.vmem %s2, %s314
      %p316 = pneg %p92
      %p317 = pneg %p89
      %p318 = scmp.lt.s32.totalorder %s19, 1
      %s319 = scalar_select %p318, %s19, 1
      %s320 = smul.addr %s319, 8
      %s321 = scalar_lea.vmem %s3, %s320
      %p322 = pneg %p118
      %p323 = pneg %p115
      %p324 = pneg %p139
      %p325 = pneg %p136
      %p326 = pneg %p160
      %p327 = pneg %p157
      %p328 = pneg %p181
      %p329 = pneg %p178
      %p330 = pneg %p202
      %p331 = pneg %p199
      %p332 = pneg %p228
      %p333 = pneg %p225
      %p334 = scmp.lt.s32.totalorder %s19, 1
      %s335 = scalar_select %p334, %s19, 1
      %s336 = smul.addr %s335, 8
      %s337 = scalar_lea.vmem %s8, %s336
      %p338 = scmp.lt.s32.totalorder %s19, 1
      %s339 = scalar_select %p338, %s19, 1
      %s340 = smul.addr %s339, 4
      %s341 = smul.addr %s340, 8
      %s342 = scalar_lea.vmem %s0, %s341
      %p343 = scmp.lt.s32.totalorder %s19, 1
      %s344 = scalar_select %p343, %s19, 1
      %s345 = smul.addr %s344, 4
      %s346 = smul.addr %s345, 8
      %s347 = scalar_lea.vmem %s1, %s346
      %p348 = scmp.lt.s32.totalorder %s19, 1
      %s349 = scalar_select %p348, %s19, 1
      %s350 = smul.addr %s349, 4
      %s351 = smul.addr %s350, 8
      %s352 = scalar_lea.vmem %s2, %s351
      %p353 = scmp.lt.s32.totalorder %s19, 1
      %s354 = scalar_select %p353, %s19, 1
      %s355 = smul.addr %s354, 8
      %s356 = scalar_lea.vmem %s3, %s355
      %p357 = scmp.lt.s32.totalorder %s19, 1
      %s358 = scalar_select %p357, %s19, 1
      %s359 = smul.addr %s358, 8
      %s360 = scalar_lea.vmem %s8, %s359
      %v361 = vlaneseq
      %v362 = vshrl.u32 %v361, 7
      %v363 = vlaneseq
      %v364 = vand.u32 %v363, 127
      %vm365 = vcmp.gt.s32.totalorder %v364, %v362
      %v366 = vld [vmem:[%s342] sm:$0xff]
      %v367 = vld [vmem:[%s347] sm:$0xff]
      %v368 = vld [vmem:[%s352] sm:$0xff]
      %vm369 = vcmask 261120
      %v371 = vsel %vm369, %v366, 0
      %v374 = vsel %vm369, %v367, 0
      %376 = vmatprep.subr.mxu0 0.0
      %377 = vmatpush1.xpose.msra.mxu0 0.0
      %378 = vmatprep.subr.mxu0 0.0
      %379 = vmatpush1.xpose.msra.mxu0 0.0
      %380 = vmatprep.subr.mxu0 0.0
      %381 = vmatpush1.xpose.msra.mxu0 0.0
      %382 = vmatprep.subr.mxu0 0.0
      %383 = vmatpush1.xpose.msra.mxu0 0.0
      %384 = vmatprep.subr.mxu0 0.0
      %385 = vmatpush1.xpose.msra.mxu0 0.0
      %386 = vmatprep.subr.mxu0 0.0
      %387 = vmatpush1.xpose.msra.mxu0 0.0
      %388 = vmatprep.subr.mxu0 0.0
      %389 = vmatpush1.xpose.msra.mxu0 0.0
      %390 = vmatprep.subr.mxu0 0.0
      %391 = vmatpush1.xpose.msra.mxu0 0.0
      %392 = vmatprep.subr.mxu0 0.0
      %393 = vmatpush1.xpose.msra.mxu0 0.0
      %394 = vmatprep.subr.mxu0 0.0
      %395 = vmatpush1.xpose.msra.mxu0 0.0
      %396 = vmatprep.subr.mxu0 0.0
      %397 = vmatpush1.xpose.msra.mxu0 0.0
      %398 = vmatprep.subr.mxu0 0.0
      %399 = vmatpush1.xpose.msra.mxu0 0.0
      %400 = vmatprep.subr.mxu0 0.0
      %401 = vmatpush1.xpose.msra.mxu0 0.0
      %402 = vmatprep.subr.mxu0 0.0
      %403 = vmatpush1.xpose.msra.mxu0 0.0
      %404 = vmatprep.subr.mxu0 0.0
      %405 = vmatpush1.xpose.msra.mxu0 0.0
      %406 = vmatprep.subr.mxu0 0.0
      %407 = vmatpush1.xpose.msra.mxu0 %v374
      %408 = vmatprep.subr.mxu0 0.0
      %409 = vmatpush2.xpose.msra.mxu0 0.0
      %410 = vmatprep.subr.mxu0 0.0
      %411 = vmatpush2.xpose.msra.mxu0 0.0
      %412 = vmatprep.subr.mxu0 0.0
      %413 = vmatpush2.xpose.msra.mxu0 0.0
      %414 = vmatprep.subr.mxu0 0.0
      %415 = vmatpush2.xpose.msra.mxu0 0.0
      %416 = vmatprep.subr.mxu0 0.0
      %417 = vmatpush2.xpose.msra.mxu0 0.0
      %418 = vmatprep.subr.mxu0 0.0
      %419 = vmatpush2.xpose.msra.mxu0 0.0
      %420 = vmatprep.subr.mxu0 0.0
      %421 = vmatpush2.xpose.msra.mxu0 0.0
      %422 = vmatprep.subr.mxu0 0.0
      %423 = vmatpush2.xpose.msra.mxu0 0.0
      %424 = vmatprep.subr.mxu0 0.0
      %425 = vmatpush2.xpose.msra.mxu0 0.0
      %426 = vmatprep.subr.mxu0 0.0
      %427 = vmatpush2.xpose.msra.mxu0 0.0
      %428 = vmatprep.subr.mxu0 0.0
      %429 = vmatpush2.xpose.msra.mxu0 0.0
      %430 = vmatprep.subr.mxu0 0.0
      %431 = vmatpush2.xpose.msra.mxu0 0.0
      %432 = vmatprep.subr.mxu0 0.0
      %433 = vmatpush2.xpose.msra.mxu0 0.0
      %434 = vmatprep.subr.mxu0 0.0
      %435 = vmatpush2.xpose.msra.mxu0 0.0
      %436 = vmatprep.subr.mxu0 0.0
      %437 = vmatpush2.xpose.msra.mxu0 0.0
      %438 = vmatprep.subr.mxu0 0.0
      %439 = vmatpush2.xpose.msra.mxu0 0.0
      %440 = vmatprep.mubr.f32.mxu0 0.0
      %441 = vmatmul.mubr.f32.gmra.mxu0 %v371
      %v442 = vpop.f32.mrf.mxu0
      %v443 = vadd.f32 0.0, %v442
      %v444 = vpop.f32.mrf.mxu0
      %445 = vdwg.mxu0
      %v446 = vsel %vm365, -inf, %v443
      %vm447 = vcmask 64512
      %v448 = vsel %vm447, %v446, -inf
      %449 = vmax.xlane.f32.xlu0 %v448
      %v450 = vpop.xlane.xlu0 %449
      %v451 = vsub.f32 %v446, %v450
      %v452 = vmul.f32 %v451, 1.442695
      %v453 = vpow.pop %v452
      %v454 = vsel %vm447, %v453, 0.0
      %455 = vadd.xlane.f32.xlu0 %v454
      %v456 = vpop.xlane.xlu0 %455
      %v457 = vrcp.pop %v456
      %v458 = vmul.f32 %v453, %v457
      %v460 = vsel %vm447, %v458, 0
      %462 = vmatprep.subr.mxu0 0.0
      %463 = vmatpush1.msra.mxu0 0.0
      %464 = vmatprep.subr.mxu0 0.0
      %465 = vmatpush1.msra.mxu0 0.0
      %466 = vmatprep.subr.mxu0 0.0
      %467 = vmatpush1.msra.mxu0 0.0
      %468 = vmatprep.subr.mxu0 0.0
      %469 = vmatpush1.msra.mxu0 0.0
      %470 = vmatprep.subr.mxu0 0.0
      %471 = vmatpush1.msra.mxu0 0.0
      %472 = vmatprep.subr.mxu0 0.0
      %473 = vmatpush1.msra.mxu0 0.0
      %474 = vmatprep.subr.mxu0 0.0
      %475 = vmatpush1.msra.mxu0 0.0
      %476 = vmatprep.subr.mxu0 0.0
      %477 = vmatpush1.msra.mxu0 0.0
      %478 = vmatprep.subr.mxu0 0.0
      %479 = vmatpush1.msra.mxu0 0.0
      %480 = vmatprep.subr.mxu0 0.0
      %481 = vmatpush1.msra.mxu0 0.0
      %482 = vmatprep.subr.mxu0 0.0
      %483 = vmatpush1.msra.mxu0 0.0
      %484 = vmatprep.subr.mxu0 0.0
      %485 = vmatpush1.msra.mxu0 0.0
      %486 = vmatprep.subr.mxu0 0.0
      %487 = vmatpush1.msra.mxu0 0.0
      %488 = vmatprep.subr.mxu0 0.0
      %489 = vmatpush1.msra.mxu0 0.0
      %490 = vmatprep.subr.mxu0 0.0
      %491 = vmatpush1.msra.mxu0 0.0
      %492 = vmatprep.subr.mxu0 0.0
      %493 = vmatpush1.msra.mxu0 %v368
      %494 = vmatprep.subr.mxu0 0.0
      %495 = vmatpush2.msra.mxu0 0.0
      %496 = vmatprep.subr.mxu0 0.0
      %497 = vmatpush2.msra.mxu0 0.0
      %498 = vmatprep.subr.mxu0 0.0
      %499 = vmatpush2.msra.mxu0 0.0
      %500 = vmatprep.subr.mxu0 0.0
      %501 = vmatpush2.msra.mxu0 0.0
      %502 = vmatprep.subr.mxu0 0.0
      %503 = vmatpush2.msra.mxu0 0.0
      %504 = vmatprep.subr.mxu0 0.0
      %505 = vmatpush2.msra.mxu0 0.0
      %506 = vmatprep.subr.mxu0 0.0
      %507 = vmatpush2.msra.mxu0 0.0
      %508 = vmatprep.subr.mxu0 0.0
      %509 = vmatpush2.msra.mxu0 0.0
      %510 = vmatprep.subr.mxu0 0.0
      %511 = vmatpush2.msra.mxu0 0.0
      %512 = vmatprep.subr.mxu0 0.0
      %513 = vmatpush2.msra.mxu0 0.0
      %514 = vmatprep.subr.mxu0 0.0
      %515 = vmatpush2.msra.mxu0 0.0
      %516 = vmatprep.subr.mxu0 0.0
      %517 = vmatpush2.msra.mxu0 0.0
      %518 = vmatprep.subr.mxu0 0.0
      %519 = vmatpush2.msra.mxu0 0.0
      %520 = vmatprep.subr.mxu0 0.0
      %521 = vmatpush2.msra.mxu0 0.0
      %522 = vmatprep.subr.mxu0 0.0
      %523 = vmatpush2.msra.mxu0 0.0
      %524 = vmatprep.subr.mxu0 0.0
      %525 = vmatpush2.msra.mxu0 0.0
      %526 = vmatprep.mubr.f32.mxu0 0.0
      %527 = vmatmul.mubr.f32.gmra.mxu0 %v460
      %v528 = vpop.f32.mrf.mxu0
      %v529 = vadd.f32 0.0, %v528
      %v530 = vpop.f32.mrf.mxu0
      %531 = vdwg.mxu0
      %v532 = vld [vmem:[%s4] sm:$0xff]
      %v533 = vld [vmem:[%s4 + $0x8] sm:$0xff]
      %v534 = vld [vmem:[%s4 + $0x10] sm:$0xff]
      %v535 = vld [vmem:[%s4 + $0x18] sm:$0xff]
      %s536 = scalar_lea.vmem %s342, 8
      %v537 = vld [vmem:[%s536] sm:$0xff]
      %s538 = scalar_lea.vmem %s347, 8
      %v539 = vld [vmem:[%s538] sm:$0xff]
      %s540 = scalar_lea.vmem %s352, 8
      %v541 = vld [vmem:[%s540] sm:$0xff]
      %v543 = vsel %vm369, %v537, 0
      %v546 = vsel %vm369, %v539, 0
      %548 = vmatprep.subr.mxu0 0.0
      %549 = vmatpush1.xpose.msra.mxu0 0.0
      %550 = vmatprep.subr.mxu0 0.0
      %551 = vmatpush1.xpose.msra.mxu0 0.0
      %552 = vmatprep.subr.mxu0 0.0
      %553 = vmatpush1.xpose.msra.mxu0 0.0
      %554 = vmatprep.subr.mxu0 0.0
      %555 = vmatpush1.xpose.msra.mxu0 0.0
      %556 = vmatprep.subr.mxu0 0.0
      %557 = vmatpush1.xpose.msra.mxu0 0.0
      %558 = vmatprep.subr.mxu0 0.0
      %559 = vmatpush1.xpose.msra.mxu0 0.0
      %560 = vmatprep.subr.mxu0 0.0
      %561 = vmatpush1.xpose.msra.mxu0 0.0
      %562 = vmatprep.subr.mxu0 0.0
      %563 = vmatpush1.xpose.msra.mxu0 0.0
      %564 = vmatprep.subr.mxu0 0.0
      %565 = vmatpush1.xpose.msra.mxu0 0.0
      %566 = vmatprep.subr.mxu0 0.0
      %567 = vmatpush1.xpose.msra.mxu0 0.0
      %568 = vmatprep.subr.mxu0 0.0
      %569 = vmatpush1.xpose.msra.mxu0 0.0
      %570 = vmatprep.subr.mxu0 0.0
      %571 = vmatpush1.xpose.msra.mxu0 0.0
      %572 = vmatprep.subr.mxu0 0.0
      %573 = vmatpush1.xpose.msra.mxu0 0.0
      %574 = vmatprep.subr.mxu0 0.0
      %575 = vmatpush1.xpose.msra.mxu0 0.0
      %576 = vmatprep.subr.mxu0 0.0
      %577 = vmatpush1.xpose.msra.mxu0 0.0
      %578 = vmatprep.subr.mxu0 0.0
      %579 = vmatpush1.xpose.msra.mxu0 %v546
      %580 = vmatprep.subr.mxu0 0.0
      %581 = vmatpush2.xpose.msra.mxu0 0.0
      %582 = vmatprep.subr.mxu0 0.0
      %583 = vmatpush2.xpose.msra.mxu0 0.0
      %584 = vmatprep.subr.mxu0 0.0
      %585 = vmatpush2.xpose.msra.mxu0 0.0
      %586 = vmatprep.subr.mxu0 0.0
      %587 = vmatpush2.xpose.msra.mxu0 0.0
      %588 = vmatprep.subr.mxu0 0.0
      %589 = vmatpush2.xpose.msra.mxu0 0.0
      %590 = vmatprep.subr.mxu0 0.0
      %591 = vmatpush2.xpose.msra.mxu0 0.0
      %592 = vmatprep.subr.mxu0 0.0
      %593 = vmatpush2.xpose.msra.mxu0 0.0
      %594 = vmatprep.subr.mxu0 0.0
      %595 = vmatpush2.xpose.msra.mxu0 0.0
      %596 = vmatprep.subr.mxu0 0.0
      %597 = vmatpush2.xpose.msra.mxu0 0.0
      %598 = vmatprep.subr.mxu0 0.0
      %599 = vmatpush2.xpose.msra.mxu0 0.0
      %600 = vmatprep.subr.mxu0 0.0
      %601 = vmatpush2.xpose.msra.mxu0 0.0
      %602 = vmatprep.subr.mxu0 0.0
      %603 = vmatpush2.xpose.msra.mxu0 0.0
      %604 = vmatprep.subr.mxu0 0.0
      %605 = vmatpush2.xpose.msra.mxu0 0.0
      %606 = vmatprep.subr.mxu0 0.0
      %607 = vmatpush2.xpose.msra.mxu0 0.0
      %608 = vmatprep.subr.mxu0 0.0
      %609 = vmatpush2.xpose.msra.mxu0 0.0
      %610 = vmatprep.subr.mxu0 0.0
      %611 = vmatpush2.xpose.msra.mxu0 0.0
      %612 = vmatprep.mubr.f32.mxu0 0.0
      %613 = vmatmul.mubr.f32.gmra.mxu0 %v543
      %v614 = vpop.f32.mrf.mxu0
      %v615 = vadd.f32 0.0, %v614
      %v616 = vpop.f32.mrf.mxu0
      %617 = vdwg.mxu0
      %v618 = vsel %vm365, -inf, %v615
      %v619 = vsel %vm447, %v618, -inf
      %620 = vmax.xlane.f32.xlu0 %v619
      %v621 = vpop.xlane.xlu0 %620
      %v622 = vsub.f32 %v618, %v621
      %v623 = vmul.f32 %v622, 1.442695
      %v624 = vpow.pop %v623
      %v625 = vsel %vm447, %v624, 0.0
      %626 = vadd.xlane.f32.xlu0 %v625
      %v627 = vpop.xlane.xlu0 %626
      %v628 = vrcp.pop %v627
      %v629 = vmul.f32 %v624, %v628
      %v631 = vsel %vm447, %v629, 0
      %633 = vmatprep.subr.mxu0 0.0
      %634 = vmatpush1.msra.mxu0 0.0
      %635 = vmatprep.subr.mxu0 0.0
      %636 = vmatpush1.msra.mxu0 0.0
      %637 = vmatprep.subr.mxu0 0.0
      %638 = vmatpush1.msra.mxu0 0.0
      %639 = vmatprep.subr.mxu0 0.0
      %640 = vmatpush1.msra.mxu0 0.0
      %641 = vmatprep.subr.mxu0 0.0
      %642 = vmatpush1.msra.mxu0 0.0
      %643 = vmatprep.subr.mxu0 0.0
      %644 = vmatpush1.msra.mxu0 0.0
      %645 = vmatprep.subr.mxu0 0.0
      %646 = vmatpush1.msra.mxu0 0.0
      %647 = vmatprep.subr.mxu0 0.0
      %648 = vmatpush1.msra.mxu0 0.0
      %649 = vmatprep.subr.mxu0 0.0
      %650 = vmatpush1.msra.mxu0 0.0
      %651 = vmatprep.subr.mxu0 0.0
      %652 = vmatpush1.msra.mxu0 0.0
      %653 = vmatprep.subr.mxu0 0.0
      %654 = vmatpush1.msra.mxu0 0.0
      %655 = vmatprep.subr.mxu0 0.0
      %656 = vmatpush1.msra.mxu0 0.0
      %657 = vmatprep.subr.mxu0 0.0
      %658 = vmatpush1.msra.mxu0 0.0
      %659 = vmatprep.subr.mxu0 0.0
      %660 = vmatpush1.msra.mxu0 0.0
      %661 = vmatprep.subr.mxu0 0.0
      %662 = vmatpush1.msra.mxu0 0.0
      %663 = vmatprep.subr.mxu0 0.0
      %664 = vmatpush1.msra.mxu0 %v541
      %665 = vmatprep.subr.mxu0 0.0
      %666 = vmatpush2.msra.mxu0 0.0
      %667 = vmatprep.subr.mxu0 0.0
      %668 = vmatpush2.msra.mxu0 0.0
      %669 = vmatprep.subr.mxu0 0.0
      %670 = vmatpush2.msra.mxu0 0.0
      %671 = vmatprep.subr.mxu0 0.0
      %672 = vmatpush2.msra.mxu0 0.0
      %673 = vmatprep.subr.mxu0 0.0
      %674 = vmatpush2.msra.mxu0 0.0
      %675 = vmatprep.subr.mxu0 0.0
      %676 = vmatpush2.msra.mxu0 0.0
      %677 = vmatprep.subr.mxu0 0.0
      %678 = vmatpush2.msra.mxu0 0.0
      %679 = vmatprep.subr.mxu0 0.0
      %680 = vmatpush2.msra.mxu0 0.0
      %681 = vmatprep.subr.mxu0 0.0
      %682 = vmatpush2.msra.mxu0 0.0
      %683 = vmatprep.subr.mxu0 0.0
      %684 = vmatpush2.msra.mxu0 0.0
      %685 = vmatprep.subr.mxu0 0.0
      %686 = vmatpush2.msra.mxu0 0.0
      %687 = vmatprep.subr.mxu0 0.0
      %688 = vmatpush2.msra.mxu0 0.0
      %689 = vmatprep.subr.mxu0 0.0
      %690 = vmatpush2.msra.mxu0 0.0
      %691 = vmatprep.subr.mxu0 0.0
      %692 = vmatpush2.msra.mxu0 0.0
      %693 = vmatprep.subr.mxu0 0.0
      %694 = vmatpush2.msra.mxu0 0.0
      %695 = vmatprep.subr.mxu0 0.0
      %696 = vmatpush2.msra.mxu0 0.0
      %697 = vmatprep.mubr.f32.mxu0 0.0
      %698 = vmatmul.mubr.f32.gmra.mxu0 %v631
      %v699 = vpop.f32.mrf.mxu0
      %v700 = vadd.f32 0.0, %v699
      %v701 = vpop.f32.mrf.mxu0
      %702 = vdwg.mxu0
      %v703 = vld [vmem:[%s4 + $0x20] sm:$0xff]
      %v704 = vld [vmem:[%s4 + $0x28] sm:$0xff]
      %v705 = vld [vmem:[%s4 + $0x30] sm:$0xff]
      %v706 = vld [vmem:[%s4 + $0x38] sm:$0xff]
      %v708 = vsel %vm369, %v700, 0
      %710 = vmatprep.subr.mxu0 0.0
      %711 = vmatpush1.msra.mxu0 0.0
      %712 = vmatprep.subr.mxu0 0.0
      %713 = vmatpush1.msra.mxu0 0.0
      %714 = vmatprep.subr.mxu0 0.0
      %715 = vmatpush1.msra.mxu0 0.0
      %716 = vmatprep.subr.mxu0 0.0
      %717 = vmatpush1.msra.mxu0 0.0
      %718 = vmatprep.subr.mxu0 0.0
      %719 = vmatpush1.msra.mxu0 0.0
      %720 = vmatprep.subr.mxu0 0.0
      %721 = vmatpush1.msra.mxu0 0.0
      %722 = vmatprep.subr.mxu0 0.0
      %723 = vmatpush1.msra.mxu0 0.0
      %724 = vmatprep.subr.mxu0 0.0
      %725 = vmatpush1.msra.mxu0 0.0
      %726 = vmatprep.subr.mxu0 0.0
      %727 = vmatpush1.msra.mxu0 0.0
      %728 = vmatprep.subr.mxu0 0.0
      %729 = vmatpush1.msra.mxu0 0.0
      %730 = vmatprep.subr.mxu0 0.0
      %731 = vmatpush1.msra.mxu0 0.0
      %732 = vmatprep.subr.mxu0 0.0
      %733 = vmatpush1.msra.mxu0 0.0
      %734 = vmatprep.subr.mxu0 0.0
      %735 = vmatpush1.msra.mxu0 %v706
      %736 = vmatprep.subr.mxu0 0.0
      %737 = vmatpush1.msra.mxu0 %v705
      %738 = vmatprep.subr.mxu0 0.0
      %739 = vmatpush1.msra.mxu0 %v704
      %740 = vmatprep.subr.mxu0 0.0
      %741 = vmatpush1.msra.mxu0 %v703
      %742 = vmatprep.subr.mxu0 0.0
      %743 = vmatpush2.msra.mxu0 0.0
      %744 = vmatprep.subr.mxu0 0.0
      %745 = vmatpush2.msra.mxu0 0.0
      %746 = vmatprep.subr.mxu0 0.0
      %747 = vmatpush2.msra.mxu0 0.0
      %748 = vmatprep.subr.mxu0 0.0
      %749 = vmatpush2.msra.mxu0 0.0
      %750 = vmatprep.subr.mxu0 0.0
      %751 = vmatpush2.msra.mxu0 0.0
      %752 = vmatprep.subr.mxu0 0.0
      %753 = vmatpush2.msra.mxu0 0.0
      %754 = vmatprep.subr.mxu0 0.0
      %755 = vmatpush2.msra.mxu0 0.0
      %756 = vmatprep.subr.mxu0 0.0
      %757 = vmatpush2.msra.mxu0 0.0
      %758 = vmatprep.subr.mxu0 0.0
      %759 = vmatpush2.msra.mxu0 0.0
      %760 = vmatprep.subr.mxu0 0.0
      %761 = vmatpush2.msra.mxu0 0.0
      %762 = vmatprep.subr.mxu0 0.0
      %763 = vmatpush2.msra.mxu0 0.0
      %764 = vmatprep.subr.mxu0 0.0
      %765 = vmatpush2.msra.mxu0 0.0
      %766 = vmatprep.subr.mxu0 0.0
      %767 = vmatpush2.msra.mxu0 0.0
      %768 = vmatprep.subr.mxu0 0.0
      %769 = vmatpush2.msra.mxu0 0.0
      %770 = vmatprep.subr.mxu0 0.0
      %771 = vmatpush2.msra.mxu0 0.0
      %772 = vmatprep.subr.mxu0 0.0
      %773 = vmatpush2.msra.mxu0 0.0
      %774 = vmatprep.mubr.f32.mxu0 0.0
      %775 = vmatmul.mubr.f32.gmra.mxu0 %v708
      %v776 = vpop.f32.mrf.mxu0
      %v777 = vadd.f32 0.0, %v776
      %v778 = vpop.f32.mrf.mxu0
      %779 = vdwg.mxu0
      %v781 = vsel %vm369, %v529, 0
      %783 = vmatprep.subr.mxu0 0.0
      %784 = vmatpush1.msra.mxu0 0.0
      %785 = vmatprep.subr.mxu0 0.0
      %786 = vmatpush1.msra.mxu0 0.0
      %787 = vmatprep.subr.mxu0 0.0
      %788 = vmatpush1.msra.mxu0 0.0
      %789 = vmatprep.subr.mxu0 0.0
      %790 = vmatpush1.msra.mxu0 0.0
      %791 = vmatprep.subr.mxu0 0.0
      %792 = vmatpush1.msra.mxu0 0.0
      %793 = vmatprep.subr.mxu0 0.0
      %794 = vmatpush1.msra.mxu0 0.0
      %795 = vmatprep.subr.mxu0 0.0
      %796 = vmatpush1.msra.mxu0 0.0
      %797 = vmatprep.subr.mxu0 0.0
      %798 = vmatpush1.msra.mxu0 0.0
      %799 = vmatprep.subr.mxu0 0.0
      %800 = vmatpush1.msra.mxu0 0.0
      %801 = vmatprep.subr.mxu0 0.0
      %802 = vmatpush1.msra.mxu0 0.0
      %803 = vmatprep.subr.mxu0 0.0
      %804 = vmatpush1.msra.mxu0 0.0
      %805 = vmatprep.subr.mxu0 0.0
      %806 = vmatpush1.msra.mxu0 0.0
      %807 = vmatprep.subr.mxu0 0.0
      %808 = vmatpush1.msra.mxu0 %v535
      %809 = vmatprep.subr.mxu0 0.0
      %810 = vmatpush1.msra.mxu0 %v534
      %811 = vmatprep.subr.mxu0 0.0
      %812 = vmatpush1.msra.mxu0 %v533
      %813 = vmatprep.subr.mxu0 0.0
      %814 = vmatpush1.msra.mxu0 %v532
      %815 = vmatprep.subr.mxu0 0.0
      %816 = vmatpush2.msra.mxu0 0.0
      %817 = vmatprep.subr.mxu0 0.0
      %818 = vmatpush2.msra.mxu0 0.0
      %819 = vmatprep.subr.mxu0 0.0
      %820 = vmatpush2.msra.mxu0 0.0
      %821 = vmatprep.subr.mxu0 0.0
      %822 = vmatpush2.msra.mxu0 0.0
      %823 = vmatprep.subr.mxu0 0.0
      %824 = vmatpush2.msra.mxu0 0.0
      %825 = vmatprep.subr.mxu0 0.0
      %826 = vmatpush2.msra.mxu0 0.0
      %827 = vmatprep.subr.mxu0 0.0
      %828 = vmatpush2.msra.mxu0 0.0
      %829 = vmatprep.subr.mxu0 0.0
      %830 = vmatpush2.msra.mxu0 0.0
      %831 = vmatprep.subr.mxu0 0.0
      %832 = vmatpush2.msra.mxu0 0.0
      %833 = vmatprep.subr.mxu0 0.0
      %834 = vmatpush2.msra.mxu0 0.0
      %835 = vmatprep.subr.mxu0 0.0
      %836 = vmatpush2.msra.mxu0 0.0
      %837 = vmatprep.subr.mxu0 0.0
      %838 = vmatpush2.msra.mxu0 0.0
      %839 = vmatprep.subr.mxu0 0.0
      %840 = vmatpush2.msra.mxu0 0.0
      %841 = vmatprep.subr.mxu0 0.0
      %842 = vmatpush2.msra.mxu0 0.0
      %843 = vmatprep.subr.mxu0 0.0
      %844 = vmatpush2.msra.mxu0 0.0
      %845 = vmatprep.subr.mxu0 0.0
      %846 = vmatpush2.msra.mxu0 0.0
      %847 = vmatprep.mubr.f32.mxu0 0.0
      %848 = vmatmul.mubr.f32.gmra.mxu0 %v781
      %v849 = vpop.f32.mrf.mxu0
      %v850 = vadd.f32 %v777, %v849
      %v851 = vpop.f32.mrf.mxu0
      %852 = vdwg.mxu0
      %s853 = scalar_lea.vmem %s342, 16
      %v854 = vld [vmem:[%s853] sm:$0xff]
      %s855 = scalar_lea.vmem %s347, 16
      %v856 = vld [vmem:[%s855] sm:$0xff]
      %s857 = scalar_lea.vmem %s352, 16
      %v858 = vld [vmem:[%s857] sm:$0xff]
      %v860 = vsel %vm369, %v854, 0
      %v863 = vsel %vm369, %v856, 0
      %865 = vmatprep.subr.mxu0 0.0
      %866 = vmatpush1.xpose.msra.mxu0 0.0
      %867 = vmatprep.subr.mxu0 0.0
      %868 = vmatpush1.xpose.msra.mxu0 0.0
      %869 = vmatprep.subr.mxu0 0.0
      %870 = vmatpush1.xpose.msra.mxu0 0.0
      %871 = vmatprep.subr.mxu0 0.0
      %872 = vmatpush1.xpose.msra.mxu0 0.0
      %873 = vmatprep.subr.mxu0 0.0
      %874 = vmatpush1.xpose.msra.mxu0 0.0
      %875 = vmatprep.subr.mxu0 0.0
      %876 = vmatpush1.xpose.msra.mxu0 0.0
      %877 = vmatprep.subr.mxu0 0.0
      %878 = vmatpush1.xpose.msra.mxu0 0.0
      %879 = vmatprep.subr.mxu0 0.0
      %880 = vmatpush1.xpose.msra.mxu0 0.0
      %881 = vmatprep.subr.mxu0 0.0
      %882 = vmatpush1.xpose.msra.mxu0 0.0
      %883 = vmatprep.subr.mxu0 0.0
      %884 = vmatpush1.xpose.msra.mxu0 0.0
      %885 = vmatprep.subr.mxu0 0.0
      %886 = vmatpush1.xpose.msra.mxu0 0.0
      %887 = vmatprep.subr.mxu0 0.0
      %888 = vmatpush1.xpose.msra.mxu0 0.0
      %889 = vmatprep.subr.mxu0 0.0
      %890 = vmatpush1.xpose.msra.mxu0 0.0
      %891 = vmatprep.subr.mxu0 0.0
      %892 = vmatpush1.xpose.msra.mxu0 0.0
      %893 = vmatprep.subr.mxu0 0.0
      %894 = vmatpush1.xpose.msra.mxu0 0.0
      %895 = vmatprep.subr.mxu0 0.0
      %896 = vmatpush1.xpose.msra.mxu0 %v863
      %897 = vmatprep.subr.mxu0 0.0
      %898 = vmatpush2.xpose.msra.mxu0 0.0
      %899 = vmatprep.subr.mxu0 0.0
      %900 = vmatpush2.xpose.msra.mxu0 0.0
      %901 = vmatprep.subr.mxu0 0.0
      %902 = vmatpush2.xpose.msra.mxu0 0.0
      %903 = vmatprep.subr.mxu0 0.0
      %904 = vmatpush2.xpose.msra.mxu0 0.0
      %905 = vmatprep.subr.mxu0 0.0
      %906 = vmatpush2.xpose.msra.mxu0 0.0
      %907 = vmatprep.subr.mxu0 0.0
      %908 = vmatpush2.xpose.msra.mxu0 0.0
      %909 = vmatprep.subr.mxu0 0.0
      %910 = vmatpush2.xpose.msra.mxu0 0.0
      %911 = vmatprep.subr.mxu0 0.0
      %912 = vmatpush2.xpose.msra.mxu0 0.0
      %913 = vmatprep.subr.mxu0 0.0
      %914 = vmatpush2.xpose.msra.mxu0 0.0
      %915 = vmatprep.subr.mxu0 0.0
      %916 = vmatpush2.xpose.msra.mxu0 0.0
      %917 = vmatprep.subr.mxu0 0.0
      %918 = vmatpush2.xpose.msra.mxu0 0.0
      %919 = vmatprep.subr.mxu0 0.0
      %920 = vmatpush2.xpose.msra.mxu0 0.0
      %921 = vmatprep.subr.mxu0 0.0
      %922 = vmatpush2.xpose.msra.mxu0 0.0
      %923 = vmatprep.subr.mxu0 0.0
      %924 = vmatpush2.xpose.msra.mxu0 0.0
      %925 = vmatprep.subr.mxu0 0.0
      %926 = vmatpush2.xpose.msra.mxu0 0.0
      %927 = vmatprep.subr.mxu0 0.0
      %928 = vmatpush2.xpose.msra.mxu0 0.0
      %929 = vmatprep.mubr.f32.mxu0 0.0
      %930 = vmatmul.mubr.f32.gmra.mxu0 %v860
      %v931 = vpop.f32.mrf.mxu0
      %v932 = vadd.f32 0.0, %v931
      %v933 = vpop.f32.mrf.mxu0
      %934 = vdwg.mxu0
      %v935 = vsel %vm365, -inf, %v932
      %v936 = vsel %vm447, %v935, -inf
      %937 = vmax.xlane.f32.xlu0 %v936
      %v938 = vpop.xlane.xlu0 %937
      %v939 = vsub.f32 %v935, %v938
      %v940 = vmul.f32 %v939, 1.442695
      %v941 = vpow.pop %v940
      %v942 = vsel %vm447, %v941, 0.0
      %943 = vadd.xlane.f32.xlu0 %v942
      %v944 = vpop.xlane.xlu0 %943
      %v945 = vrcp.pop %v944
      %v946 = vmul.f32 %v941, %v945
      %v948 = vsel %vm447, %v946, 0
      %950 = vmatprep.subr.mxu0 0.0
      %951 = vmatpush1.msra.mxu0 0.0
      %952 = vmatprep.subr.mxu0 0.0
      %953 = vmatpush1.msra.mxu0 0.0
      %954 = vmatprep.subr.mxu0 0.0
      %955 = vmatpush1.msra.mxu0 0.0
      %956 = vmatprep.subr.mxu0 0.0
      %957 = vmatpush1.msra.mxu0 0.0
      %958 = vmatprep.subr.mxu0 0.0
      %959 = vmatpush1.msra.mxu0 0.0
      %960 = vmatprep.subr.mxu0 0.0
      %961 = vmatpush1.msra.mxu0 0.0
      %962 = vmatprep.subr.mxu0 0.0
      %963 = vmatpush1.msra.mxu0 0.0
      %964 = vmatprep.subr.mxu0 0.0
      %965 = vmatpush1.msra.mxu0 0.0
      %966 = vmatprep.subr.mxu0 0.0
      %967 = vmatpush1.msra.mxu0 0.0
      %968 = vmatprep.subr.mxu0 0.0
      %969 = vmatpush1.msra.mxu0 0.0
      %970 = vmatprep.subr.mxu0 0.0
      %971 = vmatpush1.msra.mxu0 0.0
      %972 = vmatprep.subr.mxu0 0.0
      %973 = vmatpush1.msra.mxu0 0.0
      %974 = vmatprep.subr.mxu0 0.0
      %975 = vmatpush1.msra.mxu0 0.0
      %976 = vmatprep.subr.mxu0 0.0
      %977 = vmatpush1.msra.mxu0 0.0
      %978 = vmatprep.subr.mxu0 0.0
      %979 = vmatpush1.msra.mxu0 0.0
      %980 = vmatprep.subr.mxu0 0.0
      %981 = vmatpush1.msra.mxu0 %v858
      %982 = vmatprep.subr.mxu0 0.0
      %983 = vmatpush2.msra.mxu0 0.0
      %984 = vmatprep.subr.mxu0 0.0
      %985 = vmatpush2.msra.mxu0 0.0
      %986 = vmatprep.subr.mxu0 0.0
      %987 = vmatpush2.msra.mxu0 0.0
      %988 = vmatprep.subr.mxu0 0.0
      %989 = vmatpush2.msra.mxu0 0.0
      %990 = vmatprep.subr.mxu0 0.0
      %991 = vmatpush2.msra.mxu0 0.0
      %992 = vmatprep.subr.mxu0 0.0
      %993 = vmatpush2.msra.mxu0 0.0
      %994 = vmatprep.subr.mxu0 0.0
      %995 = vmatpush2.msra.mxu0 0.0
      %996 = vmatprep.subr.mxu0 0.0
      %997 = vmatpush2.msra.mxu0 0.0
      %998 = vmatprep.subr.mxu0 0.0
      %999 = vmatpush2.msra.mxu0 0.0
      %1000 = vmatprep.subr.mxu0 0.0
      %1001 = vmatpush2.msra.mxu0 0.0
      %1002 = vmatprep.subr.mxu0 0.0
      %1003 = vmatpush2.msra.mxu0 0.0
      %1004 = vmatprep.subr.mxu0 0.0
      %1005 = vmatpush2.msra.mxu0 0.0
      %1006 = vmatprep.subr.mxu0 0.0
      %1007 = vmatpush2.msra.mxu0 0.0
      %1008 = vmatprep.subr.mxu0 0.0
      %1009 = vmatpush2.msra.mxu0 0.0
      %1010 = vmatprep.subr.mxu0 0.0
      %1011 = vmatpush2.msra.mxu0 0.0
      %1012 = vmatprep.subr.mxu0 0.0
      %1013 = vmatpush2.msra.mxu0 0.0
      %1014 = vmatprep.mubr.f32.mxu0 0.0
      %1015 = vmatmul.mubr.f32.gmra.mxu0 %v948
      %v1016 = vpop.f32.mrf.mxu0
      %v1017 = vadd.f32 0.0, %v1016
      %v1018 = vpop.f32.mrf.mxu0
      %1019 = vdwg.mxu0
      %v1020 = vld [vmem:[%s4 + $0x40] sm:$0xff]
      %v1021 = vld [vmem:[%s4 + $0x48] sm:$0xff]
      %v1022 = vld [vmem:[%s4 + $0x50] sm:$0xff]
      %v1023 = vld [vmem:[%s4 + $0x58] sm:$0xff]
      %v1025 = vsel %vm369, %v1017, 0
      %1027 = vmatprep.subr.mxu0 0.0
      %1028 = vmatpush1.msra.mxu0 0.0
      %1029 = vmatprep.subr.mxu0 0.0
      %1030 = vmatpush1.msra.mxu0 0.0
      %1031 = vmatprep.subr.mxu0 0.0
      %1032 = vmatpush1.msra.mxu0 0.0
      %1033 = vmatprep.subr.mxu0 0.0
      %1034 = vmatpush1.msra.mxu0 0.0
      %1035 = vmatprep.subr.mxu0 0.0
      %1036 = vmatpush1.msra.mxu0 0.0
      %1037 = vmatprep.subr.mxu0 0.0
      %1038 = vmatpush1.msra.mxu0 0.0
      %1039 = vmatprep.subr.mxu0 0.0
      %1040 = vmatpush1.msra.mxu0 0.0
      %1041 = vmatprep.subr.mxu0 0.0
      %1042 = vmatpush1.msra.mxu0 0.0
      %1043 = vmatprep.subr.mxu0 0.0
      %1044 = vmatpush1.msra.mxu0 0.0
      %1045 = vmatprep.subr.mxu0 0.0
      %1046 = vmatpush1.msra.mxu0 0.0
      %1047 = vmatprep.subr.mxu0 0.0
      %1048 = vmatpush1.msra.mxu0 0.0
      %1049 = vmatprep.subr.mxu0 0.0
      %1050 = vmatpush1.msra.mxu0 0.0
      %1051 = vmatprep.subr.mxu0 0.0
      %1052 = vmatpush1.msra.mxu0 %v1023
      %1053 = vmatprep.subr.mxu0 0.0
      %1054 = vmatpush1.msra.mxu0 %v1022
      %1055 = vmatprep.subr.mxu0 0.0
      %1056 = vmatpush1.msra.mxu0 %v1021
      %1057 = vmatprep.subr.mxu0 0.0
      %1058 = vmatpush1.msra.mxu0 %v1020
      %1059 = vmatprep.subr.mxu0 0.0
      %1060 = vmatpush2.msra.mxu0 0.0
      %1061 = vmatprep.subr.mxu0 0.0
      %1062 = vmatpush2.msra.mxu0 0.0
      %1063 = vmatprep.subr.mxu0 0.0
      %1064 = vmatpush2.msra.mxu0 0.0
      %1065 = vmatprep.subr.mxu0 0.0
      %1066 = vmatpush2.msra.mxu0 0.0
      %1067 = vmatprep.subr.mxu0 0.0
      %1068 = vmatpush2.msra.mxu0 0.0
      %1069 = vmatprep.subr.mxu0 0.0
      %1070 = vmatpush2.msra.mxu0 0.0
      %1071 = vmatprep.subr.mxu0 0.0
      %1072 = vmatpush2.msra.mxu0 0.0
      %1073 = vmatprep.subr.mxu0 0.0
      %1074 = vmatpush2.msra.mxu0 0.0
      %1075 = vmatprep.subr.mxu0 0.0
      %1076 = vmatpush2.msra.mxu0 0.0
      %1077 = vmatprep.subr.mxu0 0.0
      %1078 = vmatpush2.msra.mxu0 0.0
      %1079 = vmatprep.subr.mxu0 0.0
      %1080 = vmatpush2.msra.mxu0 0.0
      %1081 = vmatprep.subr.mxu0 0.0
      %1082 = vmatpush2.msra.mxu0 0.0
      %1083 = vmatprep.subr.mxu0 0.0
      %1084 = vmatpush2.msra.mxu0 0.0
      %1085 = vmatprep.subr.mxu0 0.0
      %1086 = vmatpush2.msra.mxu0 0.0
      %1087 = vmatprep.subr.mxu0 0.0
      %1088 = vmatpush2.msra.mxu0 0.0
      %1089 = vmatprep.subr.mxu0 0.0
      %1090 = vmatpush2.msra.mxu0 0.0
      %1091 = vmatprep.mubr.f32.mxu0 0.0
      %1092 = vmatmul.mubr.f32.gmra.mxu0 %v1025
      %v1093 = vpop.f32.mrf.mxu0
      %v1094 = vadd.f32 0.0, %v1093
      %v1095 = vpop.f32.mrf.mxu0
      %1096 = vdwg.mxu0
      %v1097 = vadd.f32 %v850, %v1094
      %s1098 = scalar_lea.vmem %s342, 24
      %v1099 = vld [vmem:[%s1098] sm:$0xff]
      %s1100 = scalar_lea.vmem %s347, 24
      %v1101 = vld [vmem:[%s1100] sm:$0xff]
      %s1102 = scalar_lea.vmem %s352, 24
      %v1103 = vld [vmem:[%s1102] sm:$0xff]
      %v1105 = vsel %vm369, %v1099, 0
      %v1108 = vsel %vm369, %v1101, 0
      %1110 = vmatprep.subr.mxu0 0.0
      %1111 = vmatpush1.xpose.msra.mxu0 0.0
      %1112 = vmatprep.subr.mxu0 0.0
      %1113 = vmatpush1.xpose.msra.mxu0 0.0
      %1114 = vmatprep.subr.mxu0 0.0
      %1115 = vmatpush1.xpose.msra.mxu0 0.0
      %1116 = vmatprep.subr.mxu0 0.0
      %1117 = vmatpush1.xpose.msra.mxu0 0.0
      %1118 = vmatprep.subr.mxu0 0.0
      %1119 = vmatpush1.xpose.msra.mxu0 0.0
      %1120 = vmatprep.subr.mxu0 0.0
      %1121 = vmatpush1.xpose.msra.mxu0 0.0
      %1122 = vmatprep.subr.mxu0 0.0
      %1123 = vmatpush1.xpose.msra.mxu0 0.0
      %1124 = vmatprep.subr.mxu0 0.0
      %1125 = vmatpush1.xpose.msra.mxu0 0.0
      %1126 = vmatprep.subr.mxu0 0.0
      %1127 = vmatpush1.xpose.msra.mxu0 0.0
      %1128 = vmatprep.subr.mxu0 0.0
      %1129 = vmatpush1.xpose.msra.mxu0 0.0
      %1130 = vmatprep.subr.mxu0 0.0
      %1131 = vmatpush1.xpose.msra.mxu0 0.0
      %1132 = vmatprep.subr.mxu0 0.0
      %1133 = vmatpush1.xpose.msra.mxu0 0.0
      %1134 = vmatprep.subr.mxu0 0.0
      %1135 = vmatpush1.xpose.msra.mxu0 0.0
      %1136 = vmatprep.subr.mxu0 0.0
      %1137 = vmatpush1.xpose.msra.mxu0 0.0
      %1138 = vmatprep.subr.mxu0 0.0
      %1139 = vmatpush1.xpose.msra.mxu0 0.0
      %1140 = vmatprep.subr.mxu0 0.0
      %1141 = vmatpush1.xpose.msra.mxu0 %v1108
      %1142 = vmatprep.subr.mxu0 0.0
      %1143 = vmatpush2.xpose.msra.mxu0 0.0
      %1144 = vmatprep.subr.mxu0 0.0
      %1145 = vmatpush2.xpose.msra.mxu0 0.0
      %1146 = vmatprep.subr.mxu0 0.0
      %1147 = vmatpush2.xpose.msra.mxu0 0.0
      %1148 = vmatprep.subr.mxu0 0.0
      %1149 = vmatpush2.xpose.msra.mxu0 0.0
      %1150 = vmatprep.subr.mxu0 0.0
      %1151 = vmatpush2.xpose.msra.mxu0 0.0
      %1152 = vmatprep.subr.mxu0 0.0
      %1153 = vmatpush2.xpose.msra.mxu0 0.0
      %1154 = vmatprep.subr.mxu0 0.0
      %1155 = vmatpush2.xpose.msra.mxu0 0.0
      %1156 = vmatprep.subr.mxu0 0.0
      %1157 = vmatpush2.xpose.msra.mxu0 0.0
      %1158 = vmatprep.subr.mxu0 0.0
      %1159 = vmatpush2.xpose.msra.mxu0 0.0
      %1160 = vmatprep.subr.mxu0 0.0
      %1161 = vmatpush2.xpose.msra.mxu0 0.0
      %1162 = vmatprep.subr.mxu0 0.0
      %1163 = vmatpush2.xpose.msra.mxu0 0.0
      %1164 = vmatprep.subr.mxu0 0.0
      %1165 = vmatpush2.xpose.msra.mxu0 0.0
      %1166 = vmatprep.subr.mxu0 0.0
      %1167 = vmatpush2.xpose.msra.mxu0 0.0
      %1168 = vmatprep.subr.mxu0 0.0
      %1169 = vmatpush2.xpose.msra.mxu0 0.0
      %1170 = vmatprep.subr.mxu0 0.0
      %1171 = vmatpush2.xpose.msra.mxu0 0.0
      %1172 = vmatprep.subr.mxu0 0.0
      %1173 = vmatpush2.xpose.msra.mxu0 0.0
      %1174 = vmatprep.mubr.f32.mxu0 0.0
      %1175 = vmatmul.mubr.f32.gmra.mxu0 %v1105
      %v1176 = vpop.f32.mrf.mxu0
      %v1177 = vadd.f32 0.0, %v1176
      %v1178 = vpop.f32.mrf.mxu0
      %1179 = vdwg.mxu0
      %v1180 = vsel %vm365, -inf, %v1177
      %v1181 = vsel %vm447, %v1180, -inf
      %1182 = vmax.xlane.f32.xlu0 %v1181
      %v1183 = vpop.xlane.xlu0 %1182
      %v1184 = vsub.f32 %v1180, %v1183
      %v1185 = vmul.f32 %v1184, 1.442695
      %v1186 = vpow.pop %v1185
      %v1187 = vsel %vm447, %v1186, 0.0
      %1188 = vadd.xlane.f32.xlu0 %v1187
      %v1189 = vpop.xlane.xlu0 %1188
      %v1190 = vrcp.pop %v1189
      %v1191 = vmul.f32 %v1186, %v1190
      %v1193 = vsel %vm447, %v1191, 0
      %1195 = vmatprep.subr.mxu0 0.0
      %1196 = vmatpush1.msra.mxu0 0.0
      %1197 = vmatprep.subr.mxu0 0.0
      %1198 = vmatpush1.msra.mxu0 0.0
      %1199 = vmatprep.subr.mxu0 0.0
      %1200 = vmatpush1.msra.mxu0 0.0
      %1201 = vmatprep.subr.mxu0 0.0
      %1202 = vmatpush1.msra.mxu0 0.0
      %1203 = vmatprep.subr.mxu0 0.0
      %1204 = vmatpush1.msra.mxu0 0.0
      %1205 = vmatprep.subr.mxu0 0.0
      %1206 = vmatpush1.msra.mxu0 0.0
      %1207 = vmatprep.subr.mxu0 0.0
      %1208 = vmatpush1.msra.mxu0 0.0
      %1209 = vmatprep.subr.mxu0 0.0
      %1210 = vmatpush1.msra.mxu0 0.0
      %1211 = vmatprep.subr.mxu0 0.0
      %1212 = vmatpush1.msra.mxu0 0.0
      %1213 = vmatprep.subr.mxu0 0.0
      %1214 = vmatpush1.msra.mxu0 0.0
      %1215 = vmatprep.subr.mxu0 0.0
      %1216 = vmatpush1.msra.mxu0 0.0
      %1217 = vmatprep.subr.mxu0 0.0
      %1218 = vmatpush1.msra.mxu0 0.0
      %1219 = vmatprep.subr.mxu0 0.0
      %1220 = vmatpush1.msra.mxu0 0.0
      %1221 = vmatprep.subr.mxu0 0.0
      %1222 = vmatpush1.msra.mxu0 0.0
      %1223 = vmatprep.subr.mxu0 0.0
      %1224 = vmatpush1.msra.mxu0 0.0
      %1225 = vmatprep.subr.mxu0 0.0
      %1226 = vmatpush1.msra.mxu0 %v1103
      %1227 = vmatprep.subr.mxu0 0.0
      %1228 = vmatpush2.msra.mxu0 0.0
      %1229 = vmatprep.subr.mxu0 0.0
      %1230 = vmatpush2.msra.mxu0 0.0
      %1231 = vmatprep.subr.mxu0 0.0
      %1232 = vmatpush2.msra.mxu0 0.0
      %1233 = vmatprep.subr.mxu0 0.0
      %1234 = vmatpush2.msra.mxu0 0.0
      %1235 = vmatprep.subr.mxu0 0.0
      %1236 = vmatpush2.msra.mxu0 0.0
      %1237 = vmatprep.subr.mxu0 0.0
      %1238 = vmatpush2.msra.mxu0 0.0
      %1239 = vmatprep.subr.mxu0 0.0
      %1240 = vmatpush2.msra.mxu0 0.0
      %1241 = vmatprep.subr.mxu0 0.0
      %1242 = vmatpush2.msra.mxu0 0.0
      %1243 = vmatprep.subr.mxu0 0.0
      %1244 = vmatpush2.msra.mxu0 0.0
      %1245 = vmatprep.subr.mxu0 0.0
      %1246 = vmatpush2.msra.mxu0 0.0
      %1247 = vmatprep.subr.mxu0 0.0
      %1248 = vmatpush2.msra.mxu0 0.0
      %1249 = vmatprep.subr.mxu0 0.0
      %1250 = vmatpush2.msra.mxu0 0.0
      %1251 = vmatprep.subr.mxu0 0.0
      %1252 = vmatpush2.msra.mxu0 0.0
      %1253 = vmatprep.subr.mxu0 0.0
      %1254 = vmatpush2.msra.mxu0 0.0
      %1255 = vmatprep.subr.mxu0 0.0
      %1256 = vmatpush2.msra.mxu0 0.0
      %1257 = vmatprep.subr.mxu0 0.0
      %1258 = vmatpush2.msra.mxu0 0.0
      %1259 = vmatprep.mubr.f32.mxu0 0.0
      %1260 = vmatmul.mubr.f32.gmra.mxu0 %v1193
      %v1261 = vpop.f32.mrf.mxu0
      %v1262 = vadd.f32 0.0, %v1261
      %v1263 = vpop.f32.mrf.mxu0
      %1264 = vdwg.mxu0
      %v1265 = vld [vmem:[%s4 + $0x60] sm:$0xff]
      %v1266 = vld [vmem:[%s4 + $0x68] sm:$0xff]
      %v1267 = vld [vmem:[%s4 + $0x70] sm:$0xff]
      %v1268 = vld [vmem:[%s4 + $0x78] sm:$0xff]
      %v1270 = vsel %vm369, %v1262, 0
      %1272 = vmatprep.subr.mxu0 0.0
      %1273 = vmatpush1.msra.mxu0 0.0
      %1274 = vmatprep.subr.mxu0 0.0
      %1275 = vmatpush1.msra.mxu0 0.0
      %1276 = vmatprep.subr.mxu0 0.0
      %1277 = vmatpush1.msra.mxu0 0.0
      %1278 = vmatprep.subr.mxu0 0.0
      %1279 = vmatpush1.msra.mxu0 0.0
      %1280 = vmatprep.subr.mxu0 0.0
      %1281 = vmatpush1.msra.mxu0 0.0
      %1282 = vmatprep.subr.mxu0 0.0
      %1283 = vmatpush1.msra.mxu0 0.0
      %1284 = vmatprep.subr.mxu0 0.0
      %1285 = vmatpush1.msra.mxu0 0.0
      %1286 = vmatprep.subr.mxu0 0.0
      %1287 = vmatpush1.msra.mxu0 0.0
      %1288 = vmatprep.subr.mxu0 0.0
      %1289 = vmatpush1.msra.mxu0 0.0
      %1290 = vmatprep.subr.mxu0 0.0
      %1291 = vmatpush1.msra.mxu0 0.0
      %1292 = vmatprep.subr.mxu0 0.0
      %1293 = vmatpush1.msra.mxu0 0.0
      %1294 = vmatprep.subr.mxu0 0.0
      %1295 = vmatpush1.msra.mxu0 0.0
      %1296 = vmatprep.subr.mxu0 0.0
      %1297 = vmatpush1.msra.mxu0 %v1268
      %1298 = vmatprep.subr.mxu0 0.0
      %1299 = vmatpush1.msra.mxu0 %v1267
      %1300 = vmatprep.subr.mxu0 0.0
      %1301 = vmatpush1.msra.mxu0 %v1266
      %1302 = vmatprep.subr.mxu0 0.0
      %1303 = vmatpush1.msra.mxu0 %v1265
      %1304 = vmatprep.subr.mxu0 0.0
      %1305 = vmatpush2.msra.mxu0 0.0
      %1306 = vmatprep.subr.mxu0 0.0
      %1307 = vmatpush2.msra.mxu0 0.0
      %1308 = vmatprep.subr.mxu0 0.0
      %1309 = vmatpush2.msra.mxu0 0.0
      %1310 = vmatprep.subr.mxu0 0.0
      %1311 = vmatpush2.msra.mxu0 0.0
      %1312 = vmatprep.subr.mxu0 0.0
      %1313 = vmatpush2.msra.mxu0 0.0
      %1314 = vmatprep.subr.mxu0 0.0
      %1315 = vmatpush2.msra.mxu0 0.0
      %1316 = vmatprep.subr.mxu0 0.0
      %1317 = vmatpush2.msra.mxu0 0.0
      %1318 = vmatprep.subr.mxu0 0.0
      %1319 = vmatpush2.msra.mxu0 0.0
      %1320 = vmatprep.subr.mxu0 0.0
      %1321 = vmatpush2.msra.mxu0 0.0
      %1322 = vmatprep.subr.mxu0 0.0
      %1323 = vmatpush2.msra.mxu0 0.0
      %1324 = vmatprep.subr.mxu0 0.0
      %1325 = vmatpush2.msra.mxu0 0.0
      %1326 = vmatprep.subr.mxu0 0.0
      %1327 = vmatpush2.msra.mxu0 0.0
      %1328 = vmatprep.subr.mxu0 0.0
      %1329 = vmatpush2.msra.mxu0 0.0
      %1330 = vmatprep.subr.mxu0 0.0
      %1331 = vmatpush2.msra.mxu0 0.0
      %1332 = vmatprep.subr.mxu0 0.0
      %1333 = vmatpush2.msra.mxu0 0.0
      %1334 = vmatprep.subr.mxu0 0.0
      %1335 = vmatpush2.msra.mxu0 0.0
      %1336 = vmatprep.mubr.f32.mxu0 0.0
      %1337 = vmatmul.mubr.f32.gmra.mxu0 %v1270
      %v1338 = vpop.f32.mrf.mxu0
      %v1339 = vadd.f32 0.0, %v1338
      %v1340 = vpop.f32.mrf.mxu0
      %1341 = vdwg.mxu0
      %v1342 = vadd.f32 %v1097, %v1339
      %v1343 = vld [vmem:[%s5] sm:$0x1]
      %v1345 = vlaneseq
      %v1346 = vshrl.u32 %v1345, 7
      %v1347 = vsub.s32 0, %v1346
      %v1348 = vrot.slane %v1343, %v1347
      %v1350 = vadd.f32 %v1342, %v1348
      %v1351 = vld [vmem:[%s356] sm:$0xff]
      %v1352 = vadd.f32 %v1350, %v1351
      %v1353 = vsel %vm369, %v1352, 0.0
      %1354 = vadd.xlane.f32.xlu0 %v1353
      %v1355 = vpop.xlane.xlu0 %1354
      %v1356 = vrcp.pop 32.0
      %v1357 = vmul.f32 %v1355, %v1356
      %v1358 = vsub.f32 %v1352, %v1357
      %v1359 = vmul.f32 %v1358, %v1358
      %v1360 = vsel %vm369, %v1359, 0.0
      %1361 = vadd.xlane.f32.xlu0 %v1360
      %v1362 = vpop.xlane.xlu0 %1361
      %v1363 = vmul.f32 %v1362, %v1356
      %v1364 = vadd.f32 %v1363, 1e-05
      %v1365 = vrsqrt.pop %v1364
      %v1366 = vmul.f32 %v1358, %v1365
      %v1367 = vld [vmem:[%s6] sm:$0x1]
      %v1369 = vlaneseq
      %v1370 = vshrl.u32 %v1369, 7
      %v1371 = vsub.s32 0, %v1370
      %v1372 = vrot.slane %v1367, %v1371
      %v1374 = vmul.f32 %v1366, %v1372
      %v1375 = vld [vmem:[%s7] sm:$0x1]
      %v1377 = vlaneseq
      %v1378 = vshrl.u32 %v1377, 7
      %v1379 = vsub.s32 0, %v1378
      %v1380 = vrot.slane %v1375, %v1379
      %v1382 = vadd.f32 %v1374, %v1380
      %1383 = vst.msk [vmem:[%s360] sm:$0xff] %vm369, %v1382
      %p1384 = scmp.lt.s32.totalorder %s19, 1
      %s1385 = scalar_select %p1384, %s19, 1
      %s1386 = smul.addr %s1385, 8
      %s1387 = scalar_lea.vmem %s8, %s1386
      // Predicated region
      $region53: #{transformer_forward.13} parent=51 // pred_check
        %p1388 = pneg %p225
      $region54: #{transformer_forward.13} parent=51 // pred_check_branch
        %1390 = sbr.rel (%p1388) target = $region56
      $region55: #{transformer_forward.13} parent=51 // pred_region
        _
      $region56: #{transformer_forward.13} parent=51 // pred_fallthru
        _
    $region52: #{transformer_forward.13} parent=5 // pred_fallthru
      _
    %p1391 = scmp.le.s32.totalorder 2, %s14
    // Predicated region
    $region57: #{transformer_forward.13} parent=5 // pred_check
      %p1392 = pneg %p1391
    $region58: #{transformer_forward.13} parent=5 // pred_check_branch
      %1394 = sbr.rel (%p1392) target = $region60
    $region59: #{transformer_forward.13} parent=5 // pred_region
      %s1395 = ssub.s32 %s14, 2
      // Predicated region
      $region61: #{transformer_forward.13} parent=59 // pred_check
        %p1396 = pneg %p231
      $region62: #{transformer_forward.13} parent=59 // pred_check_branch
        %1398 = sbr.rel (%p1396) target = $region64
      $region63: #{transformer_forward.13} parent=59 // pred_region
        %p1399 = scmp.lt.s32.totalorder %s20, 1
        %s1400 = scalar_select %p1399, %s20, 1
        %s1401 = smul.addr %s1400, 8
        %s1402 = scalar_lea.vmem %s8, %s1401
      $region64: #{transformer_forward.13} parent=59 // pred_fallthru
        _
    $region60: #{transformer_forward.13} parent=5 // pred_fallthru
      _
  $region6: #{transformer_forward.13} parent=0 // loop_footer
    %s18 = sadd.s32 1, %s14
  $region7: #{transformer_forward.13} parent=0 // loop_footer_branch
    %13 = sbr.rel target = $region3
  $region8: #{transformer_forward.13} parent=0 // loop_exit
    _

</llo_original>
